<compile_context>
chip_gen: v7x
topology: tpu7x:2x2x1
jax: 0.10.0
libtpu: 0.0.40
codegen_flags: <defaults>
</compile_context>

<pallas_src>
import functools

import jax
import jax.numpy as jnp
from jax.experimental import pallas as pl
from jax.experimental.pallas import tpu as pltpu

_EPS = 1e-5


def _round_up(v, m):
    return (v + m - 1) // m * m


# ---------------------------------------------------------------------------
# Kernels
# ---------------------------------------------------------------------------

def _tap_slices(xm_ref, xh_ref, tm, wp):
    """The 9 shifted (Cin, tm) views of the haloed window (main + halo slab)."""
    win = jnp.concatenate([xm_ref[...], xh_ref[0]], axis=-1)   # (Cin, tm + halo)
    return [win[:, kh * wp + kw: kh * wp + kw + tm]
            for kh in range(3) for kw in range(3)]


def _conv3x3_bn_relu_kernel(mask_ref, xm_ref, xh_ref, w_ref, b_ref, o_ref, *, wp):
    # mask_ref: (1, tm)        1.0 at valid interior pixels, 0.0 at pad/tail
    # xm_ref:   (Cin, tm)      main input window block (auto-pipelined)
    # xh_ref:   (1, Cin, halo) per-tile halo slab (auto-pipelined)
    # w_ref:    (Cout, 9*Cin)  tap-stacked, BN-scale-folded conv weights
    # b_ref:    (Cout, 1)      folded BN bias
    # o_ref:    (Cout, tm)     lane-dense output tile
    tm = o_ref.shape[-1]
    stacked = jnp.concatenate(_tap_slices(xm_ref, xh_ref, tm, wp), axis=0)
    acc = jnp.dot(w_ref[...], stacked, preferred_element_type=jnp.float32)
    y = jnp.maximum(acc + b_ref[...], 0.0)
    o_ref[...] = (y * mask_ref[...]).astype(o_ref.dtype)


def _conv3x3_plus_1x1_bn_relu_kernel(mask_ref, xm_ref, xh_ref, x1_ref, w_ref,
                                     b_ref, o_ref, *, wp):
    # Fused ReLU( BN(conv3x3(pool)) + BN(conv1x1(x)) ): the 1x1 path is just one
    # more K-block in the single stacked MXU contraction.
    tm = o_ref.shape[-1]
    parts = [x1_ref[...]] + _tap_slices(xm_ref, xh_ref, tm, wp)
    stacked = jnp.concatenate(parts, axis=0)            # (Cin1 + 9*Cin3, tm)
    acc = jnp.dot(w_ref[...], stacked, preferred_element_type=jnp.float32)
    y = jnp.maximum(acc + b_ref[...], 0.0)
    o_ref[...] = (y * mask_ref[...]).astype(o_ref.dtype)


# ---------------------------------------------------------------------------
# Parameter folding helpers (BN folded, channels padded, taps K-stacked)
# ---------------------------------------------------------------------------

def _prep_conv3(weight, bn, cin_pad, cout_pad):
    # weight: (Cout, Cin, 3, 3) -> (Cout_pad, 9*Cin_pad), tap-major (kh, kw, ci)
    gamma, beta, mean, var = bn
    cout, cin = weight.shape[:2]
    scale = gamma / jnp.sqrt(var + _EPS)
    w = weight * scale[:, None, None, None]
    w = jnp.pad(w, ((0, cout_pad - cout), (0, cin_pad - cin), (0, 0), (0, 0)))
    w = jnp.transpose(w, (0, 2, 3, 1)).reshape(cout_pad, 9 * cin_pad)
    b = jnp.pad(beta - mean * scale, (0, cout_pad - cout))[:, None]
    return w.astype(jnp.float32), b.astype(jnp.float32)


def _prep_conv1(weight, bn, cin_pad, cout_pad):
    # weight: (Cout, Cin, 1, 1) -> (Cout_pad, Cin_pad), BN scale folded in.
    gamma, beta, mean, var = bn
    cout, cin = weight.shape[:2]
    scale = gamma / jnp.sqrt(var + _EPS)
    w = weight[:, :, 0, 0] * scale[:, None]
    w = jnp.pad(w, ((0, cout_pad - cout), (0, cin_pad - cin)))
    b = jnp.pad(beta - mean * scale, (0, cout_pad - cout))[:, None]
    return w.astype(jnp.float32), b.astype(jnp.float32)


# ---------------------------------------------------------------------------
# Forward pass
# ---------------------------------------------------------------------------

def line_pool_forward(x, params, *, tm_cap=2048, target_steps=8):
    """Pallas forward of `line_pool` (eval-mode BN). x: (N, dim, H, W) f32."""
    N, dim, H, W = x.shape
    dimp = _round_up(dim, 8)                   # sublane-friendly channel count
    Hp, Wp = H + 2, W + 2                      # 1-pixel zero pad for k=3
    mpad = N * Hp * Wp                         # flat padded spatial length
    halo = 2 * Wp + 2                          # exact halo covering all 9 taps
    lead = Wp + 1                              # zeros before the first pixel

    # lane-dense tile: multiple of 128, sized for >= ~target_steps grid steps
    # (>= 4 per core on the 2-TC v7x) so the auto-pipeline can overlap DMA.
    tm = max(128, min(tm_cap, _round_up(-(-mpad // target_steps), 128)))
    grid = -(-mpad // tm)
    lout = grid * tm
    lin = lout + halo

    # validity mask over padded-flat coordinates (shared by all conv stages)
    q = jnp.arange(lout, dtype=jnp.int32)
    qm = q % (Hp * Wp)
    r, c = qm // Wp, qm % Wp
    mask = ((q < mpad) & (r >= 1) & (r <= H) & (c >= 1) & (c <= W))
    mask = mask.astype(jnp.float32)[None, :]                    # (1, lout)

    def to_flat(x_nchw, ch_pad):
        n, ch = x_nchw.shape[:2]
        xp = jnp.pad(x_nchw, ((0, 0), (0, ch_pad - ch), (1, 1), (1, 1)))
        return jnp.transpose(xp, (1, 0, 2, 3)).reshape(ch_pad, n * Hp * Wp)

    def conv_inputs(a_flat):
        # main (Cin, lout) window blocks + per-tile (grid, Cin, halo) halo slab
        x_in = jnp.pad(a_flat, ((0, 0), (lead, lin - lead - a_flat.shape[1])))
        main = x_in[:, :lout]
        idx = (jnp.arange(grid) + 1)[:, None] * tm + jnp.arange(halo)[None, :]
        slab = jnp.transpose(x_in[:, idx], (1, 0, 2))           # (grid, Cin, halo)
        return main, slab

    mosaic = pltpu.CompilerParams(dimension_semantics=("parallel",),
                                  vmem_limit_bytes=32 * 1024 * 1024)

    def conv3(a_flat, w, b):
        cout, k9 = w.shape
        cin = k9 // 9
        main, slab = conv_inputs(a_flat)
        kern = functools.partial(_conv3x3_bn_relu_kernel, wp=Wp)
        return pl.pallas_call(
            kern,
            out_shape=jax.ShapeDtypeStruct((cout, lout), jnp.float32),
            grid_spec=pltpu.PrefetchScalarGridSpec(
                num_scalar_prefetch=0,
                grid=(grid,),
                in_specs=[
                    pl.BlockSpec((1, tm), lambda i: (0, i)),             # mask
                    pl.BlockSpec((cin, tm), lambda i: (0, i)),           # main win
                    pl.BlockSpec((1, cin, halo), lambda i: (i, 0, 0)),   # halo slab
                    pl.BlockSpec((cout, k9), lambda i: (0, 0)),          # weights
                    pl.BlockSpec((cout, 1), lambda i: (0, 0)),           # bias
                ],
                out_specs=pl.BlockSpec((cout, tm), lambda i: (0, i)),
            ),
            compiler_params=mosaic,
        )(mask, main, slab, w, b)

    def conv3_plus_1(a3_flat, a1_flat, w, b):
        cout, k = w.shape
        cin1 = a1_flat.shape[0]
        cin3 = (k - cin1) // 9
        main, slab = conv_inputs(a3_flat)
        a1 = jnp.pad(a1_flat, ((0, 0), (0, lout - a1_flat.shape[1])))
        kern = functools.partial(_conv3x3_plus_1x1_bn_relu_kernel, wp=Wp)
        return pl.pallas_call(
            kern,
            out_shape=jax.ShapeDtypeStruct((cout, lout), jnp.float32),
            grid_spec=pltpu.PrefetchScalarGridSpec(
                num_scalar_prefetch=0,
                grid=(grid,),
                in_specs=[
                    pl.BlockSpec((1, tm), lambda i: (0, i)),             # mask
                    pl.BlockSpec((cin3, tm), lambda i: (0, i)),          # pool win
                    pl.BlockSpec((1, cin3, halo), lambda i: (i, 0, 0)),  # halo slab
                    pl.BlockSpec((cin1, tm), lambda i: (0, i)),          # x (1x1)
                    pl.BlockSpec((cout, k), lambda i: (0, 0)),           # weights
                    pl.BlockSpec((cout, 1), lambda i: (0, 0)),           # bias
                ],
                out_specs=pl.BlockSpec((cout, tm), lambda i: (0, i)),
            ),
            compiler_params=mosaic,
        )(mask, main, slab, a1, w, b)

    # ---- fold BN into tap-stacked weights / biases --------------------------
    wA, bA = _prep_conv3(params["p1_conv1_w"], params["p1_conv1_bn"], dimp, 128)
    wB3, bB3 = _prep_conv3(params["p_conv1_w"], params["p_bn1"], 128, dimp)
    wB1, bB1 = _prep_conv1(params["conv1_w"], params["bn1"], dimp, dimp)
    wC, bC = _prep_conv3(params["conv2_w"], params["conv2_bn"], dimp, dimp)
    wB = jnp.concatenate([wB1, wB3], axis=1)        # fused (1x1 | 9 taps) weights
    bB = bB1 + bB3

    x_flat = to_flat(x, dimp)                                   # (dimp, mpad)

    # stage 1: p1_conv1 = ReLU(BN(conv3x3(x)))  -> (128, lout), zero at pads
    y1 = conv3(x_flat, wA, bA)

    # stage 2: line pool over W (keepdim) + expand.
    # TODO(synk): `pool1` is an externally-injected module class; assumed to be
    # a full-width line max pool (keepdim) consistent with the expand_as usage.
    # TODO(synk): row-max stays a small XLA pass over y1 (fusing it into stage 1
    # needs a segmented lane reduction; deferred).
    y1_4d = y1[:, :mpad].reshape(128, N, Hp, Wp)
    rowmax = jnp.max(y1_4d, axis=3, keepdims=True)          # ReLU out >= 0, so
    col_ok = ((jnp.arange(Wp) >= 1) & (jnp.arange(Wp) <= W)).astype(jnp.float32)
    pool_flat = (rowmax * col_ok[None, None, None, :]).reshape(128, mpad)

    # stage 3: relu1 = ReLU(BN(conv3x3(pool)) + BN(conv1x1(x)))  (fused)
    y2 = conv3_plus_1(pool_flat, x_flat, wB, bB)                # (dimp, lout)

    # stage 4: conv2 = ReLU(BN(conv3x3(relu1)))
    y3 = conv3(y2, wC, bC)                                      # (dimp, lout)

    out = y3[:dim, :mpad].reshape(dim, N, Hp, Wp)[:, :, 1:1 + H, 1:1 + W]
    return jnp.transpose(out, (1, 0, 2, 3))                     # (N, dim, H, W)


# ---------------------------------------------------------------------------
# Pure-JAX reference
# ---------------------------------------------------------------------------

def _reference(x, params):
    hi = jax.lax.Precision.HIGHEST

    def conv(x, w, pad):
        return jax.lax.conv_general_dilated(
            x, w, window_strides=(1, 1), padding=((pad, pad), (pad, pad)),
            dimension_numbers=("NCHW", "OIHW", "NCHW"), precision=hi)

    def bn(y, p):
        gamma, beta, mean, var = p
        s = gamma / jnp.sqrt(var + _EPS)
        return y * s[None, :, None, None] + (beta - mean * s)[None, :, None, None]

    p1 = jnp.maximum(bn(conv(x, params["p1_conv1_w"], 1), params["p1_conv1_bn"]), 0.0)
    pool = jnp.broadcast_to(jnp.max(p1, axis=3, keepdims=True), p1.shape)
    p_bn1 = bn(conv(pool, params["p_conv1_w"], 1), params["p_bn1"])
    bn1 = bn(conv(x, params["conv1_w"], 0), params["bn1"])
    relu1 = jnp.maximum(p_bn1 + bn1, 0.0)
    return jnp.maximum(bn(conv(relu1, params["conv2_w"], 1), params["conv2_bn"]), 0.0)


if __name__ == "__main__":
    dim = 4
    N, H, W = 2, 16, 16

    key = jax.random.PRNGKey(0)
    ks = jax.random.split(key, 9)

    def bn_params(k, ch):
        k1, k2, k3, k4 = jax.random.split(k, 4)
        gamma = 1.0 + 0.1 * jax.random.normal(k1, (ch,), jnp.float32)
        beta = 0.1 * jax.random.normal(k2, (ch,), jnp.float32)
        mean = 0.1 * jax.random.normal(k3, (ch,), jnp.float32)
        var = jnp.abs(jax.random.normal(k4, (ch,), jnp.float32)) + 0.5
        return gamma, beta, mean, var

    x = jax.random.normal(ks[0], (N, dim, H, W), jnp.float32)
    params = {
        "p1_conv1_w": 0.1 * jax.random.normal(ks[1], (128, dim, 3, 3), jnp.float32),
        "p1_conv1_bn": bn_params(ks[2], 128),
        "p_conv1_w": 0.1 * jax.random.normal(ks[3], (dim, 128, 3, 3), jnp.float32),
        "p_bn1": bn_params(ks[4], dim),
        "conv1_w": 0.1 * jax.random.normal(ks[5], (dim, dim, 1, 1), jnp.float32),
        "bn1": bn_params(ks[6], dim),
        "conv2_w": 0.1 * jax.random.normal(ks[7], (dim, dim, 3, 3), jnp.float32),
        "conv2_bn": bn_params(ks[8], dim),
    }

    fwd = jax.jit(line_pool_forward)
    out = fwd(x, params)
    jax.block_until_ready(out)

    ref = _reference(x, params)
    assert out.shape == (N, dim, H, W), out.shape
    err = float(jnp.max(jnp.abs(out - ref)))
    assert jnp.allclose(out, ref, atol=1e-3, rtol=1e-3), f"mismatch, max|d|={err}"

    print("KERNEL_OK")
</pallas_src>

<mosaic_0001>
module attributes {stable_mosaic.version = 11 : i64} {
  func.func @_conv3x3_bn_relu_kernel(%arg0: i32, %arg1: memref<1x128xf32, #tpu.memory_space<vmem>>, %arg2: memref<8x128xf32, #tpu.memory_space<vmem>>, %arg3: memref<1x8x38xf32, #tpu.memory_space<vmem>>, %arg4: memref<128x72xf32, #tpu.memory_space<vmem>>, %arg5: memref<128x1xf32, #tpu.memory_space<vmem>>, %arg6: memref<128x128xf32, #tpu.memory_space<vmem>>) attributes {dimension_semantics = [#tpu.dimension_semantics<parallel>], iteration_bounds = array<i64: 6>, scalar_prefetch = 0 : i64, scratch_operands = 0 : i64, tpu.core_type = #tpu.core_type<tc>, window_params = [{transform_indices = @transform_0, window_bounds = array<i64: 1, 128>}, {transform_indices = @transform_1, window_bounds = array<i64: 8, 128>}, {transform_indices = @transform_2, window_bounds = array<i64: 1, 8, 38>}, {pipeline_mode = #tpu.pipeline_mode<synchronous>, transform_indices = @transform_3, window_bounds = array<i64: 128, 72>}, {pipeline_mode = #tpu.pipeline_mode<synchronous>, transform_indices = @transform_4, window_bounds = array<i64: 128, 1>}, {transform_indices = @transform_5, window_bounds = array<i64: 128, 128>}]} {
    %c0 = arith.constant 0 : index
    %c0_0 = arith.constant 0 : index
    %0 = vector.load %arg2[%c0, %c0_0] : memref<8x128xf32, #tpu.memory_space<vmem>>, vector<8x128xf32>
    %c0_1 = arith.constant 0 : index
    %c0_2 = arith.constant 0 : index
    %c0_3 = arith.constant 0 : index
    %1 = vector.load %arg3[%c0_1, %c0_2, %c0_3] : memref<1x8x38xf32, #tpu.memory_space<vmem>>, vector<1x8x38xf32>
    %2 = vector.shape_cast %1 : vector<1x8x38xf32> to vector<8x38xf32>
    %3 = tpu.concatenate %0, %2 in 1 : vector<8x128xf32>, vector<8x38xf32> -> vector<8x166xf32>
    %4 = vector.extract_strided_slice %3 {offsets = [0, 0], sizes = [8, 128], strides = [1, 1]} : vector<8x166xf32> to vector<8x128xf32>
    %5 = vector.extract_strided_slice %3 {offsets = [0, 1], sizes = [8, 128], strides = [1, 1]} : vector<8x166xf32> to vector<8x128xf32>
    %6 = vector.extract_strided_slice %3 {offsets = [0, 2], sizes = [8, 128], strides = [1, 1]} : vector<8x166xf32> to vector<8x128xf32>
    %7 = vector.extract_strided_slice %3 {offsets = [0, 18], sizes = [8, 128], strides = [1, 1]} : vector<8x166xf32> to vector<8x128xf32>
    %8 = vector.extract_strided_slice %3 {offsets = [0, 19], sizes = [8, 128], strides = [1, 1]} : vector<8x166xf32> to vector<8x128xf32>
    %9 = vector.extract_strided_slice %3 {offsets = [0, 20], sizes = [8, 128], strides = [1, 1]} : vector<8x166xf32> to vector<8x128xf32>
    %10 = vector.extract_strided_slice %3 {offsets = [0, 36], sizes = [8, 128], strides = [1, 1]} : vector<8x166xf32> to vector<8x128xf32>
    %11 = vector.extract_strided_slice %3 {offsets = [0, 37], sizes = [8, 128], strides = [1, 1]} : vector<8x166xf32> to vector<8x128xf32>
    %12 = vector.extract_strided_slice %3 {offsets = [0, 38], sizes = [8, 128], strides = [1, 1]} : vector<8x166xf32> to vector<8x128xf32>
    %13 = tpu.concatenate %4, %5, %6, %7, %8, %9, %10, %11, %12 in 0 : vector<8x128xf32>, vector<8x128xf32>, vector<8x128xf32>, vector<8x128xf32>, vector<8x128xf32>, vector<8x128xf32>, vector<8x128xf32>, vector<8x128xf32>, vector<8x128xf32> -> vector<72x128xf32>
    %c0_4 = arith.constant 0 : index
    %c0_5 = arith.constant 0 : index
    %14 = vector.load %arg4[%c0_4, %c0_5] : memref<128x72xf32, #tpu.memory_space<vmem>>, vector<128x72xf32>
    %cst = arith.constant dense<0.000000e+00> : vector<128x128xf32>
    %15 = tpu.matmul %14, %13, %cst {dimension_numbers = #tpu.dot_dimension_numbers<[1], [0], [0], [1], [0, 0, 1, 1], [], []>} : vector<128x72xf32>, vector<72x128xf32>, vector<128x128xf32> -> vector<128x128xf32>
    %c0_6 = arith.constant 0 : index
    %c0_7 = arith.constant 0 : index
    %16 = vector.load %arg5[%c0_6, %c0_7] : memref<128x1xf32, #tpu.memory_space<vmem>>, vector<128x1xf32>
    %17 = vector.broadcast %16 : vector<128x1xf32> to vector<128x128xf32>
    %18 = arith.addf %15, %17 : vector<128x128xf32>
    %cst_8 = arith.constant 0.000000e+00 : f32
    %19 = vector.broadcast %cst_8 : f32 to vector<128x128xf32>
    %20 = arith.maximumf %18, %19 : vector<128x128xf32>
    %c0_9 = arith.constant 0 : index
    %c0_10 = arith.constant 0 : index
    %21 = vector.load %arg1[%c0_9, %c0_10] : memref<1x128xf32, #tpu.memory_space<vmem>>, vector<1x128xf32>
    %22 = vector.broadcast %21 : vector<1x128xf32> to vector<128x128xf32>
    %23 = arith.mulf %20, %22 : vector<128x128xf32>
    %c0_11 = arith.constant 0 : index
    %c0_12 = arith.constant 0 : index
    %24 = vector.load %arg6[%c0_11, %c0_12] : memref<128x128xf32, #tpu.memory_space<vmem>>, vector<128x128xf32>
    tpu.vector_store %arg6[%c0_11, %c0_12], %23 {strides = array<i32>} : memref<128x128xf32, #tpu.memory_space<vmem>>, vector<128x128xf32>,
    return
  }
  func.func @transform_0(%arg0: i32) -> (i32, i32) {
    %c0_i32 = arith.constant 0 : i32
    %c0_i32_0 = arith.constant 0 : i32
    return %c0_i32, %arg0 : i32, i32
  }
  func.func @transform_1(%arg0: i32) -> (i32, i32) {
    %c0_i32 = arith.constant 0 : i32
    %c0_i32_0 = arith.constant 0 : i32
    return %c0_i32, %arg0 : i32, i32
  }
  func.func @transform_2(%arg0: i32) -> (i32, i32, i32) {
    %c0_i32 = arith.constant 0 : i32
    %c0_i32_0 = arith.constant 0 : i32
    %c0_i32_1 = arith.constant 0 : i32
    return %arg0, %c0_i32, %c0_i32_0 : i32, i32, i32
  }
  func.func @transform_3(%arg0: i32) -> (i32, i32) {
    %c0_i32 = arith.constant 0 : i32
    %c0_i32_0 = arith.constant 0 : i32
    %c0_i32_1 = arith.constant 0 : i32
    return %c0_i32, %c0_i32_0 : i32, i32
  }
  func.func @transform_4(%arg0: i32) -> (i32, i32) {
    %c0_i32 = arith.constant 0 : i32
    %c0_i32_0 = arith.constant 0 : i32
    %c0_i32_1 = arith.constant 0 : i32
    return %c0_i32, %c0_i32_0 : i32, i32
  }
  func.func @transform_5(%arg0: i32) -> (i32, i32) {
    %c0_i32 = arith.constant 0 : i32
    %c0_i32_0 = arith.constant 0 : i32
    return %c0_i32, %arg0 : i32, i32
  }
}

module attributes {stable_mosaic.version = 11 : i64} {
  func.func @_conv3x3_plus_1x1_bn_relu_kernel(%arg0: i32, %arg1: memref<1x128xf32, #tpu.memory_space<vmem>>, %arg2: memref<128x128xf32, #tpu.memory_space<vmem>>, %arg3: memref<1x128x38xf32, #tpu.memory_space<vmem>>, %arg4: memref<8x128xf32, #tpu.memory_space<vmem>>, %arg5: memref<8x1160xf32, #tpu.memory_space<vmem>>, %arg6: memref<8x1xf32, #tpu.memory_space<vmem>>, %arg7: memref<8x128xf32, #tpu.memory_space<vmem>>) attributes {dimension_semantics = [#tpu.dimension_semantics<parallel>], iteration_bounds = array<i64: 6>, scalar_prefetch = 0 : i64, scratch_operands = 0 : i64, tpu.core_type = #tpu.core_type<tc>, window_params = [{transform_indices = @transform_0, window_bounds = array<i64: 1, 128>}, {transform_indices = @transform_1, window_bounds = array<i64: 128, 128>}, {transform_indices = @transform_2, window_bounds = array<i64: 1, 128, 38>}, {transform_indices = @transform_3, window_bounds = array<i64: 8, 128>}, {pipeline_mode = #tpu.pipeline_mode<synchronous>, transform_indices = @transform_4, window_bounds = array<i64: 8, 1160>}, {pipeline_mode = #tpu.pipeline_mode<synchronous>, transform_indices = @transform_5, window_bounds = array<i64: 8, 1>}, {transform_indices = @transform_6, window_bounds = array<i64: 8, 128>}]} {
    %c0 = arith.constant 0 : index
    %c0_0 = arith.constant 0 : index
    %0 = vector.load %arg4[%c0, %c0_0] : memref<8x128xf32, #tpu.memory_space<vmem>>, vector<8x128xf32>
    %c0_1 = arith.constant 0 : index
    %c0_2 = arith.constant 0 : index
    %1 = vector.load %arg2[%c0_1, %c0_2] : memref<128x128xf32, #tpu.memory_space<vmem>>, vector<128x128xf32>
    %c0_3 = arith.constant 0 : index
    %c0_4 = arith.constant 0 : index
    %c0_5 = arith.constant 0 : index
    %2 = vector.load %arg3[%c0_3, %c0_4, %c0_5] : memref<1x128x38xf32, #tpu.memory_space<vmem>>, vector<1x128x38xf32>
    %3 = vector.shape_cast %2 : vector<1x128x38xf32> to vector<128x38xf32>
    %4 = tpu.concatenate %1, %3 in 1 : vector<128x128xf32>, vector<128x38xf32> -> vector<128x166xf32>
    %5 = vector.extract_strided_slice %4 {offsets = [0, 0], sizes = [128, 128], strides = [1, 1]} : vector<128x166xf32> to vector<128x128xf32>
    %6 = vector.extract_strided_slice %4 {offsets = [0, 1], sizes = [128, 128], strides = [1, 1]} : vector<128x166xf32> to vector<128x128xf32>
    %7 = vector.extract_strided_slice %4 {offsets = [0, 2], sizes = [128, 128], strides = [1, 1]} : vector<128x166xf32> to vector<128x128xf32>
    %8 = vector.extract_strided_slice %4 {offsets = [0, 18], sizes = [128, 128], strides = [1, 1]} : vector<128x166xf32> to vector<128x128xf32>
    %9 = vector.extract_strided_slice %4 {offsets = [0, 19], sizes = [128, 128], strides = [1, 1]} : vector<128x166xf32> to vector<128x128xf32>
    %10 = vector.extract_strided_slice %4 {offsets = [0, 20], sizes = [128, 128], strides = [1, 1]} : vector<128x166xf32> to vector<128x128xf32>
    %11 = vector.extract_strided_slice %4 {offsets = [0, 36], sizes = [128, 128], strides = [1, 1]} : vector<128x166xf32> to vector<128x128xf32>
    %12 = vector.extract_strided_slice %4 {offsets = [0, 37], sizes = [128, 128], strides = [1, 1]} : vector<128x166xf32> to vector<128x128xf32>
    %13 = vector.extract_strided_slice %4 {offsets = [0, 38], sizes = [128, 128], strides = [1, 1]} : vector<128x166xf32> to vector<128x128xf32>
    %14 = tpu.concatenate %0, %5, %6, %7, %8, %9, %10, %11, %12, %13 in 0 : vector<8x128xf32>, vector<128x128xf32>, vector<128x128xf32>, vector<128x128xf32>, vector<128x128xf32>, vector<128x128xf32>, vector<128x128xf32>, vector<128x128xf32>, vector<128x128xf32>, vector<128x128xf32> -> vector<1160x128xf32>
    %c0_6 = arith.constant 0 : index
    %c0_7 = arith.constant 0 : index
    %15 = vector.load %arg5[%c0_6, %c0_7] : memref<8x1160xf32, #tpu.memory_space<vmem>>, vector<8x1160xf32>
    %cst = arith.constant dense<0.000000e+00> : vector<8x128xf32>
    %16 = tpu.matmul %15, %14, %cst {dimension_numbers = #tpu.dot_dimension_numbers<[1], [0], [0], [1], [0, 0, 1, 1], [], []>} : vector<8x1160xf32>, vector<1160x128xf32>, vector<8x128xf32> -> vector<8x128xf32>
    %c0_8 = arith.constant 0 : index
    %c0_9 = arith.constant 0 : index
    %17 = vector.load %arg6[%c0_8, %c0_9] : memref<8x1xf32, #tpu.memory_space<vmem>>, vector<8x1xf32>
    %18 = vector.broadcast %17 : vector<8x1xf32> to vector<8x128xf32>
    %19 = arith.addf %16, %18 : vector<8x128xf32>
    %cst_10 = arith.constant 0.000000e+00 : f32
    %20 = vector.broadcast %cst_10 : f32 to vector<8x128xf32>
    %21 = arith.maximumf %19, %20 : vector<8x128xf32>
    %c0_11 = arith.constant 0 : index
    %c0_12 = arith.constant 0 : index
    %22 = vector.load %arg1[%c0_11, %c0_12] : memref<1x128xf32, #tpu.memory_space<vmem>>, vector<1x128xf32>
    %23 = vector.broadcast %22 : vector<1x128xf32> to vector<8x128xf32>
    %24 = arith.mulf %21, %23 : vector<8x128xf32>
    %c0_13 = arith.constant 0 : index
    %c0_14 = arith.constant 0 : index
    %25 = vector.load %arg7[%c0_13, %c0_14] : memref<8x128xf32, #tpu.memory_space<vmem>>, vector<8x128xf32>
    tpu.vector_store %arg7[%c0_13, %c0_14], %24 {strides = array<i32>} : memref<8x128xf32, #tpu.memory_space<vmem>>, vector<8x128xf32>,
    return
  }
  func.func @transform_0(%arg0: i32) -> (i32, i32) {
    %c0_i32 = arith.constant 0 : i32
    %c0_i32_0 = arith.constant 0 : i32
    return %c0_i32, %arg0 : i32, i32
  }
  func.func @transform_1(%arg0: i32) -> (i32, i32) {
    %c0_i32 = arith.constant 0 : i32
    %c0_i32_0 = arith.constant 0 : i32
    return %c0_i32, %arg0 : i32, i32
  }
  func.func @transform_2(%arg0: i32) -> (i32, i32, i32) {
    %c0_i32 = arith.constant 0 : i32
    %c0_i32_0 = arith.constant 0 : i32
    %c0_i32_1 = arith.constant 0 : i32
    return %arg0, %c0_i32, %c0_i32_0 : i32, i32, i32
  }
  func.func @transform_3(%arg0: i32) -> (i32, i32) {
    %c0_i32 = arith.constant 0 : i32
    %c0_i32_0 = arith.constant 0 : i32
    return %c0_i32, %arg0 : i32, i32
  }
  func.func @transform_4(%arg0: i32) -> (i32, i32) {
    %c0_i32 = arith.constant 0 : i32
    %c0_i32_0 = arith.constant 0 : i32
    %c0_i32_1 = arith.constant 0 : i32
    return %c0_i32, %c0_i32_0 : i32, i32
  }
  func.func @transform_5(%arg0: i32) -> (i32, i32) {
    %c0_i32 = arith.constant 0 : i32
    %c0_i32_0 = arith.constant 0 : i32
    %c0_i32_1 = arith.constant 0 : i32
    return %c0_i32, %c0_i32_0 : i32, i32
  }
  func.func @transform_6(%arg0: i32) -> (i32, i32) {
    %c0_i32 = arith.constant 0 : i32
    %c0_i32_0 = arith.constant 0 : i32
    return %c0_i32, %arg0 : i32, i32
  }
}

module attributes {stable_mosaic.version = 11 : i64} {
  func.func @_conv3x3_bn_relu_kernel(%arg0: i32, %arg1: memref<1x128xf32, #tpu.memory_space<vmem>>, %arg2: memref<8x128xf32, #tpu.memory_space<vmem>>, %arg3: memref<1x8x38xf32, #tpu.memory_space<vmem>>, %arg4: memref<8x72xf32, #tpu.memory_space<vmem>>, %arg5: memref<8x1xf32, #tpu.memory_space<vmem>>, %arg6: memref<8x128xf32, #tpu.memory_space<vmem>>) attributes {dimension_semantics = [#tpu.dimension_semantics<parallel>], iteration_bounds = array<i64: 6>, scalar_prefetch = 0 : i64, scratch_operands = 0 : i64, tpu.core_type = #tpu.core_type<tc>, window_params = [{transform_indices = @transform_0, window_bounds = array<i64: 1, 128>}, {transform_indices = @transform_1, window_bounds = array<i64: 8, 128>}, {transform_indices = @transform_2, window_bounds = array<i64: 1, 8, 38>}, {pipeline_mode = #tpu.pipeline_mode<synchronous>, transform_indices = @transform_3, window_bounds = array<i64: 8, 72>}, {pipeline_mode = #tpu.pipeline_mode<synchronous>, transform_indices = @transform_4, window_bounds = array<i64: 8, 1>}, {transform_indices = @transform_5, window_bounds = array<i64: 8, 128>}]} {
    %c0 = arith.constant 0 : index
    %c0_0 = arith.constant 0 : index
    %0 = vector.load %arg2[%c0, %c0_0] : memref<8x128xf32, #tpu.memory_space<vmem>>, vector<8x128xf32>
    %c0_1 = arith.constant 0 : index
    %c0_2 = arith.constant 0 : index
    %c0_3 = arith.constant 0 : index
    %1 = vector.load %arg3[%c0_1, %c0_2, %c0_3] : memref<1x8x38xf32, #tpu.memory_space<vmem>>, vector<1x8x38xf32>
    %2 = vector.shape_cast %1 : vector<1x8x38xf32> to vector<8x38xf32>
    %3 = tpu.concatenate %0, %2 in 1 : vector<8x128xf32>, vector<8x38xf32> -> vector<8x166xf32>
    %4 = vector.extract_strided_slice %3 {offsets = [0, 0], sizes = [8, 128], strides = [1, 1]} : vector<8x166xf32> to vector<8x128xf32>
    %5 = vector.extract_strided_slice %3 {offsets = [0, 1], sizes = [8, 128], strides = [1, 1]} : vector<8x166xf32> to vector<8x128xf32>
    %6 = vector.extract_strided_slice %3 {offsets = [0, 2], sizes = [8, 128], strides = [1, 1]} : vector<8x166xf32> to vector<8x128xf32>
    %7 = vector.extract_strided_slice %3 {offsets = [0, 18], sizes = [8, 128], strides = [1, 1]} : vector<8x166xf32> to vector<8x128xf32>
    %8 = vector.extract_strided_slice %3 {offsets = [0, 19], sizes = [8, 128], strides = [1, 1]} : vector<8x166xf32> to vector<8x128xf32>
    %9 = vector.extract_strided_slice %3 {offsets = [0, 20], sizes = [8, 128], strides = [1, 1]} : vector<8x166xf32> to vector<8x128xf32>
    %10 = vector.extract_strided_slice %3 {offsets = [0, 36], sizes = [8, 128], strides = [1, 1]} : vector<8x166xf32> to vector<8x128xf32>
    %11 = vector.extract_strided_slice %3 {offsets = [0, 37], sizes = [8, 128], strides = [1, 1]} : vector<8x166xf32> to vector<8x128xf32>
    %12 = vector.extract_strided_slice %3 {offsets = [0, 38], sizes = [8, 128], strides = [1, 1]} : vector<8x166xf32> to vector<8x128xf32>
    %13 = tpu.concatenate %4, %5, %6, %7, %8, %9, %10, %11, %12 in 0 : vector<8x128xf32>, vector<8x128xf32>, vector<8x128xf32>, vector<8x128xf32>, vector<8x128xf32>, vector<8x128xf32>, vector<8x128xf32>, vector<8x128xf32>, vector<8x128xf32> -> vector<72x128xf32>
    %c0_4 = arith.constant 0 : index
    %c0_5 = arith.constant 0 : index
    %14 = vector.load %arg4[%c0_4, %c0_5] : memref<8x72xf32, #tpu.memory_space<vmem>>, vector<8x72xf32>
    %cst = arith.constant dense<0.000000e+00> : vector<8x128xf32>
    %15 = tpu.matmul %14, %13, %cst {dimension_numbers = #tpu.dot_dimension_numbers<[1], [0], [0], [1], [0, 0, 1, 1], [], []>} : vector<8x72xf32>, vector<72x128xf32>, vector<8x128xf32> -> vector<8x128xf32>
    %c0_6 = arith.constant 0 : index
    %c0_7 = arith.constant 0 : index
    %16 = vector.load %arg5[%c0_6, %c0_7] : memref<8x1xf32, #tpu.memory_space<vmem>>, vector<8x1xf32>
    %17 = vector.broadcast %16 : vector<8x1xf32> to vector<8x128xf32>
    %18 = arith.addf %15, %17 : vector<8x128xf32>
    %cst_8 = arith.constant 0.000000e+00 : f32
    %19 = vector.broadcast %cst_8 : f32 to vector<8x128xf32>
    %20 = arith.maximumf %18, %19 : vector<8x128xf32>
    %c0_9 = arith.constant 0 : index
    %c0_10 = arith.constant 0 : index
    %21 = vector.load %arg1[%c0_9, %c0_10] : memref<1x128xf32, #tpu.memory_space<vmem>>, vector<1x128xf32>
    %22 = vector.broadcast %21 : vector<1x128xf32> to vector<8x128xf32>
    %23 = arith.mulf %20, %22 : vector<8x128xf32>
    %c0_11 = arith.constant 0 : index
    %c0_12 = arith.constant 0 : index
    %24 = vector.load %arg6[%c0_11, %c0_12] : memref<8x128xf32, #tpu.memory_space<vmem>>, vector<8x128xf32>
    tpu.vector_store %arg6[%c0_11, %c0_12], %23 {strides = array<i32>} : memref<8x128xf32, #tpu.memory_space<vmem>>, vector<8x128xf32>,
    return
  }
  func.func @transform_0(%arg0: i32) -> (i32, i32) {
    %c0_i32 = arith.constant 0 : i32
    %c0_i32_0 = arith.constant 0 : i32
    return %c0_i32, %arg0 : i32, i32
  }
  func.func @transform_1(%arg0: i32) -> (i32, i32) {
    %c0_i32 = arith.constant 0 : i32
    %c0_i32_0 = arith.constant 0 : i32
    return %c0_i32, %arg0 : i32, i32
  }
  func.func @transform_2(%arg0: i32) -> (i32, i32, i32) {
    %c0_i32 = arith.constant 0 : i32
    %c0_i32_0 = arith.constant 0 : i32
    %c0_i32_1 = arith.constant 0 : i32
    return %arg0, %c0_i32, %c0_i32_0 : i32, i32, i32
  }
  func.func @transform_3(%arg0: i32) -> (i32, i32) {
    %c0_i32 = arith.constant 0 : i32
    %c0_i32_0 = arith.constant 0 : i32
    %c0_i32_1 = arith.constant 0 : i32
    return %c0_i32, %c0_i32_0 : i32, i32
  }
  func.func @transform_4(%arg0: i32) -> (i32, i32) {
    %c0_i32 = arith.constant 0 : i32
    %c0_i32_0 = arith.constant 0 : i32
    %c0_i32_1 = arith.constant 0 : i32
    return %c0_i32, %c0_i32_0 : i32, i32
  }
  func.func @transform_5(%arg0: i32) -> (i32, i32) {
    %c0_i32 = arith.constant 0 : i32
    %c0_i32_0 = arith.constant 0 : i32
    return %c0_i32, %arg0 : i32, i32
  }
}

</mosaic_0001>

<llo_original>
// kernel: line_pool_forward.3
$region0: #{line_pool_forward.3}
  #allocation0 [shape = 'u32[]', space=smem, size = 0x4, offset = 0x4, fixed_abs, tag = 'smem constant byte address 0x4 - core index']
  #allocation1 [shape = 'u32[144,128]{1,0:T(1,128)}', space=vmem, size = 0x12000, scoped, tag = 'internal scratch']
  %s0 = inlined_call_operand.vmem [shape: f32[1,768], index: 0, kind: input, shape index: {}]
  %s1 = inlined_call_operand.vmem [shape: f32[8,768], index: 1, kind: input, shape index: {}]
  %s2 = inlined_call_operand.vmem [shape: f32[6,8,38], index: 2, kind: input, shape index: {}]
  %s3 = inlined_call_operand.vmem [shape: f32[128,72], index: 3, kind: input, shape index: {}]
  %s4 = inlined_call_operand.vmem [shape: f32[128,1], index: 4, kind: input, shape index: {}]
  %s5 = inlined_call_operand.vmem [shape: f32[128,768], index: 5, kind: output, shape index: {}]
  %s6 = sld [smem:[#allocation0]]
  $region87: #{line_pool_forward.3} parent=0
    _
  %s8 = ssub.s32 1, %s6
  %s9 = scalar_select 0, %s8, %s6
  $region1: #{line_pool_forward.3} parent=0
    #allocation2 [shape = 'u8[131072]{0}', space=vmem, size = 0x20000, scoped, tag = 'output window, operand 0']
    loop: start=0, step=1, limit=8
    $region2: #{line_pool_forward.3} parent=1 // loop_pre_header
      _
    $region3: #{line_pool_forward.3} parent=1 // loop_header
      %s11 = sphi 0, %s15
      %p12 = scmp.ge.s32.totalorder %s11, 8
      %s21 = sphi 0, %s23
      %s24 = sphi 0, %s21
      %s25 = sphi 0, %s24
      %s41 = sphi 0, %s25
      %s47 = sphi 0, %s49
      %s50 = sphi 0, %s47
      %s51 = sphi 0, %s50
      %s67 = sphi 0, %s51
      %s73 = sphi 0, %s75
      %s76 = sphi 0, %s73
      %s77 = sphi 0, %s76
      %s93 = sphi 0, %s77
      %s97 = sphi 0, %s97
      %s99 = sphi 0, %s97
      %s100 = sphi 0, %s99
      %s114 = sphi 0, %s100
      %s118 = sphi 0, %s118
      %s120 = sphi 0, %s118
      %s121 = sphi 0, %s120
      %s135 = sphi 0, %s121
      %s141 = sphi 0, %s143
      %s144 = sphi 0, %s141
      %s145 = sphi 0, %s144
      %s161 = sphi 0, %s145
    $region4: #{line_pool_forward.3} parent=1 // loop_header_branch
      %14 = sbr.rel (%p12) target = $region8
    $region5: #{line_pool_forward.3} parent=1 // loop_body
      %s16 = ssub.s32 %s11, 1
      %s17 = ssub.s32 %s11, 2
      %s18 = sadd.s32 %s11, 1
      %s19 = ssub.s32 %s11, %s18
      %p20 = scmp.eq.s32.totalorder %s19, 0
      %s22 = sadd.s32 %s21, 1
      %s23 = scalar_select %p20, %s21, %s22
      %p26 = pneg %p20
      %p27 = scmp.eq.s32.totalorder %s11, 5
      %p28 = por %p26, %p27
      %p29 = scmp.ne.s32.totalorder %s21, %s24
      %p30 = scmp.eq.s32.totalorder %s11, 0
      %p31 = por %p29, %p30
      %p32 = scmp.ne.s32.totalorder %s21, %s24
      %p33 = scmp.eq.s32.totalorder %s16, 5
      %p34 = por %p32, %p33
      %p35 = scmp.ne.s32.totalorder %s24, %s25
      %p36 = scmp.eq.s32.totalorder %s16, 0
      %p37 = por %p35, %p36
      %p38 = scmp.ne.s32.totalorder %s24, %s25
      %p39 = scmp.eq.s32.totalorder %s17, 5
      %p40 = por %p38, %p39
      %p42 = scmp.ne.s32.totalorder %s25, %s41
      %p43 = scmp.eq.s32.totalorder %s17, 0
      %p44 = por %p42, %p43
      %s45 = ssub.s32 %s11, %s18
      %p46 = scmp.eq.s32.totalorder %s45, 0
      %s48 = sadd.s32 %s47, 1
      %s49 = scalar_select %p46, %s47, %s48
      %p52 = pneg %p46
      %p53 = scmp.eq.s32.totalorder %s11, 5
      %p54 = por %p52, %p53
      %p55 = scmp.ne.s32.totalorder %s47, %s50
      %p56 = scmp.eq.s32.totalorder %s11, 0
      %p57 = por %p55, %p56
      %p58 = scmp.ne.s32.totalorder %s47, %s50
      %p59 = scmp.eq.s32.totalorder %s16, 5
      %p60 = por %p58, %p59
      %p61 = scmp.ne.s32.totalorder %s50, %s51
      %p62 = scmp.eq.s32.totalorder %s16, 0
      %p63 = por %p61, %p62
      %p64 = scmp.ne.s32.totalorder %s50, %s51
      %p65 = scmp.eq.s32.totalorder %s17, 5
      %p66 = por %p64, %p65
      %p68 = scmp.ne.s32.totalorder %s51, %s67
      %p69 = scmp.eq.s32.totalorder %s17, 0
      %p70 = por %p68, %p69
      %s71 = ssub.s32 %s11, %s18
      %p72 = scmp.eq.s32.totalorder %s71, 0
      %s74 = sadd.s32 %s73, 1
      %s75 = scalar_select %p72, %s73, %s74
      %p78 = pneg %p72
      %p79 = scmp.eq.s32.totalorder %s11, 5
      %p80 = por %p78, %p79
      %p81 = scmp.ne.s32.totalorder %s73, %s76
      %p82 = scmp.eq.s32.totalorder %s11, 0
      %p83 = por %p81, %p82
      %p84 = scmp.ne.s32.totalorder %s73, %s76
      %p85 = scmp.eq.s32.totalorder %s16, 5
      %p86 = por %p84, %p85
      %p87 = scmp.ne.s32.totalorder %s76, %s77
      %p88 = scmp.eq.s32.totalorder %s16, 0
      %p89 = por %p87, %p88
      %p90 = scmp.ne.s32.totalorder %s76, %s77
      %p91 = scmp.eq.s32.totalorder %s17, 5
      %p92 = por %p90, %p91
      %p94 = scmp.ne.s32.totalorder %s77, %s93
      %p95 = scmp.eq.s32.totalorder %s17, 0
      %p96 = por %p94, %p95
      %s98 = sadd.s32 %s97, 1
      %p101 = scmp.eq.s32.totalorder %s11, 5
      %p102 = scmp.ne.s32.totalorder %s97, %s99
      %p103 = scmp.eq.s32.totalorder %s11, 0
      %p104 = por %p102, %p103
      %p105 = scmp.ne.s32.totalorder %s97, %s99
      %p106 = scmp.eq.s32.totalorder %s16, 5
      %p107 = por %p105, %p106
      %p108 = scmp.ne.s32.totalorder %s99, %s100
      %p109 = scmp.eq.s32.totalorder %s16, 0
      %p110 = por %p108, %p109
      %p111 = scmp.ne.s32.totalorder %s99, %s100
      %p112 = scmp.eq.s32.totalorder %s17, 5
      %p113 = por %p111, %p112
      %p115 = scmp.ne.s32.totalorder %s100, %s114
      %p116 = scmp.eq.s32.totalorder %s17, 0
      %p117 = por %p115, %p116
      %s119 = sadd.s32 %s118, 1
      %p122 = scmp.eq.s32.totalorder %s11, 5
      %p123 = scmp.ne.s32.totalorder %s118, %s120
      %p124 = scmp.eq.s32.totalorder %s11, 0
      %p125 = por %p123, %p124
      %p126 = scmp.ne.s32.totalorder %s118, %s120
      %p127 = scmp.eq.s32.totalorder %s16, 5
      %p128 = por %p126, %p127
      %p129 = scmp.ne.s32.totalorder %s120, %s121
      %p130 = scmp.eq.s32.totalorder %s16, 0
      %p131 = por %p129, %p130
      %p132 = scmp.ne.s32.totalorder %s120, %s121
      %p133 = scmp.eq.s32.totalorder %s17, 5
      %p134 = por %p132, %p133
      %p136 = scmp.ne.s32.totalorder %s121, %s135
      %p137 = scmp.eq.s32.totalorder %s17, 0
      %p138 = por %p136, %p137
      %s139 = ssub.s32 %s11, %s18
      %p140 = scmp.eq.s32.totalorder %s139, 0
      %s142 = sadd.s32 %s141, 1
      %s143 = scalar_select %p140, %s141, %s142
      %p146 = pneg %p140
      %p147 = scmp.eq.s32.totalorder %s11, 5
      %p148 = por %p146, %p147
      %p149 = scmp.ne.s32.totalorder %s141, %s144
      %p150 = scmp.eq.s32.totalorder %s11, 0
      %p151 = por %p149, %p150
      %p152 = scmp.ne.s32.totalorder %s141, %s144
      %p153 = scmp.eq.s32.totalorder %s16, 5
      %p154 = por %p152, %p153
      %p155 = scmp.ne.s32.totalorder %s144, %s145
      %p156 = scmp.eq.s32.totalorder %s16, 0
      %p157 = por %p155, %p156
      %p158 = scmp.ne.s32.totalorder %s144, %s145
      %p159 = scmp.eq.s32.totalorder %s17, 5
      %p160 = por %p158, %p159
      %p162 = scmp.ne.s32.totalorder %s145, %s161
      %p163 = scmp.eq.s32.totalorder %s17, 0
      %p164 = por %p162, %p163
      %p165 = scmp.le.s32.totalorder 1, %s11
      %p166 = scmp.lt.s32.totalorder %s11, 7
      %p167 = pnand %p165, %p166
      %p168 = pneg %p167
      // Predicated region
      $region9: #{line_pool_forward.3} parent=5 // pred_check
        _
      $region10: #{line_pool_forward.3} parent=5 // pred_check_branch
        %170 = sbr.rel (%p167) target = $region12
      $region11: #{line_pool_forward.3} parent=5 // pred_region
        %s171 = ssub.s32 %s11, 1
        // Predicated region
        $region13: #{line_pool_forward.3} parent=11 // pred_check
          %p172 = pneg %p110
        $region14: #{line_pool_forward.3} parent=11 // pred_check_branch
          %174 = sbr.rel (%p172) target = $region16
        $region15: #{line_pool_forward.3} parent=11 // pred_region
          _
        $region16: #{line_pool_forward.3} parent=11 // pred_fallthru
          _
        // Predicated region
        $region17: #{line_pool_forward.3} parent=11 // pred_check
          %p175 = pneg %p131
        $region18: #{line_pool_forward.3} parent=11 // pred_check_branch
          %177 = sbr.rel (%p175) target = $region20
        $region19: #{line_pool_forward.3} parent=11 // pred_region
          _
        $region20: #{line_pool_forward.3} parent=11 // pred_fallthru
          _
      $region12: #{line_pool_forward.3} parent=5 // pred_fallthru
        _
      %p178 = scmp.lt.s32.totalorder %s11, 6
      // Predicated region
      $region21: #{line_pool_forward.3} parent=5 // pred_check
        %p179 = pneg %p178
      $region22: #{line_pool_forward.3} parent=5 // pred_check_branch
        %181 = sbr.rel (%p179) target = $region24
      $region23: #{line_pool_forward.3} parent=5 // pred_region
        // Predicated region
        $region25: #{line_pool_forward.3} parent=23 // pred_check
          %p182 = pneg %p31
        $region26: #{line_pool_forward.3} parent=23 // pred_check_branch
          %184 = sbr.rel (%p182) target = $region28
        $region27: #{line_pool_forward.3} parent=23 // pred_region
          %p185 = scmp.lt.s32.totalorder %s11, 5
          %s186 = scalar_select %p185, %s11, 5
          %s187 = scalar_lea.vmem %s0, %s186
        $region28: #{line_pool_forward.3} parent=23 // pred_fallthru
          _
        // Predicated region
        $region29: #{line_pool_forward.3} parent=23 // pred_check
          %p188 = pneg %p57
        $region30: #{line_pool_forward.3} parent=23 // pred_check_branch
          %190 = sbr.rel (%p188) target = $region32
        $region31: #{line_pool_forward.3} parent=23 // pred_region
          %p191 = scmp.lt.s32.totalorder %s11, 5
          %s192 = scalar_select %p191, %s11, 5
          %s193 = smul.addr %s192, 8
          %s194 = scalar_lea.vmem %s1, %s193
        $region32: #{line_pool_forward.3} parent=23 // pred_fallthru
          _
        // Predicated region
        $region33: #{line_pool_forward.3} parent=23 // pred_check
          %p195 = pneg %p83
        $region34: #{line_pool_forward.3} parent=23 // pred_check_branch
          %197 = sbr.rel (%p195) target = $region36
        $region35: #{line_pool_forward.3} parent=23 // pred_region
          %p198 = scmp.lt.s32.totalorder %s11, 5
          %s199 = scalar_select %p198, %s11, 5
          %s200 = smul.addr %s199, 8
          %s201 = scalar_lea.vmem %s2, %s200
        $region36: #{line_pool_forward.3} parent=23 // pred_fallthru
          _
      $region24: #{line_pool_forward.3} parent=5 // pred_fallthru
        _
      %p202 = scmp.le.s32.totalorder 1, %s11
      %p203 = scmp.lt.s32.totalorder %s11, 7
      %p204 = pnand %p202, %p203
      %p205 = pneg %p204
      // Predicated region
      $region37: #{line_pool_forward.3} parent=5 // pred_check
        _
      $region38: #{line_pool_forward.3} parent=5 // pred_check_branch
        %207 = sbr.rel (%p204) target = $region40
      $region39: #{line_pool_forward.3} parent=5 // pred_region
        %s208 = ssub.s32 %s11, 1
        %p209 = scmp.lt.s32.totalorder %s16, 5
        %s210 = scalar_select %p209, %s16, 5
        %s211 = scalar_lea.vmem %s0, %s210
        %p212 = pneg %p37
        %p213 = pneg %p34
        %p214 = scmp.lt.s32.totalorder %s16, 5
        %s215 = scalar_select %p214, %s16, 5
        %s216 = smul.addr %s215, 8
        %s217 = scalar_lea.vmem %s1, %s216
        %p218 = pneg %p63
        %p219 = pneg %p60
        %p220 = scmp.lt.s32.totalorder %s16, 5
        %s221 = scalar_select %p220, %s16, 5
        %s222 = smul.addr %s221, 8
        %s223 = scalar_lea.vmem %s2, %s222
        %p224 = pneg %p89
        %p225 = pneg %p86
        %p226 = pneg %p110
        %p227 = pneg %p107
        %p228 = pneg %p131
        %p229 = pneg %p128
        %p230 = pneg %p157
        %p231 = pneg %p154
        %s232 = sand.u32 %s144, 1
        %s233 = sand.u32 %s144, 1
        %s234 = smul.addr %s233, 128
        %s235 = scalar_lea.vmem [#allocation2], %s234
        %p236 = scmp.lt.s32.totalorder %s16, 5
        %s237 = scalar_select %p236, %s16, 5
        %s238 = scalar_lea.vmem %s0, %s237
        %p239 = scmp.lt.s32.totalorder %s16, 5
        %s240 = scalar_select %p239, %s16, 5
        %s241 = smul.addr %s240, 8
        %s242 = scalar_lea.vmem %s1, %s241
        %p243 = scmp.lt.s32.totalorder %s16, 5
        %s244 = scalar_select %p243, %s16, 5
        %s245 = smul.addr %s244, 8
        %s246 = scalar_lea.vmem %s2, %s245
        %v247 = vld [vmem:[%s242] sm:$0xff]
        %v248 = vld [vmem:[%s246] sm:$0xff]
        %251 = vrot.lane.b32.xlu0 %v247, 127
        %v252 = vpop.permute.xlu0 %251
        %253 = vrot.lane.b32.xlu0 %v248, 127
        %v254 = vpop.permute.xlu0 %253
        %vm255 = vcmask 1039360
        %v256 = vsel %vm255, %v252, %v254
        %258 = vrot.lane.b32.xlu0 %v247, 126
        %v259 = vpop.permute.xlu0 %258
        %260 = vrot.lane.b32.xlu0 %v248, 126
        %v261 = vpop.permute.xlu0 %260
        %vm262 = vcmask 1031168
        %v263 = vsel %vm262, %v259, %v261
        %265 = vrot.lane.b32.xlu0 %v247, 110
        %v266 = vpop.permute.xlu0 %265
        %267 = vrot.lane.b32.xlu0 %v248, 110
        %v268 = vpop.permute.xlu0 %267
        %vm269 = vcmask 900096
        %v270 = vsel %vm269, %v266, %v268
        %272 = vrot.lane.b32.xlu0 %v247, 109
        %v273 = vpop.permute.xlu0 %272
        %274 = vrot.lane.b32.xlu0 %v248, 109
        %v275 = vpop.permute.xlu0 %274
        %vm276 = vcmask 891904
        %v277 = vsel %vm276, %v273, %v275
        %279 = vrot.lane.b32.xlu0 %v247, 108
        %v280 = vpop.permute.xlu0 %279
        %281 = vrot.lane.b32.xlu0 %v248, 108
        %v282 = vpop.permute.xlu0 %281
        %vm283 = vcmask 883712
        %v284 = vsel %vm283, %v280, %v282
        %286 = vrot.lane.b32.xlu0 %v247, 92
        %v287 = vpop.permute.xlu0 %286
        %288 = vrot.lane.b32.xlu0 %v248, 92
        %v289 = vpop.permute.xlu0 %288
        %vm290 = vcmask 752640
        %v291 = vsel %vm290, %v287, %v289
        %293 = vrot.lane.b32.xlu0 %v247, 91
        %v294 = vpop.permute.xlu0 %293
        %295 = vrot.lane.b32.xlu0 %v248, 91
        %v296 = vpop.permute.xlu0 %295
        %vm297 = vcmask 744448
        %v298 = vsel %vm297, %v294, %v296
        %300 = vrot.lane.b32.xlu0 %v247, 90
        %v301 = vpop.permute.xlu0 %300
        %302 = vrot.lane.b32.xlu0 %v248, 90
        %v303 = vpop.permute.xlu0 %302
        %vm304 = vcmask 736256
        %v305 = vsel %vm304, %v301, %v303
        %v307 = vld [vmem:[%s3] sm:$0xff]
        %v308 = vld [vmem:[%s3 + $0x8] sm:$0xff]
        %v309 = vld [vmem:[%s3 + $0x10] sm:$0xff]
        %v310 = vld [vmem:[%s3 + $0x18] sm:$0xff]
        %v311 = vld [vmem:[%s3 + $0x20] sm:$0xff]
        %v312 = vld [vmem:[%s3 + $0x28] sm:$0xff]
        %v313 = vld [vmem:[%s3 + $0x30] sm:$0xff]
        %v314 = vld [vmem:[%s3 + $0x38] sm:$0xff]
        %v315 = vld [vmem:[%s3 + $0x40] sm:$0xff]
        %v316 = vld [vmem:[%s3 + $0x48] sm:$0xff]
        %v317 = vld [vmem:[%s3 + $0x50] sm:$0xff]
        %v318 = vld [vmem:[%s3 + $0x58] sm:$0xff]
        %v319 = vld [vmem:[%s3 + $0x60] sm:$0xff]
        %v320 = vld [vmem:[%s3 + $0x68] sm:$0xff]
        %v321 = vld [vmem:[%s3 + $0x70] sm:$0xff]
        %v322 = vld [vmem:[%s3 + $0x78] sm:$0xff]
        %v323 = vld [vmem:[%s4] sm:$0xff]
        %v324 = vld [vmem:[%s4 + $0x8] sm:$0xff]
        %v325 = vld [vmem:[%s4 + $0x10] sm:$0xff]
        %v326 = vld [vmem:[%s4 + $0x18] sm:$0xff]
        %v327 = vld [vmem:[%s4 + $0x20] sm:$0xff]
        %v328 = vld [vmem:[%s4 + $0x28] sm:$0xff]
        %v329 = vld [vmem:[%s4 + $0x30] sm:$0xff]
        %v330 = vld [vmem:[%s4 + $0x38] sm:$0xff]
        %v331 = vld [vmem:[%s4 + $0x40] sm:$0xff]
        %v332 = vld [vmem:[%s4 + $0x48] sm:$0xff]
        %v333 = vld [vmem:[%s4 + $0x50] sm:$0xff]
        %v334 = vld [vmem:[%s4 + $0x58] sm:$0xff]
        %v335 = vld [vmem:[%s4 + $0x60] sm:$0xff]
        %v336 = vld [vmem:[%s4 + $0x68] sm:$0xff]
        %v337 = vld [vmem:[%s4 + $0x70] sm:$0xff]
        %v338 = vld [vmem:[%s4 + $0x78] sm:$0xff]
        %340 = vset.pattern.permute.xlu0 0
        %341 = vperm.xlu0 %340, %v323
        %v342 = vpop.permute.xlu0 %341
        %345 = vset.pattern.permute.xlu0 0
        %346 = vperm.xlu0 %345, %v324
        %v347 = vpop.permute.xlu0 %346
        %350 = vset.pattern.permute.xlu0 0
        %351 = vperm.xlu0 %350, %v325
        %v352 = vpop.permute.xlu0 %351
        %355 = vset.pattern.permute.xlu0 0
        %356 = vperm.xlu0 %355, %v326
        %v357 = vpop.permute.xlu0 %356
        %360 = vset.pattern.permute.xlu0 0
        %361 = vperm.xlu0 %360, %v327
        %v362 = vpop.permute.xlu0 %361
        %365 = vset.pattern.permute.xlu0 0
        %366 = vperm.xlu0 %365, %v328
        %v367 = vpop.permute.xlu0 %366
        %370 = vset.pattern.permute.xlu0 0
        %371 = vperm.xlu0 %370, %v329
        %v372 = vpop.permute.xlu0 %371
        %375 = vset.pattern.permute.xlu0 0
        %376 = vperm.xlu0 %375, %v330
        %v377 = vpop.permute.xlu0 %376
        %380 = vset.pattern.permute.xlu0 0
        %381 = vperm.xlu0 %380, %v331
        %v382 = vpop.permute.xlu0 %381
        %385 = vset.pattern.permute.xlu0 0
        %386 = vperm.xlu0 %385, %v332
        %v387 = vpop.permute.xlu0 %386
        %390 = vset.pattern.permute.xlu0 0
        %391 = vperm.xlu0 %390, %v333
        %v392 = vpop.permute.xlu0 %391
        %395 = vset.pattern.permute.xlu0 0
        %396 = vperm.xlu0 %395, %v334
        %v397 = vpop.permute.xlu0 %396
        %400 = vset.pattern.permute.xlu0 0
        %401 = vperm.xlu0 %400, %v335
        %v402 = vpop.permute.xlu0 %401
        %405 = vset.pattern.permute.xlu0 0
        %406 = vperm.xlu0 %405, %v336
        %v407 = vpop.permute.xlu0 %406
        %410 = vset.pattern.permute.xlu0 0
        %411 = vperm.xlu0 %410, %v337
        %v412 = vpop.permute.xlu0 %411
        %415 = vset.pattern.permute.xlu0 0
        %416 = vperm.xlu0 %415, %v338
        %v417 = vpop.permute.xlu0 %416
        %vm419 = vcmask 588800
        %v421 = vsel %vm419, %v307, 0
        %v424 = vsel %vm419, %v308, 0
        %v427 = vsel %vm419, %v309, 0
        %v430 = vsel %vm419, %v310, 0
        %v433 = vsel %vm419, %v311, 0
        %v436 = vsel %vm419, %v312, 0
        %v439 = vsel %vm419, %v313, 0
        %v442 = vsel %vm419, %v314, 0
        %v445 = vsel %vm419, %v315, 0
        %v448 = vsel %vm419, %v316, 0
        %v451 = vsel %vm419, %v317, 0
        %v454 = vsel %vm419, %v318, 0
        %v457 = vsel %vm419, %v319, 0
        %v460 = vsel %vm419, %v320, 0
        %v463 = vsel %vm419, %v321, 0
        %v466 = vsel %vm419, %v322, 0
        %468 = vmatprep.subr.mxu0 0.0
        %469 = vmatpush1.msra.mxu0 %v247
        %470 = vmatprep.subr.mxu0 0.0
        %471 = vmatpush1.msra.mxu0 %v256
        %472 = vmatprep.subr.mxu0 0.0
        %473 = vmatpush1.msra.mxu0 %v263
        %474 = vmatprep.subr.mxu0 0.0
        %475 = vmatpush1.msra.mxu0 %v270
        %476 = vmatprep.subr.mxu0 0.0
        %477 = vmatpush1.msra.mxu0 %v277
        %478 = vmatprep.subr.mxu0 0.0
        %479 = vmatpush1.msra.mxu0 %v284
        %480 = vmatprep.subr.mxu0 0.0
        %481 = vmatpush1.msra.mxu0 %v291
        %482 = vmatprep.subr.mxu0 0.0
        %483 = vmatpush1.msra.mxu0 %v298
        %484 = vmatprep.subr.mxu0 0.0
        %485 = vmatpush1.msra.mxu0 %v305
        %486 = vmatprep.subr.mxu0 0.0
        %487 = vmatpush1.msra.mxu0 0.0
        %488 = vmatprep.subr.mxu0 0.0
        %489 = vmatpush1.msra.mxu0 0.0
        %490 = vmatprep.subr.mxu0 0.0
        %491 = vmatpush1.msra.mxu0 0.0
        %492 = vmatprep.subr.mxu0 0.0
        %493 = vmatpush1.msra.mxu0 0.0
        %494 = vmatprep.subr.mxu0 0.0
        %495 = vmatpush1.msra.mxu0 0.0
        %496 = vmatprep.subr.mxu0 0.0
        %497 = vmatpush1.msra.mxu0 0.0
        %498 = vmatprep.subr.mxu0 0.0
        %499 = vmatpush1.msra.mxu0 0.0
        %500 = vmatprep.subr.mxu0 0.0
        %501 = vmatpush1.msra.mxu0 0.0
        %502 = vmatprep.subr.mxu0 0.0
        %503 = vmatpush1.msra.mxu0 0.0
        %504 = vmatprep.subr.mxu0 0.0
        %505 = vmatpush1.msra.mxu0 0.0
        %506 = vmatprep.subr.mxu0 0.0
        %507 = vmatpush1.msra.mxu0 0.0
        %508 = vmatprep.subr.mxu0 0.0
        %509 = vmatpush1.msra.mxu0 0.0
        %510 = vmatprep.subr.mxu0 0.0
        %511 = vmatpush1.msra.mxu0 0.0
        %512 = vmatprep.subr.mxu0 0.0
        %513 = vmatpush1.msra.mxu0 0.0
        %514 = vmatprep.subr.mxu0 0.0
        %515 = vmatpush1.msra.mxu0 0.0
        %516 = vmatprep.subr.mxu0 0.0
        %517 = vmatpush1.msra.mxu0 0.0
        %518 = vmatprep.subr.mxu0 0.0
        %519 = vmatpush1.msra.mxu0 0.0
        %520 = vmatprep.subr.mxu0 0.0
        %521 = vmatpush1.msra.mxu0 0.0
        %522 = vmatprep.subr.mxu0 0.0
        %523 = vmatpush1.msra.mxu0 0.0
        %524 = vmatprep.subr.mxu0 0.0
        %525 = vmatpush1.msra.mxu0 0.0
        %526 = vmatprep.subr.mxu0 0.0
        %527 = vmatpush1.msra.mxu0 0.0
        %528 = vmatprep.subr.mxu0 0.0
        %529 = vmatpush1.msra.mxu0 0.0
        %530 = vmatprep.subr.mxu0 0.0
        %531 = vmatpush1.msra.mxu0 0.0
        %532 = vmatprep.mubr.f32.mxu0 0.0
        %533 = vmatmul.mubr.f32.gmra.mrb[0].mxu0 %v421
        %v534 = vpop.f32.mrb[0].mxu0
        %v535 = vadd.f32 %v342, %v534
        %v536 = vpop.f32.mrb[0].mxu0
        %537 = vmatprep.mubr.f32.mxu0 0.0
        %538 = vmatmul.mubr.f32.gmra.mrb[0].mxu0 %v424
        %v539 = vpop.f32.mrb[0].mxu0
        %v540 = vadd.f32 %v347, %v539
        %v541 = vpop.f32.mrb[0].mxu0
        %542 = vmatprep.mubr.f32.mxu0 0.0
        %543 = vmatmul.mubr.f32.gmra.mrb[0].mxu0 %v427
        %v544 = vpop.f32.mrb[0].mxu0
        %v545 = vadd.f32 %v352, %v544
        %v546 = vpop.f32.mrb[0].mxu0
        %547 = vmatprep.mubr.f32.mxu0 0.0
        %548 = vmatmul.mubr.f32.gmra.mrb[0].mxu0 %v430
        %v549 = vpop.f32.mrb[0].mxu0
        %v550 = vadd.f32 %v357, %v549
        %v551 = vpop.f32.mrb[0].mxu0
        %552 = vmatprep.mubr.f32.mxu0 0.0
        %553 = vmatmul.mubr.f32.gmra.mrb[0].mxu0 %v433
        %v554 = vpop.f32.mrb[0].mxu0
        %v555 = vadd.f32 %v362, %v554
        %v556 = vpop.f32.mrb[0].mxu0
        %557 = vmatprep.mubr.f32.mxu0 0.0
        %558 = vmatmul.mubr.f32.gmra.mrb[0].mxu0 %v436
        %v559 = vpop.f32.mrb[0].mxu0
        %v560 = vadd.f32 %v367, %v559
        %v561 = vpop.f32.mrb[0].mxu0
        %562 = vmatprep.mubr.f32.mxu0 0.0
        %563 = vmatmul.mubr.f32.gmra.mrb[0].mxu0 %v439
        %v564 = vpop.f32.mrb[0].mxu0
        %v565 = vadd.f32 %v372, %v564
        %v566 = vpop.f32.mrb[0].mxu0
        %567 = vmatprep.mubr.f32.mxu0 0.0
        %568 = vmatmul.mubr.f32.gmra.mrb[0].mxu0 %v442
        %v569 = vpop.f32.mrb[0].mxu0
        %v570 = vadd.f32 %v377, %v569
        %v571 = vpop.f32.mrb[0].mxu0
        %572 = vmatprep.mubr.f32.mxu0 0.0
        %573 = vmatmul.mubr.f32.gmra.mrb[0].mxu0 %v445
        %v574 = vpop.f32.mrb[0].mxu0
        %v575 = vadd.f32 %v382, %v574
        %v576 = vpop.f32.mrb[0].mxu0
        %577 = vmatprep.mubr.f32.mxu0 0.0
        %578 = vmatmul.mubr.f32.gmra.mrb[0].mxu0 %v448
        %v579 = vpop.f32.mrb[0].mxu0
        %v580 = vadd.f32 %v387, %v579
        %v581 = vpop.f32.mrb[0].mxu0
        %582 = vmatprep.mubr.f32.mxu0 0.0
        %583 = vmatmul.mubr.f32.gmra.mrb[0].mxu0 %v451
        %v584 = vpop.f32.mrb[0].mxu0
        %v585 = vadd.f32 %v392, %v584
        %v586 = vpop.f32.mrb[0].mxu0
        %587 = vmatprep.mubr.f32.mxu0 0.0
        %588 = vmatmul.mubr.f32.gmra.mrb[0].mxu0 %v454
        %v589 = vpop.f32.mrb[0].mxu0
        %v590 = vadd.f32 %v397, %v589
        %v591 = vpop.f32.mrb[0].mxu0
        %592 = vmatprep.mubr.f32.mxu0 0.0
        %593 = vmatmul.mubr.f32.gmra.mrb[0].mxu0 %v457
        %v594 = vpop.f32.mrb[0].mxu0
        %v595 = vadd.f32 %v402, %v594
        %v596 = vpop.f32.mrb[0].mxu0
        %597 = vmatprep.mubr.f32.mxu0 0.0
        %598 = vmatmul.mubr.f32.gmra.mrb[0].mxu0 %v460
        %v599 = vpop.f32.mrb[0].mxu0
        %v600 = vadd.f32 %v407, %v599
        %v601 = vpop.f32.mrb[0].mxu0
        %602 = vmatprep.mubr.f32.mxu0 0.0
        %603 = vmatmul.mubr.f32.gmra.mrb[0].mxu0 %v463
        %v604 = vpop.f32.mrb[0].mxu0
        %v605 = vadd.f32 %v412, %v604
        %v606 = vpop.f32.mrb[0].mxu0
        %607 = vmatprep.mubr.f32.mxu0 0.0
        %608 = vmatmul.mubr.f32.gmra.mrb[0].mxu0 %v466
        %v609 = vpop.f32.mrb[0].mxu0
        %v610 = vadd.f32 %v417, %v609
        %v611 = vpop.f32.mrb[0].mxu0
        %612 = vdwg.mxu0
        %v613 = vmax.f32 %v535, 0.0
        %v614 = vmax.f32 %v540, 0.0
        %v615 = vmax.f32 %v545, 0.0
        %v616 = vmax.f32 %v550, 0.0
        %v617 = vmax.f32 %v555, 0.0
        %v618 = vmax.f32 %v560, 0.0
        %v619 = vmax.f32 %v565, 0.0
        %v620 = vmax.f32 %v570, 0.0
        %v621 = vmax.f32 %v575, 0.0
        %v622 = vmax.f32 %v580, 0.0
        %v623 = vmax.f32 %v585, 0.0
        %v624 = vmax.f32 %v590, 0.0
        %v625 = vmax.f32 %v595, 0.0
        %v626 = vmax.f32 %v600, 0.0
        %v627 = vmax.f32 %v605, 0.0
        %v628 = vmax.f32 %v610, 0.0
        %v629 = vld [vmem:[%s238] sm:$0x1]
        %v631 = vlaneseq
        %v632 = vshrl.u32 %v631, 7
        %v633 = vsub.s32 0, %v632
        %v634 = vrot.slane %v629, %v633
        %v636 = vmul.f32 %v613, %v634
        %v637 = vmul.f32 %v614, %v634
        %v638 = vmul.f32 %v615, %v634
        %v639 = vmul.f32 %v616, %v634
        %v640 = vmul.f32 %v617, %v634
        %v641 = vmul.f32 %v618, %v634
        %v642 = vmul.f32 %v619, %v634
        %v643 = vmul.f32 %v620, %v634
        %v644 = vmul.f32 %v621, %v634
        %v645 = vmul.f32 %v622, %v634
        %v646 = vmul.f32 %v623, %v634
        %v647 = vmul.f32 %v624, %v634
        %v648 = vmul.f32 %v625, %v634
        %v649 = vmul.f32 %v626, %v634
        %v650 = vmul.f32 %v627, %v634
        %v651 = vmul.f32 %v628, %v634
        %652 = vst [vmem:[%s235] sm:$0xff] %v636
        %653 = vst [vmem:[%s235 + $0x8] sm:$0xff] %v637
        %654 = vst [vmem:[%s235 + $0x10] sm:$0xff] %v638
        %655 = vst [vmem:[%s235 + $0x18] sm:$0xff] %v639
        %656 = vst [vmem:[%s235 + $0x20] sm:$0xff] %v640
        %657 = vst [vmem:[%s235 + $0x28] sm:$0xff] %v641
        %658 = vst [vmem:[%s235 + $0x30] sm:$0xff] %v642
        %659 = vst [vmem:[%s235 + $0x38] sm:$0xff] %v643
        %660 = vst [vmem:[%s235 + $0x40] sm:$0xff] %v644
        %661 = vst [vmem:[%s235 + $0x48] sm:$0xff] %v645
        %662 = vst [vmem:[%s235 + $0x50] sm:$0xff] %v646
        %663 = vst [vmem:[%s235 + $0x58] sm:$0xff] %v647
        %664 = vst [vmem:[%s235 + $0x60] sm:$0xff] %v648
        %665 = vst [vmem:[%s235 + $0x68] sm:$0xff] %v649
        %666 = vst [vmem:[%s235 + $0x70] sm:$0xff] %v650
        %667 = vst [vmem:[%s235 + $0x78] sm:$0xff] %v651
        %s668 = sand.u32 %s144, 1
        %s669 = sand.u32 %s144, 1
        %s670 = smul.addr %s669, 128
        %s671 = scalar_lea.vmem [#allocation2], %s670
        // Predicated region
        $region41: #{line_pool_forward.3} parent=39 // pred_check
          %p672 = pneg %p154
        $region42: #{line_pool_forward.3} parent=39 // pred_check_branch
          %674 = sbr.rel (%p672) target = $region44
        $region43: #{line_pool_forward.3} parent=39 // pred_region
          %s675 = smul.addr %s16, 8
          %s676 = scalar_lea.vmem %s5, %s675
          // Predicated region
          $region45: #{line_pool_forward.3} parent=43 // pred_check
            _
          $region46: #{line_pool_forward.3} parent=43 // pred_check_branch
            %678 = sbr.rel (0) target = $region48
          $region47: #{line_pool_forward.3} parent=43 // pred_region
            // Predicated region
            $region49: #{line_pool_forward.3} parent=47 // pred_check
              _
            $region50: #{line_pool_forward.3} parent=47 // pred_check_branch
              %680 = sbr.rel (0) target = $region52
            $region51: #{line_pool_forward.3} parent=47 // pred_region
              // Predicated region
              $region64: #{line_pool_forward.3} parent=51 // pred_check
                _
              $region65: #{line_pool_forward.3} parent=51 // pred_check_branch
                %725 = sbr.rel (0) target = $region67
              $region66: #{line_pool_forward.3} parent=51 // pred_region
                loop: start=0, step=1, limit=1
                $region68: #{line_pool_forward.3} parent=66 // loop_pre_header
                  _
                $region69: #{line_pool_forward.3} parent=66 // loop_header
                  %s727 = sphi 0, %s731
                  %p728 = scmp.ge.s32.totalorder %s727, 1
                  %s732 = sphi %s671, %s671
                  %s733 = sphi %s676, %s676
                $region70: #{line_pool_forward.3} parent=66 // loop_header_branch
                  %730 = sbr.rel (%p728) target = $region74
                $region71: #{line_pool_forward.3} parent=66 // loop_body
                  %v734 = vld [vmem:[%s732] sm:$0xff]
                  %735 = vst [vmem:[%s733] sm:$0xff] %v734
                  %v736 = vld [vmem:[%s732 + $0x8] sm:$0xff]
                  %737 = vst [vmem:[%s733 + $0x30] sm:$0xff] %v736
                  %v738 = vld [vmem:[%s732 + $0x10] sm:$0xff]
                  %739 = vst [vmem:[%s733 + $0x60] sm:$0xff] %v738
                  %v740 = vld [vmem:[%s732 + $0x18] sm:$0xff]
                  %741 = vst [vmem:[%s733 + $0x90] sm:$0xff] %v740
                  %v742 = vld [vmem:[%s732 + $0x20] sm:$0xff]
                  %743 = vst [vmem:[%s733 + $0xc0] sm:$0xff] %v742
                  %v744 = vld [vmem:[%s732 + $0x28] sm:$0xff]
                  %745 = vst [vmem:[%s733 + $0xf0] sm:$0xff] %v744
                  %v746 = vld [vmem:[%s732 + $0x30] sm:$0xff]
                  %747 = vst [vmem:[%s733 + $0x120] sm:$0xff] %v746
                  %v748 = vld [vmem:[%s732 + $0x38] sm:$0xff]
                  %749 = vst [vmem:[%s733 + $0x150] sm:$0xff] %v748
                  %v750 = vld [vmem:[%s732 + $0x40] sm:$0xff]
                  %751 = vst [vmem:[%s733 + $0x180] sm:$0xff] %v750
                  %v752 = vld [vmem:[%s732 + $0x48] sm:$0xff]
                  %753 = vst [vmem:[%s733 + $0x1b0] sm:$0xff] %v752
                  %v754 = vld [vmem:[%s732 + $0x50] sm:$0xff]
                  %755 = vst [vmem:[%s733 + $0x1e0] sm:$0xff] %v754
                  %v756 = vld [vmem:[%s732 + $0x58] sm:$0xff]
                  %757 = vst [vmem:[%s733 + $0x210] sm:$0xff] %v756
                  %v758 = vld [vmem:[%s732 + $0x60] sm:$0xff]
                  %759 = vst [vmem:[%s733 + $0x240] sm:$0xff] %v758
                  %v760 = vld [vmem:[%s732 + $0x68] sm:$0xff]
                  %761 = vst [vmem:[%s733 + $0x270] sm:$0xff] %v760
                  %v762 = vld [vmem:[%s732 + $0x70] sm:$0xff]
                  %763 = vst [vmem:[%s733 + $0x2a0] sm:$0xff] %v762
                  %v764 = vld [vmem:[%s732 + $0x78] sm:$0xff]
                  %765 = vst [vmem:[%s733 + $0x2d0] sm:$0xff] %v764
                $region72: #{line_pool_forward.3} parent=66 // loop_footer
                  %s731 = sadd.s32 1, %s727
                $region73: #{line_pool_forward.3} parent=66 // loop_footer_branch
                  %726 = sbr.rel target = $region69
                $region74: #{line_pool_forward.3} parent=66 // loop_exit
                  _
              $region67: #{line_pool_forward.3} parent=51 // pred_fallthru
                _
              // Predicated region
              $region75: #{line_pool_forward.3} parent=51 // pred_check
                _
              $region76: #{line_pool_forward.3} parent=51 // pred_check_branch
                %767 = sbr.rel target = $region78
              $region77: #{line_pool_forward.3} parent=51 // pred_region
                _
              $region78: #{line_pool_forward.3} parent=51 // pred_fallthru
                _
            $region52: #{line_pool_forward.3} parent=47 // pred_fallthru
              _
            // Predicated region
            $region53: #{line_pool_forward.3} parent=47 // pred_check
              _
            $region54: #{line_pool_forward.3} parent=47 // pred_check_branch
              %682 = sbr.rel target = $region56
            $region55: #{line_pool_forward.3} parent=47 // pred_region
              loop: start=0, step=1, limit=1
              $region57: #{line_pool_forward.3} parent=55 // loop_pre_header
                _
              $region58: #{line_pool_forward.3} parent=55 // loop_header
                %s685 = sphi 0, %s689
                %p686 = scmp.ge.s32.totalorder %s685, 1
                %s690 = sphi %s671, %s671
                %s691 = sphi %s676, %s676
              $region59: #{line_pool_forward.3} parent=55 // loop_header_branch
                %688 = sbr.rel (%p686) target = $region63
              $region60: #{line_pool_forward.3} parent=55 // loop_body
                %v692 = vld [vmem:[%s690] sm:$0xff]
                %693 = vst [vmem:[%s691] sm:$0xff] %v692
                %v694 = vld [vmem:[%s690 + $0x8] sm:$0xff]
                %695 = vst [vmem:[%s691 + $0x30] sm:$0xff] %v694
                %v696 = vld [vmem:[%s690 + $0x10] sm:$0xff]
                %697 = vst [vmem:[%s691 + $0x60] sm:$0xff] %v696
                %v698 = vld [vmem:[%s690 + $0x18] sm:$0xff]
                %699 = vst [vmem:[%s691 + $0x90] sm:$0xff] %v698
                %v700 = vld [vmem:[%s690 + $0x20] sm:$0xff]
                %701 = vst [vmem:[%s691 + $0xc0] sm:$0xff] %v700
                %v702 = vld [vmem:[%s690 + $0x28] sm:$0xff]
                %703 = vst [vmem:[%s691 + $0xf0] sm:$0xff] %v702
                %v704 = vld [vmem:[%s690 + $0x30] sm:$0xff]
                %705 = vst [vmem:[%s691 + $0x120] sm:$0xff] %v704
                %v706 = vld [vmem:[%s690 + $0x38] sm:$0xff]
                %707 = vst [vmem:[%s691 + $0x150] sm:$0xff] %v706
                %v708 = vld [vmem:[%s690 + $0x40] sm:$0xff]
                %709 = vst [vmem:[%s691 + $0x180] sm:$0xff] %v708
                %v710 = vld [vmem:[%s690 + $0x48] sm:$0xff]
                %711 = vst [vmem:[%s691 + $0x1b0] sm:$0xff] %v710
                %v712 = vld [vmem:[%s690 + $0x50] sm:$0xff]
                %713 = vst [vmem:[%s691 + $0x1e0] sm:$0xff] %v712
                %v714 = vld [vmem:[%s690 + $0x58] sm:$0xff]
                %715 = vst [vmem:[%s691 + $0x210] sm:$0xff] %v714
                %v716 = vld [vmem:[%s690 + $0x60] sm:$0xff]
                %717 = vst [vmem:[%s691 + $0x240] sm:$0xff] %v716
                %v718 = vld [vmem:[%s690 + $0x68] sm:$0xff]
                %719 = vst [vmem:[%s691 + $0x270] sm:$0xff] %v718
                %v720 = vld [vmem:[%s690 + $0x70] sm:$0xff]
                %721 = vst [vmem:[%s691 + $0x2a0] sm:$0xff] %v720
                %v722 = vld [vmem:[%s690 + $0x78] sm:$0xff]
                %723 = vst [vmem:[%s691 + $0x2d0] sm:$0xff] %v722
              $region61: #{line_pool_forward.3} parent=55 // loop_footer
                %s689 = sadd.s32 1, %s685
              $region62: #{line_pool_forward.3} parent=55 // loop_footer_branch
                %684 = sbr.rel target = $region58
              $region63: #{line_pool_forward.3} parent=55 // loop_exit
                _
            $region56: #{line_pool_forward.3} parent=47 // pred_fallthru
              _
          $region48: #{line_pool_forward.3} parent=43 // pred_fallthru
            _
          %768 = vnop
        $region44: #{line_pool_forward.3} parent=39 // pred_fallthru
          _
      $region40: #{line_pool_forward.3} parent=5 // pred_fallthru
        _
      %p769 = scmp.le.s32.totalorder 2, %s11
      // Predicated region
      $region79: #{line_pool_forward.3} parent=5 // pred_check
        %p770 = pneg %p769
      $region80: #{line_pool_forward.3} parent=5 // pred_check_branch
        %772 = sbr.rel (%p770) target = $region82
      $region81: #{line_pool_forward.3} parent=5 // pred_region
        %s773 = ssub.s32 %s11, 2
        // Predicated region
        $region83: #{line_pool_forward.3} parent=81 // pred_check
          %p774 = pneg %p160
        $region84: #{line_pool_forward.3} parent=81 // pred_check_branch
          %776 = sbr.rel (%p774) target = $region86
        $region85: #{line_pool_forward.3} parent=81 // pred_region
          %s777 = sand.u32 %s145, 1
          %s778 = sand.u32 %s145, 1
          %s779 = smul.addr %s778, 128
          %s780 = scalar_lea.vmem [#allocation2], %s779
        $region86: #{line_pool_forward.3} parent=81 // pred_fallthru
          _
      $region82: #{line_pool_forward.3} parent=5 // pred_fallthru
        _
    $region6: #{line_pool_forward.3} parent=1 // loop_footer
      %s15 = sadd.s32 1, %s11
    $region7: #{line_pool_forward.3} parent=1 // loop_footer_branch
      %10 = sbr.rel target = $region3
    $region8: #{line_pool_forward.3} parent=1 // loop_exit
      _

// kernel: line_pool_forward.4
$region0: #{line_pool_forward.4}
  #allocation0 [shape = 'u32[]', space=smem, size = 0x4, offset = 0x4, fixed_abs, tag = 'smem constant byte address 0x4 - core index']
  #allocation1 [shape = 'u32[144,128]{1,0:T(1,128)}', space=vmem, size = 0x12000, scoped, tag = 'internal scratch']
  %s0 = inlined_call_operand.vmem [shape: f32[1,768], index: 0, kind: input, shape index: {}]
  %s1 = inlined_call_operand.vmem [shape: f32[128,768], index: 1, kind: input, shape index: {}]
  %s2 = inlined_call_operand.vmem [shape: f32[6,128,38], index: 2, kind: input, shape index: {}]
  %s3 = inlined_call_operand.vmem [shape: f32[8,768], index: 3, kind: input, shape index: {}]
  %s4 = inlined_call_operand.vmem [shape: f32[8,1160], index: 4, kind: input, shape index: {}]
  %s5 = inlined_call_operand.vmem [shape: f32[8,1], index: 5, kind: input, shape index: {}]
  %s6 = inlined_call_operand.vmem [shape: f32[8,768], index: 6, kind: output, shape index: {}]
  %s7 = sld [smem:[#allocation0]]
  $region95: #{line_pool_forward.4} parent=0
    _
  %s9 = ssub.s32 1, %s7
  %s10 = scalar_select 0, %s9, %s7
  $region1: #{line_pool_forward.4} parent=0
    #allocation2 [shape = 'u8[131072]{0}', space=vmem, size = 0x20000, scoped, tag = 'input window, operand 1']
    loop: start=0, step=1, limit=8
    $region2: #{line_pool_forward.4} parent=1 // loop_pre_header
      _
    $region3: #{line_pool_forward.4} parent=1 // loop_header
      %s12 = sphi 0, %s16
      %p13 = scmp.ge.s32.totalorder %s12, 8
      %s22 = sphi 0, %s24
      %s25 = sphi 0, %s22
      %s26 = sphi 0, %s25
      %s42 = sphi 0, %s26
      %s48 = sphi 0, %s50
      %s51 = sphi 0, %s48
      %s52 = sphi 0, %s51
      %s68 = sphi 0, %s52
      %s74 = sphi 0, %s76
      %s77 = sphi 0, %s74
      %s78 = sphi 0, %s77
      %s94 = sphi 0, %s78
      %s100 = sphi 0, %s102
      %s103 = sphi 0, %s100
      %s104 = sphi 0, %s103
      %s120 = sphi 0, %s104
      %s124 = sphi 0, %s124
      %s126 = sphi 0, %s124
      %s127 = sphi 0, %s126
      %s141 = sphi 0, %s127
      %s145 = sphi 0, %s145
      %s147 = sphi 0, %s145
      %s148 = sphi 0, %s147
      %s162 = sphi 0, %s148
      %s168 = sphi 0, %s170
      %s171 = sphi 0, %s168
      %s172 = sphi 0, %s171
      %s188 = sphi 0, %s172
    $region4: #{line_pool_forward.4} parent=1 // loop_header_branch
      %15 = sbr.rel (%p13) target = $region8
    $region5: #{line_pool_forward.4} parent=1 // loop_body
      %s17 = ssub.s32 %s12, 1
      %s18 = ssub.s32 %s12, 2
      %s19 = sadd.s32 %s12, 1
      %s20 = ssub.s32 %s12, %s19
      %p21 = scmp.eq.s32.totalorder %s20, 0
      %s23 = sadd.s32 %s22, 1
      %s24 = scalar_select %p21, %s22, %s23
      %p27 = pneg %p21
      %p28 = scmp.eq.s32.totalorder %s12, 5
      %p29 = por %p27, %p28
      %p30 = scmp.ne.s32.totalorder %s22, %s25
      %p31 = scmp.eq.s32.totalorder %s12, 0
      %p32 = por %p30, %p31
      %p33 = scmp.ne.s32.totalorder %s22, %s25
      %p34 = scmp.eq.s32.totalorder %s17, 5
      %p35 = por %p33, %p34
      %p36 = scmp.ne.s32.totalorder %s25, %s26
      %p37 = scmp.eq.s32.totalorder %s17, 0
      %p38 = por %p36, %p37
      %p39 = scmp.ne.s32.totalorder %s25, %s26
      %p40 = scmp.eq.s32.totalorder %s18, 5
      %p41 = por %p39, %p40
      %p43 = scmp.ne.s32.totalorder %s26, %s42
      %p44 = scmp.eq.s32.totalorder %s18, 0
      %p45 = por %p43, %p44
      %s46 = ssub.s32 %s12, %s19
      %p47 = scmp.eq.s32.totalorder %s46, 0
      %s49 = sadd.s32 %s48, 1
      %s50 = scalar_select %p47, %s48, %s49
      %p53 = pneg %p47
      %p54 = scmp.eq.s32.totalorder %s12, 5
      %p55 = por %p53, %p54
      %p56 = scmp.ne.s32.totalorder %s48, %s51
      %p57 = scmp.eq.s32.totalorder %s12, 0
      %p58 = por %p56, %p57
      %p59 = scmp.ne.s32.totalorder %s48, %s51
      %p60 = scmp.eq.s32.totalorder %s17, 5
      %p61 = por %p59, %p60
      %p62 = scmp.ne.s32.totalorder %s51, %s52
      %p63 = scmp.eq.s32.totalorder %s17, 0
      %p64 = por %p62, %p63
      %p65 = scmp.ne.s32.totalorder %s51, %s52
      %p66 = scmp.eq.s32.totalorder %s18, 5
      %p67 = por %p65, %p66
      %p69 = scmp.ne.s32.totalorder %s52, %s68
      %p70 = scmp.eq.s32.totalorder %s18, 0
      %p71 = por %p69, %p70
      %s72 = ssub.s32 %s12, %s19
      %p73 = scmp.eq.s32.totalorder %s72, 0
      %s75 = sadd.s32 %s74, 1
      %s76 = scalar_select %p73, %s74, %s75
      %p79 = pneg %p73
      %p80 = scmp.eq.s32.totalorder %s12, 5
      %p81 = por %p79, %p80
      %p82 = scmp.ne.s32.totalorder %s74, %s77
      %p83 = scmp.eq.s32.totalorder %s12, 0
      %p84 = por %p82, %p83
      %p85 = scmp.ne.s32.totalorder %s74, %s77
      %p86 = scmp.eq.s32.totalorder %s17, 5
      %p87 = por %p85, %p86
      %p88 = scmp.ne.s32.totalorder %s77, %s78
      %p89 = scmp.eq.s32.totalorder %s17, 0
      %p90 = por %p88, %p89
      %p91 = scmp.ne.s32.totalorder %s77, %s78
      %p92 = scmp.eq.s32.totalorder %s18, 5
      %p93 = por %p91, %p92
      %p95 = scmp.ne.s32.totalorder %s78, %s94
      %p96 = scmp.eq.s32.totalorder %s18, 0
      %p97 = por %p95, %p96
      %s98 = ssub.s32 %s12, %s19
      %p99 = scmp.eq.s32.totalorder %s98, 0
      %s101 = sadd.s32 %s100, 1
      %s102 = scalar_select %p99, %s100, %s101
      %p105 = pneg %p99
      %p106 = scmp.eq.s32.totalorder %s12, 5
      %p107 = por %p105, %p106
      %p108 = scmp.ne.s32.totalorder %s100, %s103
      %p109 = scmp.eq.s32.totalorder %s12, 0
      %p110 = por %p108, %p109
      %p111 = scmp.ne.s32.totalorder %s100, %s103
      %p112 = scmp.eq.s32.totalorder %s17, 5
      %p113 = por %p111, %p112
      %p114 = scmp.ne.s32.totalorder %s103, %s104
      %p115 = scmp.eq.s32.totalorder %s17, 0
      %p116 = por %p114, %p115
      %p117 = scmp.ne.s32.totalorder %s103, %s104
      %p118 = scmp.eq.s32.totalorder %s18, 5
      %p119 = por %p117, %p118
      %p121 = scmp.ne.s32.totalorder %s104, %s120
      %p122 = scmp.eq.s32.totalorder %s18, 0
      %p123 = por %p121, %p122
      %s125 = sadd.s32 %s124, 1
      %p128 = scmp.eq.s32.totalorder %s12, 5
      %p129 = scmp.ne.s32.totalorder %s124, %s126
      %p130 = scmp.eq.s32.totalorder %s12, 0
      %p131 = por %p129, %p130
      %p132 = scmp.ne.s32.totalorder %s124, %s126
      %p133 = scmp.eq.s32.totalorder %s17, 5
      %p134 = por %p132, %p133
      %p135 = scmp.ne.s32.totalorder %s126, %s127
      %p136 = scmp.eq.s32.totalorder %s17, 0
      %p137 = por %p135, %p136
      %p138 = scmp.ne.s32.totalorder %s126, %s127
      %p139 = scmp.eq.s32.totalorder %s18, 5
      %p140 = por %p138, %p139
      %p142 = scmp.ne.s32.totalorder %s127, %s141
      %p143 = scmp.eq.s32.totalorder %s18, 0
      %p144 = por %p142, %p143
      %s146 = sadd.s32 %s145, 1
      %p149 = scmp.eq.s32.totalorder %s12, 5
      %p150 = scmp.ne.s32.totalorder %s145, %s147
      %p151 = scmp.eq.s32.totalorder %s12, 0
      %p152 = por %p150, %p151
      %p153 = scmp.ne.s32.totalorder %s145, %s147
      %p154 = scmp.eq.s32.totalorder %s17, 5
      %p155 = por %p153, %p154
      %p156 = scmp.ne.s32.totalorder %s147, %s148
      %p157 = scmp.eq.s32.totalorder %s17, 0
      %p158 = por %p156, %p157
      %p159 = scmp.ne.s32.totalorder %s147, %s148
      %p160 = scmp.eq.s32.totalorder %s18, 5
      %p161 = por %p159, %p160
      %p163 = scmp.ne.s32.totalorder %s148, %s162
      %p164 = scmp.eq.s32.totalorder %s18, 0
      %p165 = por %p163, %p164
      %s166 = ssub.s32 %s12, %s19
      %p167 = scmp.eq.s32.totalorder %s166, 0
      %s169 = sadd.s32 %s168, 1
      %s170 = scalar_select %p167, %s168, %s169
      %p173 = pneg %p167
      %p174 = scmp.eq.s32.totalorder %s12, 5
      %p175 = por %p173, %p174
      %p176 = scmp.ne.s32.totalorder %s168, %s171
      %p177 = scmp.eq.s32.totalorder %s12, 0
      %p178 = por %p176, %p177
      %p179 = scmp.ne.s32.totalorder %s168, %s171
      %p180 = scmp.eq.s32.totalorder %s17, 5
      %p181 = por %p179, %p180
      %p182 = scmp.ne.s32.totalorder %s171, %s172
      %p183 = scmp.eq.s32.totalorder %s17, 0
      %p184 = por %p182, %p183
      %p185 = scmp.ne.s32.totalorder %s171, %s172
      %p186 = scmp.eq.s32.totalorder %s18, 5
      %p187 = por %p185, %p186
      %p189 = scmp.ne.s32.totalorder %s172, %s188
      %p190 = scmp.eq.s32.totalorder %s18, 0
      %p191 = por %p189, %p190
      %p192 = scmp.le.s32.totalorder 1, %s12
      %p193 = scmp.lt.s32.totalorder %s12, 7
      %p194 = pnand %p192, %p193
      %p195 = pneg %p194
      // Predicated region
      $region9: #{line_pool_forward.4} parent=5 // pred_check
        _
      $region10: #{line_pool_forward.4} parent=5 // pred_check_branch
        %197 = sbr.rel (%p194) target = $region12
      $region11: #{line_pool_forward.4} parent=5 // pred_region
        %s198 = ssub.s32 %s12, 1
        // Predicated region
        $region13: #{line_pool_forward.4} parent=11 // pred_check
          %p199 = pneg %p137
        $region14: #{line_pool_forward.4} parent=11 // pred_check_branch
          %201 = sbr.rel (%p199) target = $region16
        $region15: #{line_pool_forward.4} parent=11 // pred_region
          _
        $region16: #{line_pool_forward.4} parent=11 // pred_fallthru
          _
        // Predicated region
        $region17: #{line_pool_forward.4} parent=11 // pred_check
          %p202 = pneg %p158
        $region18: #{line_pool_forward.4} parent=11 // pred_check_branch
          %204 = sbr.rel (%p202) target = $region20
        $region19: #{line_pool_forward.4} parent=11 // pred_region
          _
        $region20: #{line_pool_forward.4} parent=11 // pred_fallthru
          _
      $region12: #{line_pool_forward.4} parent=5 // pred_fallthru
        _
      %p205 = scmp.lt.s32.totalorder %s12, 6
      // Predicated region
      $region21: #{line_pool_forward.4} parent=5 // pred_check
        %p206 = pneg %p205
      $region22: #{line_pool_forward.4} parent=5 // pred_check_branch
        %208 = sbr.rel (%p206) target = $region24
      $region23: #{line_pool_forward.4} parent=5 // pred_region
        // Predicated region
        $region25: #{line_pool_forward.4} parent=23 // pred_check
          %p209 = pneg %p32
        $region26: #{line_pool_forward.4} parent=23 // pred_check_branch
          %211 = sbr.rel (%p209) target = $region28
        $region27: #{line_pool_forward.4} parent=23 // pred_region
          %p212 = scmp.lt.s32.totalorder %s12, 5
          %s213 = scalar_select %p212, %s12, 5
          %s214 = scalar_lea.vmem %s0, %s213
        $region28: #{line_pool_forward.4} parent=23 // pred_fallthru
          _
        // Predicated region
        $region29: #{line_pool_forward.4} parent=23 // pred_check
          %p215 = pneg %p58
        $region30: #{line_pool_forward.4} parent=23 // pred_check_branch
          %217 = sbr.rel (%p215) target = $region32
        $region31: #{line_pool_forward.4} parent=23 // pred_region
          %s218 = sand.u32 %s48, 1
          %s219 = sand.u32 %s48, 1
          %s220 = smul.addr %s219, 128
          %s221 = scalar_lea.vmem [#allocation2], %s220
          %s222 = smul.addr %s12, 8
          %s223 = scalar_lea.vmem %s1, %s222
          // Predicated region
          $region33: #{line_pool_forward.4} parent=31 // pred_check
            _
          $region34: #{line_pool_forward.4} parent=31 // pred_check_branch
            %225 = sbr.rel (0) target = $region36
          $region35: #{line_pool_forward.4} parent=31 // pred_region
            // Predicated region
            $region37: #{line_pool_forward.4} parent=35 // pred_check
              _
            $region38: #{line_pool_forward.4} parent=35 // pred_check_branch
              %227 = sbr.rel (0) target = $region40
            $region39: #{line_pool_forward.4} parent=35 // pred_region
              // Predicated region
              $region52: #{line_pool_forward.4} parent=39 // pred_check
                _
              $region53: #{line_pool_forward.4} parent=39 // pred_check_branch
                %272 = sbr.rel (0) target = $region55
              $region54: #{line_pool_forward.4} parent=39 // pred_region
                loop: start=0, step=1, limit=1
                $region56: #{line_pool_forward.4} parent=54 // loop_pre_header
                  _
                $region57: #{line_pool_forward.4} parent=54 // loop_header
                  %s274 = sphi 0, %s278
                  %p275 = scmp.ge.s32.totalorder %s274, 1
                  %s279 = sphi %s223, %s223
                  %s280 = sphi %s221, %s221
                $region58: #{line_pool_forward.4} parent=54 // loop_header_branch
                  %277 = sbr.rel (%p275) target = $region62
                $region59: #{line_pool_forward.4} parent=54 // loop_body
                  %v281 = vld [vmem:[%s279] sm:$0xff]
                  %282 = vst [vmem:[%s280] sm:$0xff] %v281
                  %v283 = vld [vmem:[%s279 + $0x30] sm:$0xff]
                  %284 = vst [vmem:[%s280 + $0x8] sm:$0xff] %v283
                  %v285 = vld [vmem:[%s279 + $0x60] sm:$0xff]
                  %286 = vst [vmem:[%s280 + $0x10] sm:$0xff] %v285
                  %v287 = vld [vmem:[%s279 + $0x90] sm:$0xff]
                  %288 = vst [vmem:[%s280 + $0x18] sm:$0xff] %v287
                  %v289 = vld [vmem:[%s279 + $0xc0] sm:$0xff]
                  %290 = vst [vmem:[%s280 + $0x20] sm:$0xff] %v289
                  %v291 = vld [vmem:[%s279 + $0xf0] sm:$0xff]
                  %292 = vst [vmem:[%s280 + $0x28] sm:$0xff] %v291
                  %v293 = vld [vmem:[%s279 + $0x120] sm:$0xff]
                  %294 = vst [vmem:[%s280 + $0x30] sm:$0xff] %v293
                  %v295 = vld [vmem:[%s279 + $0x150] sm:$0xff]
                  %296 = vst [vmem:[%s280 + $0x38] sm:$0xff] %v295
                  %v297 = vld [vmem:[%s279 + $0x180] sm:$0xff]
                  %298 = vst [vmem:[%s280 + $0x40] sm:$0xff] %v297
                  %v299 = vld [vmem:[%s279 + $0x1b0] sm:$0xff]
                  %300 = vst [vmem:[%s280 + $0x48] sm:$0xff] %v299
                  %v301 = vld [vmem:[%s279 + $0x1e0] sm:$0xff]
                  %302 = vst [vmem:[%s280 + $0x50] sm:$0xff] %v301
                  %v303 = vld [vmem:[%s279 + $0x210] sm:$0xff]
                  %304 = vst [vmem:[%s280 + $0x58] sm:$0xff] %v303
                  %v305 = vld [vmem:[%s279 + $0x240] sm:$0xff]
                  %306 = vst [vmem:[%s280 + $0x60] sm:$0xff] %v305
                  %v307 = vld [vmem:[%s279 + $0x270] sm:$0xff]
                  %308 = vst [vmem:[%s280 + $0x68] sm:$0xff] %v307
                  %v309 = vld [vmem:[%s279 + $0x2a0] sm:$0xff]
                  %310 = vst [vmem:[%s280 + $0x70] sm:$0xff] %v309
                  %v311 = vld [vmem:[%s279 + $0x2d0] sm:$0xff]
                  %312 = vst [vmem:[%s280 + $0x78] sm:$0xff] %v311
                $region60: #{line_pool_forward.4} parent=54 // loop_footer
                  %s278 = sadd.s32 1, %s274
                $region61: #{line_pool_forward.4} parent=54 // loop_footer_branch
                  %273 = sbr.rel target = $region57
                $region62: #{line_pool_forward.4} parent=54 // loop_exit
                  _
              $region55: #{line_pool_forward.4} parent=39 // pred_fallthru
                _
              // Predicated region
              $region63: #{line_pool_forward.4} parent=39 // pred_check
                _
              $region64: #{line_pool_forward.4} parent=39 // pred_check_branch
                %314 = sbr.rel target = $region66
              $region65: #{line_pool_forward.4} parent=39 // pred_region
                _
              $region66: #{line_pool_forward.4} parent=39 // pred_fallthru
                _
            $region40: #{line_pool_forward.4} parent=35 // pred_fallthru
              _
            // Predicated region
            $region41: #{line_pool_forward.4} parent=35 // pred_check
              _
            $region42: #{line_pool_forward.4} parent=35 // pred_check_branch
              %229 = sbr.rel target = $region44
            $region43: #{line_pool_forward.4} parent=35 // pred_region
              loop: start=0, step=1, limit=1
              $region45: #{line_pool_forward.4} parent=43 // loop_pre_header
                _
              $region46: #{line_pool_forward.4} parent=43 // loop_header
                %s232 = sphi 0, %s236
                %p233 = scmp.ge.s32.totalorder %s232, 1
                %s237 = sphi %s223, %s223
                %s238 = sphi %s221, %s221
              $region47: #{line_pool_forward.4} parent=43 // loop_header_branch
                %235 = sbr.rel (%p233) target = $region51
              $region48: #{line_pool_forward.4} parent=43 // loop_body
                %v239 = vld [vmem:[%s237] sm:$0xff]
                %240 = vst [vmem:[%s238] sm:$0xff] %v239
                %v241 = vld [vmem:[%s237 + $0x30] sm:$0xff]
                %242 = vst [vmem:[%s238 + $0x8] sm:$0xff] %v241
                %v243 = vld [vmem:[%s237 + $0x60] sm:$0xff]
                %244 = vst [vmem:[%s238 + $0x10] sm:$0xff] %v243
                %v245 = vld [vmem:[%s237 + $0x90] sm:$0xff]
                %246 = vst [vmem:[%s238 + $0x18] sm:$0xff] %v245
                %v247 = vld [vmem:[%s237 + $0xc0] sm:$0xff]
                %248 = vst [vmem:[%s238 + $0x20] sm:$0xff] %v247
                %v249 = vld [vmem:[%s237 + $0xf0] sm:$0xff]
                %250 = vst [vmem:[%s238 + $0x28] sm:$0xff] %v249
                %v251 = vld [vmem:[%s237 + $0x120] sm:$0xff]
                %252 = vst [vmem:[%s238 + $0x30] sm:$0xff] %v251
                %v253 = vld [vmem:[%s237 + $0x150] sm:$0xff]
                %254 = vst [vmem:[%s238 + $0x38] sm:$0xff] %v253
                %v255 = vld [vmem:[%s237 + $0x180] sm:$0xff]
                %256 = vst [vmem:[%s238 + $0x40] sm:$0xff] %v255
                %v257 = vld [vmem:[%s237 + $0x1b0] sm:$0xff]
                %258 = vst [vmem:[%s238 + $0x48] sm:$0xff] %v257
                %v259 = vld [vmem:[%s237 + $0x1e0] sm:$0xff]
                %260 = vst [vmem:[%s238 + $0x50] sm:$0xff] %v259
                %v261 = vld [vmem:[%s237 + $0x210] sm:$0xff]
                %262 = vst [vmem:[%s238 + $0x58] sm:$0xff] %v261
                %v263 = vld [vmem:[%s237 + $0x240] sm:$0xff]
                %264 = vst [vmem:[%s238 + $0x60] sm:$0xff] %v263
                %v265 = vld [vmem:[%s237 + $0x270] sm:$0xff]
                %266 = vst [vmem:[%s238 + $0x68] sm:$0xff] %v265
                %v267 = vld [vmem:[%s237 + $0x2a0] sm:$0xff]
                %268 = vst [vmem:[%s238 + $0x70] sm:$0xff] %v267
                %v269 = vld [vmem:[%s237 + $0x2d0] sm:$0xff]
                %270 = vst [vmem:[%s238 + $0x78] sm:$0xff] %v269
              $region49: #{line_pool_forward.4} parent=43 // loop_footer
                %s236 = sadd.s32 1, %s232
              $region50: #{line_pool_forward.4} parent=43 // loop_footer_branch
                %231 = sbr.rel target = $region46
              $region51: #{line_pool_forward.4} parent=43 // loop_exit
                _
            $region44: #{line_pool_forward.4} parent=35 // pred_fallthru
              _
          $region36: #{line_pool_forward.4} parent=31 // pred_fallthru
            _
          %315 = vnop
        $region32: #{line_pool_forward.4} parent=23 // pred_fallthru
          _
        // Predicated region
        $region67: #{line_pool_forward.4} parent=23 // pred_check
          %p316 = pneg %p84
        $region68: #{line_pool_forward.4} parent=23 // pred_check_branch
          %318 = sbr.rel (%p316) target = $region70
        $region69: #{line_pool_forward.4} parent=23 // pred_region
          %p319 = scmp.lt.s32.totalorder %s12, 5
          %s320 = scalar_select %p319, %s12, 5
          %s321 = smul.addr %s320, 16
          %s322 = smul.addr %s321, 8
          %s323 = scalar_lea.vmem %s2, %s322
        $region70: #{line_pool_forward.4} parent=23 // pred_fallthru
          _
        // Predicated region
        $region71: #{line_pool_forward.4} parent=23 // pred_check
          %p324 = pneg %p110
        $region72: #{line_pool_forward.4} parent=23 // pred_check_branch
          %326 = sbr.rel (%p324) target = $region74
        $region73: #{line_pool_forward.4} parent=23 // pred_region
          %p327 = scmp.lt.s32.totalorder %s12, 5
          %s328 = scalar_select %p327, %s12, 5
          %s329 = smul.addr %s328, 8
          %s330 = scalar_lea.vmem %s3, %s329
        $region74: #{line_pool_forward.4} parent=23 // pred_fallthru
          _
      $region24: #{line_pool_forward.4} parent=5 // pred_fallthru
        _
      %p331 = scmp.le.s32.totalorder 1, %s12
      %p332 = scmp.lt.s32.totalorder %s12, 7
      %p333 = pnand %p331, %p332
      %p334 = pneg %p333
      // Predicated region
      $region75: #{line_pool_forward.4} parent=5 // pred_check
        _
      $region76: #{line_pool_forward.4} parent=5 // pred_check_branch
        %336 = sbr.rel (%p333) target = $region78
      $region77: #{line_pool_forward.4} parent=5 // pred_region
        %s337 = ssub.s32 %s12, 1
        %s338 = sand.u32 %s51, 1
        %s339 = sand.u32 %s51, 1
        %s340 = smul.addr %s339, 128
        %s341 = scalar_lea.vmem [#allocation2], %s340
        // Predicated region
        $region79: #{line_pool_forward.4} parent=77 // pred_check
          %p342 = pneg %p64
        $region80: #{line_pool_forward.4} parent=77 // pred_check_branch
          %344 = sbr.rel (%p342) target = $region82
        $region81: #{line_pool_forward.4} parent=77 // pred_region
          _
        $region82: #{line_pool_forward.4} parent=77 // pred_fallthru
          _
        %p345 = scmp.lt.s32.totalorder %s17, 5
        %s346 = scalar_select %p345, %s17, 5
        %s347 = scalar_lea.vmem %s0, %s346
        %p348 = pneg %p38
        %p349 = pneg %p35
        %s350 = sand.u32 %s51, 1
        %s351 = sand.u32 %s51, 1
        %s352 = smul.addr %s351, 128
        %s353 = scalar_lea.vmem [#allocation2], %s352
        %p354 = pneg %p64
        %p355 = pneg %p61
        %p356 = scmp.lt.s32.totalorder %s17, 5
        %s357 = scalar_select %p356, %s17, 5
        %s358 = smul.addr %s357, 16
        %s359 = smul.addr %s358, 8
        %s360 = scalar_lea.vmem %s2, %s359
        %p361 = pneg %p90
        %p362 = pneg %p87
        %p363 = scmp.lt.s32.totalorder %s17, 5
        %s364 = scalar_select %p363, %s17, 5
        %s365 = smul.addr %s364, 8
        %s366 = scalar_lea.vmem %s3, %s365
        %p367 = pneg %p116
        %p368 = pneg %p113
        %p369 = pneg %p137
        %p370 = pneg %p134
        %p371 = pneg %p158
        %p372 = pneg %p155
        %p373 = pneg %p184
        %p374 = pneg %p181
        %p375 = scmp.lt.s32.totalorder %s17, 5
        %s376 = scalar_select %p375, %s17, 5
        %s377 = smul.addr %s376, 8
        %s378 = scalar_lea.vmem %s6, %s377
        %p379 = scmp.lt.s32.totalorder %s17, 5
        %s380 = scalar_select %p379, %s17, 5
        %s381 = scalar_lea.vmem %s0, %s380
        %p382 = scmp.lt.s32.totalorder %s17, 5
        %s383 = scalar_select %p382, %s17, 5
        %s384 = smul.addr %s383, 16
        %s385 = smul.addr %s384, 8
        %s386 = scalar_lea.vmem %s2, %s385
        %p387 = scmp.lt.s32.totalorder %s17, 5
        %s388 = scalar_select %p387, %s17, 5
        %s389 = smul.addr %s388, 8
        %s390 = scalar_lea.vmem %s3, %s389
        %p391 = scmp.lt.s32.totalorder %s17, 5
        %s392 = scalar_select %p391, %s17, 5
        %s393 = smul.addr %s392, 8
        %s394 = scalar_lea.vmem %s6, %s393
        %v395 = vld [vmem:[%s390] sm:$0xff]
        %v396 = vld [vmem:[%s341] sm:$0xff]
        %v397 = vld [vmem:[%s341 + $0x8] sm:$0xff]
        %v398 = vld [vmem:[%s341 + $0x10] sm:$0xff]
        %v399 = vld [vmem:[%s341 + $0x18] sm:$0xff]
        %v400 = vld [vmem:[%s341 + $0x20] sm:$0xff]
        %v401 = vld [vmem:[%s341 + $0x28] sm:$0xff]
        %v402 = vld [vmem:[%s341 + $0x30] sm:$0xff]
        %v403 = vld [vmem:[%s341 + $0x38] sm:$0xff]
        %v404 = vld [vmem:[%s341 + $0x40] sm:$0xff]
        %v405 = vld [vmem:[%s341 + $0x48] sm:$0xff]
        %v406 = vld [vmem:[%s341 + $0x50] sm:$0xff]
        %v407 = vld [vmem:[%s341 + $0x58] sm:$0xff]
        %v408 = vld [vmem:[%s341 + $0x60] sm:$0xff]
        %v409 = vld [vmem:[%s341 + $0x68] sm:$0xff]
        %v410 = vld [vmem:[%s341 + $0x70] sm:$0xff]
        %v411 = vld [vmem:[%s341 + $0x78] sm:$0xff]
        %v412 = vld [vmem:[%s386] sm:$0xff]
        %v413 = vld [vmem:[%s386 + $0x8] sm:$0xff]
        %v414 = vld [vmem:[%s386 + $0x10] sm:$0xff]
        %v415 = vld [vmem:[%s386 + $0x18] sm:$0xff]
        %v416 = vld [vmem:[%s386 + $0x20] sm:$0xff]
        %v417 = vld [vmem:[%s386 + $0x28] sm:$0xff]
        %v418 = vld [vmem:[%s386 + $0x30] sm:$0xff]
        %v419 = vld [vmem:[%s386 + $0x38] sm:$0xff]
        %v420 = vld [vmem:[%s386 + $0x40] sm:$0xff]
        %v421 = vld [vmem:[%s386 + $0x48] sm:$0xff]
        %v422 = vld [vmem:[%s386 + $0x50] sm:$0xff]
        %v423 = vld [vmem:[%s386 + $0x58] sm:$0xff]
        %v424 = vld [vmem:[%s386 + $0x60] sm:$0xff]
        %v425 = vld [vmem:[%s386 + $0x68] sm:$0xff]
        %v426 = vld [vmem:[%s386 + $0x70] sm:$0xff]
        %v427 = vld [vmem:[%s386 + $0x78] sm:$0xff]
        %460 = vrot.lane.b32.xlu0 %v396, 127
        %v461 = vpop.permute.xlu0 %460
        %462 = vrot.lane.b32.xlu0 %v412, 127
        %v463 = vpop.permute.xlu0 %462
        %464 = vrot.lane.b32.xlu0 %v397, 127
        %v465 = vpop.permute.xlu0 %464
        %466 = vrot.lane.b32.xlu0 %v413, 127
        %v467 = vpop.permute.xlu0 %466
        %468 = vrot.lane.b32.xlu0 %v398, 127
        %v469 = vpop.permute.xlu0 %468
        %470 = vrot.lane.b32.xlu0 %v414, 127
        %v471 = vpop.permute.xlu0 %470
        %472 = vrot.lane.b32.xlu0 %v399, 127
        %v473 = vpop.permute.xlu0 %472
        %474 = vrot.lane.b32.xlu0 %v415, 127
        %v475 = vpop.permute.xlu0 %474
        %476 = vrot.lane.b32.xlu0 %v400, 127
        %v477 = vpop.permute.xlu0 %476
        %478 = vrot.lane.b32.xlu0 %v416, 127
        %v479 = vpop.permute.xlu0 %478
        %480 = vrot.lane.b32.xlu0 %v401, 127
        %v481 = vpop.permute.xlu0 %480
        %482 = vrot.lane.b32.xlu0 %v417, 127
        %v483 = vpop.permute.xlu0 %482
        %484 = vrot.lane.b32.xlu0 %v402, 127
        %v485 = vpop.permute.xlu0 %484
        %486 = vrot.lane.b32.xlu0 %v418, 127
        %v487 = vpop.permute.xlu0 %486
        %488 = vrot.lane.b32.xlu0 %v403, 127
        %v489 = vpop.permute.xlu0 %488
        %490 = vrot.lane.b32.xlu0 %v419, 127
        %v491 = vpop.permute.xlu0 %490
        %492 = vrot.lane.b32.xlu0 %v404, 127
        %v493 = vpop.permute.xlu0 %492
        %494 = vrot.lane.b32.xlu0 %v420, 127
        %v495 = vpop.permute.xlu0 %494
        %496 = vrot.lane.b32.xlu0 %v405, 127
        %v497 = vpop.permute.xlu0 %496
        %498 = vrot.lane.b32.xlu0 %v421, 127
        %v499 = vpop.permute.xlu0 %498
        %500 = vrot.lane.b32.xlu0 %v406, 127
        %v501 = vpop.permute.xlu0 %500
        %502 = vrot.lane.b32.xlu0 %v422, 127
        %v503 = vpop.permute.xlu0 %502
        %504 = vrot.lane.b32.xlu0 %v407, 127
        %v505 = vpop.permute.xlu0 %504
        %506 = vrot.lane.b32.xlu0 %v423, 127
        %v507 = vpop.permute.xlu0 %506
        %508 = vrot.lane.b32.xlu0 %v408, 127
        %v509 = vpop.permute.xlu0 %508
        %510 = vrot.lane.b32.xlu0 %v424, 127
        %v511 = vpop.permute.xlu0 %510
        %512 = vrot.lane.b32.xlu0 %v409, 127
        %v513 = vpop.permute.xlu0 %512
        %514 = vrot.lane.b32.xlu0 %v425, 127
        %v515 = vpop.permute.xlu0 %514
        %516 = vrot.lane.b32.xlu0 %v410, 127
        %v517 = vpop.permute.xlu0 %516
        %518 = vrot.lane.b32.xlu0 %v426, 127
        %v519 = vpop.permute.xlu0 %518
        %520 = vrot.lane.b32.xlu0 %v411, 127
        %v521 = vpop.permute.xlu0 %520
        %522 = vrot.lane.b32.xlu0 %v427, 127
        %v523 = vpop.permute.xlu0 %522
        %vm524 = vcmask 1039360
        %v525 = vsel %vm524, %v461, %v463
        %v526 = vsel %vm524, %v465, %v467
        %v527 = vsel %vm524, %v469, %v471
        %v528 = vsel %vm524, %v473, %v475
        %v529 = vsel %vm524, %v477, %v479
        %v530 = vsel %vm524, %v481, %v483
        %v531 = vsel %vm524, %v485, %v487
        %v532 = vsel %vm524, %v489, %v491
        %v533 = vsel %vm524, %v493, %v495
        %v534 = vsel %vm524, %v497, %v499
        %v535 = vsel %vm524, %v501, %v503
        %v536 = vsel %vm524, %v505, %v507
        %v537 = vsel %vm524, %v509, %v511
        %v538 = vsel %vm524, %v513, %v515
        %v539 = vsel %vm524, %v517, %v519
        %v540 = vsel %vm524, %v521, %v523
        %557 = vrot.lane.b32.xlu0 %v396, 126
        %v558 = vpop.permute.xlu0 %557
        %559 = vrot.lane.b32.xlu0 %v412, 126
        %v560 = vpop.permute.xlu0 %559
        %561 = vrot.lane.b32.xlu0 %v397, 126
        %v562 = vpop.permute.xlu0 %561
        %563 = vrot.lane.b32.xlu0 %v413, 126
        %v564 = vpop.permute.xlu0 %563
        %565 = vrot.lane.b32.xlu0 %v398, 126
        %v566 = vpop.permute.xlu0 %565
        %567 = vrot.lane.b32.xlu0 %v414, 126
        %v568 = vpop.permute.xlu0 %567
        %569 = vrot.lane.b32.xlu0 %v399, 126
        %v570 = vpop.permute.xlu0 %569
        %571 = vrot.lane.b32.xlu0 %v415, 126
        %v572 = vpop.permute.xlu0 %571
        %573 = vrot.lane.b32.xlu0 %v400, 126
        %v574 = vpop.permute.xlu0 %573
        %575 = vrot.lane.b32.xlu0 %v416, 126
        %v576 = vpop.permute.xlu0 %575
        %577 = vrot.lane.b32.xlu0 %v401, 126
        %v578 = vpop.permute.xlu0 %577
        %579 = vrot.lane.b32.xlu0 %v417, 126
        %v580 = vpop.permute.xlu0 %579
        %581 = vrot.lane.b32.xlu0 %v402, 126
        %v582 = vpop.permute.xlu0 %581
        %583 = vrot.lane.b32.xlu0 %v418, 126
        %v584 = vpop.permute.xlu0 %583
        %585 = vrot.lane.b32.xlu0 %v403, 126
        %v586 = vpop.permute.xlu0 %585
        %587 = vrot.lane.b32.xlu0 %v419, 126
        %v588 = vpop.permute.xlu0 %587
        %589 = vrot.lane.b32.xlu0 %v404, 126
        %v590 = vpop.permute.xlu0 %589
        %591 = vrot.lane.b32.xlu0 %v420, 126
        %v592 = vpop.permute.xlu0 %591
        %593 = vrot.lane.b32.xlu0 %v405, 126
        %v594 = vpop.permute.xlu0 %593
        %595 = vrot.lane.b32.xlu0 %v421, 126
        %v596 = vpop.permute.xlu0 %595
        %597 = vrot.lane.b32.xlu0 %v406, 126
        %v598 = vpop.permute.xlu0 %597
        %599 = vrot.lane.b32.xlu0 %v422, 126
        %v600 = vpop.permute.xlu0 %599
        %601 = vrot.lane.b32.xlu0 %v407, 126
        %v602 = vpop.permute.xlu0 %601
        %603 = vrot.lane.b32.xlu0 %v423, 126
        %v604 = vpop.permute.xlu0 %603
        %605 = vrot.lane.b32.xlu0 %v408, 126
        %v606 = vpop.permute.xlu0 %605
        %607 = vrot.lane.b32.xlu0 %v424, 126
        %v608 = vpop.permute.xlu0 %607
        %609 = vrot.lane.b32.xlu0 %v409, 126
        %v610 = vpop.permute.xlu0 %609
        %611 = vrot.lane.b32.xlu0 %v425, 126
        %v612 = vpop.permute.xlu0 %611
        %613 = vrot.lane.b32.xlu0 %v410, 126
        %v614 = vpop.permute.xlu0 %613
        %615 = vrot.lane.b32.xlu0 %v426, 126
        %v616 = vpop.permute.xlu0 %615
        %617 = vrot.lane.b32.xlu0 %v411, 126
        %v618 = vpop.permute.xlu0 %617
        %619 = vrot.lane.b32.xlu0 %v427, 126
        %v620 = vpop.permute.xlu0 %619
        %vm621 = vcmask 1031168
        %v622 = vsel %vm621, %v558, %v560
        %v623 = vsel %vm621, %v562, %v564
        %v624 = vsel %vm621, %v566, %v568
        %v625 = vsel %vm621, %v570, %v572
        %v626 = vsel %vm621, %v574, %v576
        %v627 = vsel %vm621, %v578, %v580
        %v628 = vsel %vm621, %v582, %v584
        %v629 = vsel %vm621, %v586, %v588
        %v630 = vsel %vm621, %v590, %v592
        %v631 = vsel %vm621, %v594, %v596
        %v632 = vsel %vm621, %v598, %v600
        %v633 = vsel %vm621, %v602, %v604
        %v634 = vsel %vm621, %v606, %v608
        %v635 = vsel %vm621, %v610, %v612
        %v636 = vsel %vm621, %v614, %v616
        %v637 = vsel %vm621, %v618, %v620
        %654 = vrot.lane.b32.xlu0 %v396, 110
        %v655 = vpop.permute.xlu0 %654
        %656 = vrot.lane.b32.xlu0 %v412, 110
        %v657 = vpop.permute.xlu0 %656
        %658 = vrot.lane.b32.xlu0 %v397, 110
        %v659 = vpop.permute.xlu0 %658
        %660 = vrot.lane.b32.xlu0 %v413, 110
        %v661 = vpop.permute.xlu0 %660
        %662 = vrot.lane.b32.xlu0 %v398, 110
        %v663 = vpop.permute.xlu0 %662
        %664 = vrot.lane.b32.xlu0 %v414, 110
        %v665 = vpop.permute.xlu0 %664
        %666 = vrot.lane.b32.xlu0 %v399, 110
        %v667 = vpop.permute.xlu0 %666
        %668 = vrot.lane.b32.xlu0 %v415, 110
        %v669 = vpop.permute.xlu0 %668
        %670 = vrot.lane.b32.xlu0 %v400, 110
        %v671 = vpop.permute.xlu0 %670
        %672 = vrot.lane.b32.xlu0 %v416, 110
        %v673 = vpop.permute.xlu0 %672
        %674 = vrot.lane.b32.xlu0 %v401, 110
        %v675 = vpop.permute.xlu0 %674
        %676 = vrot.lane.b32.xlu0 %v417, 110
        %v677 = vpop.permute.xlu0 %676
        %678 = vrot.lane.b32.xlu0 %v402, 110
        %v679 = vpop.permute.xlu0 %678
        %680 = vrot.lane.b32.xlu0 %v418, 110
        %v681 = vpop.permute.xlu0 %680
        %682 = vrot.lane.b32.xlu0 %v403, 110
        %v683 = vpop.permute.xlu0 %682
        %684 = vrot.lane.b32.xlu0 %v419, 110
        %v685 = vpop.permute.xlu0 %684
        %686 = vrot.lane.b32.xlu0 %v404, 110
        %v687 = vpop.permute.xlu0 %686
        %688 = vrot.lane.b32.xlu0 %v420, 110
        %v689 = vpop.permute.xlu0 %688
        %690 = vrot.lane.b32.xlu0 %v405, 110
        %v691 = vpop.permute.xlu0 %690
        %692 = vrot.lane.b32.xlu0 %v421, 110
        %v693 = vpop.permute.xlu0 %692
        %694 = vrot.lane.b32.xlu0 %v406, 110
        %v695 = vpop.permute.xlu0 %694
        %696 = vrot.lane.b32.xlu0 %v422, 110
        %v697 = vpop.permute.xlu0 %696
        %698 = vrot.lane.b32.xlu0 %v407, 110
        %v699 = vpop.permute.xlu0 %698
        %700 = vrot.lane.b32.xlu0 %v423, 110
        %v701 = vpop.permute.xlu0 %700
        %702 = vrot.lane.b32.xlu0 %v408, 110
        %v703 = vpop.permute.xlu0 %702
        %704 = vrot.lane.b32.xlu0 %v424, 110
        %v705 = vpop.permute.xlu0 %704
        %706 = vrot.lane.b32.xlu0 %v409, 110
        %v707 = vpop.permute.xlu0 %706
        %708 = vrot.lane.b32.xlu0 %v425, 110
        %v709 = vpop.permute.xlu0 %708
        %710 = vrot.lane.b32.xlu0 %v410, 110
        %v711 = vpop.permute.xlu0 %710
        %712 = vrot.lane.b32.xlu0 %v426, 110
        %v713 = vpop.permute.xlu0 %712
        %714 = vrot.lane.b32.xlu0 %v411, 110
        %v715 = vpop.permute.xlu0 %714
        %716 = vrot.lane.b32.xlu0 %v427, 110
        %v717 = vpop.permute.xlu0 %716
        %vm718 = vcmask 900096
        %v719 = vsel %vm718, %v655, %v657
        %v720 = vsel %vm718, %v659, %v661
        %v721 = vsel %vm718, %v663, %v665
        %v722 = vsel %vm718, %v667, %v669
        %v723 = vsel %vm718, %v671, %v673
        %v724 = vsel %vm718, %v675, %v677
        %v725 = vsel %vm718, %v679, %v681
        %v726 = vsel %vm718, %v683, %v685
        %v727 = vsel %vm718, %v687, %v689
        %v728 = vsel %vm718, %v691, %v693
        %v729 = vsel %vm718, %v695, %v697
        %v730 = vsel %vm718, %v699, %v701
        %v731 = vsel %vm718, %v703, %v705
        %v732 = vsel %vm718, %v707, %v709
        %v733 = vsel %vm718, %v711, %v713
        %v734 = vsel %vm718, %v715, %v717
        %751 = vrot.lane.b32.xlu0 %v396, 109
        %v752 = vpop.permute.xlu0 %751
        %753 = vrot.lane.b32.xlu0 %v412, 109
        %v754 = vpop.permute.xlu0 %753
        %755 = vrot.lane.b32.xlu0 %v397, 109
        %v756 = vpop.permute.xlu0 %755
        %757 = vrot.lane.b32.xlu0 %v413, 109
        %v758 = vpop.permute.xlu0 %757
        %759 = vrot.lane.b32.xlu0 %v398, 109
        %v760 = vpop.permute.xlu0 %759
        %761 = vrot.lane.b32.xlu0 %v414, 109
        %v762 = vpop.permute.xlu0 %761
        %763 = vrot.lane.b32.xlu0 %v399, 109
        %v764 = vpop.permute.xlu0 %763
        %765 = vrot.lane.b32.xlu0 %v415, 109
        %v766 = vpop.permute.xlu0 %765
        %767 = vrot.lane.b32.xlu0 %v400, 109
        %v768 = vpop.permute.xlu0 %767
        %769 = vrot.lane.b32.xlu0 %v416, 109
        %v770 = vpop.permute.xlu0 %769
        %771 = vrot.lane.b32.xlu0 %v401, 109
        %v772 = vpop.permute.xlu0 %771
        %773 = vrot.lane.b32.xlu0 %v417, 109
        %v774 = vpop.permute.xlu0 %773
        %775 = vrot.lane.b32.xlu0 %v402, 109
        %v776 = vpop.permute.xlu0 %775
        %777 = vrot.lane.b32.xlu0 %v418, 109
        %v778 = vpop.permute.xlu0 %777
        %779 = vrot.lane.b32.xlu0 %v403, 109
        %v780 = vpop.permute.xlu0 %779
        %781 = vrot.lane.b32.xlu0 %v419, 109
        %v782 = vpop.permute.xlu0 %781
        %783 = vrot.lane.b32.xlu0 %v404, 109
        %v784 = vpop.permute.xlu0 %783
        %785 = vrot.lane.b32.xlu0 %v420, 109
        %v786 = vpop.permute.xlu0 %785
        %787 = vrot.lane.b32.xlu0 %v405, 109
        %v788 = vpop.permute.xlu0 %787
        %789 = vrot.lane.b32.xlu0 %v421, 109
        %v790 = vpop.permute.xlu0 %789
        %791 = vrot.lane.b32.xlu0 %v406, 109
        %v792 = vpop.permute.xlu0 %791
        %793 = vrot.lane.b32.xlu0 %v422, 109
        %v794 = vpop.permute.xlu0 %793
        %795 = vrot.lane.b32.xlu0 %v407, 109
        %v796 = vpop.permute.xlu0 %795
        %797 = vrot.lane.b32.xlu0 %v423, 109
        %v798 = vpop.permute.xlu0 %797
        %799 = vrot.lane.b32.xlu0 %v408, 109
        %v800 = vpop.permute.xlu0 %799
        %801 = vrot.lane.b32.xlu0 %v424, 109
        %v802 = vpop.permute.xlu0 %801
        %803 = vrot.lane.b32.xlu0 %v409, 109
        %v804 = vpop.permute.xlu0 %803
        %805 = vrot.lane.b32.xlu0 %v425, 109
        %v806 = vpop.permute.xlu0 %805
        %807 = vrot.lane.b32.xlu0 %v410, 109
        %v808 = vpop.permute.xlu0 %807
        %809 = vrot.lane.b32.xlu0 %v426, 109
        %v810 = vpop.permute.xlu0 %809
        %811 = vrot.lane.b32.xlu0 %v411, 109
        %v812 = vpop.permute.xlu0 %811
        %813 = vrot.lane.b32.xlu0 %v427, 109
        %v814 = vpop.permute.xlu0 %813
        %vm815 = vcmask 891904
        %v816 = vsel %vm815, %v752, %v754
        %v817 = vsel %vm815, %v756, %v758
        %v818 = vsel %vm815, %v760, %v762
        %v819 = vsel %vm815, %v764, %v766
        %v820 = vsel %vm815, %v768, %v770
        %v821 = vsel %vm815, %v772, %v774
        %v822 = vsel %vm815, %v776, %v778
        %v823 = vsel %vm815, %v780, %v782
        %v824 = vsel %vm815, %v784, %v786
        %v825 = vsel %vm815, %v788, %v790
        %v826 = vsel %vm815, %v792, %v794
        %v827 = vsel %vm815, %v796, %v798
        %v828 = vsel %vm815, %v800, %v802
        %v829 = vsel %vm815, %v804, %v806
        %v830 = vsel %vm815, %v808, %v810
        %v831 = vsel %vm815, %v812, %v814
        %848 = vrot.lane.b32.xlu0 %v396, 108
        %v849 = vpop.permute.xlu0 %848
        %850 = vrot.lane.b32.xlu0 %v412, 108
        %v851 = vpop.permute.xlu0 %850
        %852 = vrot.lane.b32.xlu0 %v397, 108
        %v853 = vpop.permute.xlu0 %852
        %854 = vrot.lane.b32.xlu0 %v413, 108
        %v855 = vpop.permute.xlu0 %854
        %856 = vrot.lane.b32.xlu0 %v398, 108
        %v857 = vpop.permute.xlu0 %856
        %858 = vrot.lane.b32.xlu0 %v414, 108
        %v859 = vpop.permute.xlu0 %858
        %860 = vrot.lane.b32.xlu0 %v399, 108
        %v861 = vpop.permute.xlu0 %860
        %862 = vrot.lane.b32.xlu0 %v415, 108
        %v863 = vpop.permute.xlu0 %862
        %864 = vrot.lane.b32.xlu0 %v400, 108
        %v865 = vpop.permute.xlu0 %864
        %866 = vrot.lane.b32.xlu0 %v416, 108
        %v867 = vpop.permute.xlu0 %866
        %868 = vrot.lane.b32.xlu0 %v401, 108
        %v869 = vpop.permute.xlu0 %868
        %870 = vrot.lane.b32.xlu0 %v417, 108
        %v871 = vpop.permute.xlu0 %870
        %872 = vrot.lane.b32.xlu0 %v402, 108
        %v873 = vpop.permute.xlu0 %872
        %874 = vrot.lane.b32.xlu0 %v418, 108
        %v875 = vpop.permute.xlu0 %874
        %876 = vrot.lane.b32.xlu0 %v403, 108
        %v877 = vpop.permute.xlu0 %876
        %878 = vrot.lane.b32.xlu0 %v419, 108
        %v879 = vpop.permute.xlu0 %878
        %880 = vrot.lane.b32.xlu0 %v404, 108
        %v881 = vpop.permute.xlu0 %880
        %882 = vrot.lane.b32.xlu0 %v420, 108
        %v883 = vpop.permute.xlu0 %882
        %884 = vrot.lane.b32.xlu0 %v405, 108
        %v885 = vpop.permute.xlu0 %884
        %886 = vrot.lane.b32.xlu0 %v421, 108
        %v887 = vpop.permute.xlu0 %886
        %888 = vrot.lane.b32.xlu0 %v406, 108
        %v889 = vpop.permute.xlu0 %888
        %890 = vrot.lane.b32.xlu0 %v422, 108
        %v891 = vpop.permute.xlu0 %890
        %892 = vrot.lane.b32.xlu0 %v407, 108
        %v893 = vpop.permute.xlu0 %892
        %894 = vrot.lane.b32.xlu0 %v423, 108
        %v895 = vpop.permute.xlu0 %894
        %896 = vrot.lane.b32.xlu0 %v408, 108
        %v897 = vpop.permute.xlu0 %896
        %898 = vrot.lane.b32.xlu0 %v424, 108
        %v899 = vpop.permute.xlu0 %898
        %900 = vrot.lane.b32.xlu0 %v409, 108
        %v901 = vpop.permute.xlu0 %900
        %902 = vrot.lane.b32.xlu0 %v425, 108
        %v903 = vpop.permute.xlu0 %902
        %904 = vrot.lane.b32.xlu0 %v410, 108
        %v905 = vpop.permute.xlu0 %904
        %906 = vrot.lane.b32.xlu0 %v426, 108
        %v907 = vpop.permute.xlu0 %906
        %908 = vrot.lane.b32.xlu0 %v411, 108
        %v909 = vpop.permute.xlu0 %908
        %910 = vrot.lane.b32.xlu0 %v427, 108
        %v911 = vpop.permute.xlu0 %910
        %vm912 = vcmask 883712
        %v913 = vsel %vm912, %v849, %v851
        %v914 = vsel %vm912, %v853, %v855
        %v915 = vsel %vm912, %v857, %v859
        %v916 = vsel %vm912, %v861, %v863
        %v917 = vsel %vm912, %v865, %v867
        %v918 = vsel %vm912, %v869, %v871
        %v919 = vsel %vm912, %v873, %v875
        %v920 = vsel %vm912, %v877, %v879
        %v921 = vsel %vm912, %v881, %v883
        %v922 = vsel %vm912, %v885, %v887
        %v923 = vsel %vm912, %v889, %v891
        %v924 = vsel %vm912, %v893, %v895
        %v925 = vsel %vm912, %v897, %v899
        %v926 = vsel %vm912, %v901, %v903
        %v927 = vsel %vm912, %v905, %v907
        %v928 = vsel %vm912, %v909, %v911
        %945 = vrot.lane.b32.xlu0 %v396, 92
        %v946 = vpop.permute.xlu0 %945
        %947 = vrot.lane.b32.xlu0 %v412, 92
        %v948 = vpop.permute.xlu0 %947
        %949 = vrot.lane.b32.xlu0 %v397, 92
        %v950 = vpop.permute.xlu0 %949
        %951 = vrot.lane.b32.xlu0 %v413, 92
        %v952 = vpop.permute.xlu0 %951
        %953 = vrot.lane.b32.xlu0 %v398, 92
        %v954 = vpop.permute.xlu0 %953
        %955 = vrot.lane.b32.xlu0 %v414, 92
        %v956 = vpop.permute.xlu0 %955
        %957 = vrot.lane.b32.xlu0 %v399, 92
        %v958 = vpop.permute.xlu0 %957
        %959 = vrot.lane.b32.xlu0 %v415, 92
        %v960 = vpop.permute.xlu0 %959
        %961 = vrot.lane.b32.xlu0 %v400, 92
        %v962 = vpop.permute.xlu0 %961
        %963 = vrot.lane.b32.xlu0 %v416, 92
        %v964 = vpop.permute.xlu0 %963
        %965 = vrot.lane.b32.xlu0 %v401, 92
        %v966 = vpop.permute.xlu0 %965
        %967 = vrot.lane.b32.xlu0 %v417, 92
        %v968 = vpop.permute.xlu0 %967
        %969 = vrot.lane.b32.xlu0 %v402, 92
        %v970 = vpop.permute.xlu0 %969
        %971 = vrot.lane.b32.xlu0 %v418, 92
        %v972 = vpop.permute.xlu0 %971
        %973 = vrot.lane.b32.xlu0 %v403, 92
        %v974 = vpop.permute.xlu0 %973
        %975 = vrot.lane.b32.xlu0 %v419, 92
        %v976 = vpop.permute.xlu0 %975
        %977 = vrot.lane.b32.xlu0 %v404, 92
        %v978 = vpop.permute.xlu0 %977
        %979 = vrot.lane.b32.xlu0 %v420, 92
        %v980 = vpop.permute.xlu0 %979
        %981 = vrot.lane.b32.xlu0 %v405, 92
        %v982 = vpop.permute.xlu0 %981
        %983 = vrot.lane.b32.xlu0 %v421, 92
        %v984 = vpop.permute.xlu0 %983
        %985 = vrot.lane.b32.xlu0 %v406, 92
        %v986 = vpop.permute.xlu0 %985
        %987 = vrot.lane.b32.xlu0 %v422, 92
        %v988 = vpop.permute.xlu0 %987
        %989 = vrot.lane.b32.xlu0 %v407, 92
        %v990 = vpop.permute.xlu0 %989
        %991 = vrot.lane.b32.xlu0 %v423, 92
        %v992 = vpop.permute.xlu0 %991
        %993 = vrot.lane.b32.xlu0 %v408, 92
        %v994 = vpop.permute.xlu0 %993
        %995 = vrot.lane.b32.xlu0 %v424, 92
        %v996 = vpop.permute.xlu0 %995
        %997 = vrot.lane.b32.xlu0 %v409, 92
        %v998 = vpop.permute.xlu0 %997
        %999 = vrot.lane.b32.xlu0 %v425, 92
        %v1000 = vpop.permute.xlu0 %999
        %1001 = vrot.lane.b32.xlu0 %v410, 92
        %v1002 = vpop.permute.xlu0 %1001
        %1003 = vrot.lane.b32.xlu0 %v426, 92
        %v1004 = vpop.permute.xlu0 %1003
        %1005 = vrot.lane.b32.xlu0 %v411, 92
        %v1006 = vpop.permute.xlu0 %1005
        %1007 = vrot.lane.b32.xlu0 %v427, 92
        %v1008 = vpop.permute.xlu0 %1007
        %vm1009 = vcmask 752640
        %v1010 = vsel %vm1009, %v946, %v948
        %v1011 = vsel %vm1009, %v950, %v952
        %v1012 = vsel %vm1009, %v954, %v956
        %v1013 = vsel %vm1009, %v958, %v960
        %v1014 = vsel %vm1009, %v962, %v964
        %v1015 = vsel %vm1009, %v966, %v968
        %v1016 = vsel %vm1009, %v970, %v972
        %v1017 = vsel %vm1009, %v974, %v976
        %v1018 = vsel %vm1009, %v978, %v980
        %v1019 = vsel %vm1009, %v982, %v984
        %v1020 = vsel %vm1009, %v986, %v988
        %v1021 = vsel %vm1009, %v990, %v992
        %v1022 = vsel %vm1009, %v994, %v996
        %v1023 = vsel %vm1009, %v998, %v1000
        %v1024 = vsel %vm1009, %v1002, %v1004
        %v1025 = vsel %vm1009, %v1006, %v1008
        %1042 = vrot.lane.b32.xlu0 %v396, 91
        %v1043 = vpop.permute.xlu0 %1042
        %1044 = vrot.lane.b32.xlu0 %v412, 91
        %v1045 = vpop.permute.xlu0 %1044
        %1046 = vrot.lane.b32.xlu0 %v397, 91
        %v1047 = vpop.permute.xlu0 %1046
        %1048 = vrot.lane.b32.xlu0 %v413, 91
        %v1049 = vpop.permute.xlu0 %1048
        %1050 = vrot.lane.b32.xlu0 %v398, 91
        %v1051 = vpop.permute.xlu0 %1050
        %1052 = vrot.lane.b32.xlu0 %v414, 91
        %v1053 = vpop.permute.xlu0 %1052
        %1054 = vrot.lane.b32.xlu0 %v399, 91
        %v1055 = vpop.permute.xlu0 %1054
        %1056 = vrot.lane.b32.xlu0 %v415, 91
        %v1057 = vpop.permute.xlu0 %1056
        %1058 = vrot.lane.b32.xlu0 %v400, 91
        %v1059 = vpop.permute.xlu0 %1058
        %1060 = vrot.lane.b32.xlu0 %v416, 91
        %v1061 = vpop.permute.xlu0 %1060
        %1062 = vrot.lane.b32.xlu0 %v401, 91
        %v1063 = vpop.permute.xlu0 %1062
        %1064 = vrot.lane.b32.xlu0 %v417, 91
        %v1065 = vpop.permute.xlu0 %1064
        %1066 = vrot.lane.b32.xlu0 %v402, 91
        %v1067 = vpop.permute.xlu0 %1066
        %1068 = vrot.lane.b32.xlu0 %v418, 91
        %v1069 = vpop.permute.xlu0 %1068
        %1070 = vrot.lane.b32.xlu0 %v403, 91
        %v1071 = vpop.permute.xlu0 %1070
        %1072 = vrot.lane.b32.xlu0 %v419, 91
        %v1073 = vpop.permute.xlu0 %1072
        %1074 = vrot.lane.b32.xlu0 %v404, 91
        %v1075 = vpop.permute.xlu0 %1074
        %1076 = vrot.lane.b32.xlu0 %v420, 91
        %v1077 = vpop.permute.xlu0 %1076
        %1078 = vrot.lane.b32.xlu0 %v405, 91
        %v1079 = vpop.permute.xlu0 %1078
        %1080 = vrot.lane.b32.xlu0 %v421, 91
        %v1081 = vpop.permute.xlu0 %1080
        %1082 = vrot.lane.b32.xlu0 %v406, 91
        %v1083 = vpop.permute.xlu0 %1082
        %1084 = vrot.lane.b32.xlu0 %v422, 91
        %v1085 = vpop.permute.xlu0 %1084
        %1086 = vrot.lane.b32.xlu0 %v407, 91
        %v1087 = vpop.permute.xlu0 %1086
        %1088 = vrot.lane.b32.xlu0 %v423, 91
        %v1089 = vpop.permute.xlu0 %1088
        %1090 = vrot.lane.b32.xlu0 %v408, 91
        %v1091 = vpop.permute.xlu0 %1090
        %1092 = vrot.lane.b32.xlu0 %v424, 91
        %v1093 = vpop.permute.xlu0 %1092
        %1094 = vrot.lane.b32.xlu0 %v409, 91
        %v1095 = vpop.permute.xlu0 %1094
        %1096 = vrot.lane.b32.xlu0 %v425, 91
        %v1097 = vpop.permute.xlu0 %1096
        %1098 = vrot.lane.b32.xlu0 %v410, 91
        %v1099 = vpop.permute.xlu0 %1098
        %1100 = vrot.lane.b32.xlu0 %v426, 91
        %v1101 = vpop.permute.xlu0 %1100
        %1102 = vrot.lane.b32.xlu0 %v411, 91
        %v1103 = vpop.permute.xlu0 %1102
        %1104 = vrot.lane.b32.xlu0 %v427, 91
        %v1105 = vpop.permute.xlu0 %1104
        %vm1106 = vcmask 744448
        %v1107 = vsel %vm1106, %v1043, %v1045
        %v1108 = vsel %vm1106, %v1047, %v1049
        %v1109 = vsel %vm1106, %v1051, %v1053
        %v1110 = vsel %vm1106, %v1055, %v1057
        %v1111 = vsel %vm1106, %v1059, %v1061
        %v1112 = vsel %vm1106, %v1063, %v1065
        %v1113 = vsel %vm1106, %v1067, %v1069
        %v1114 = vsel %vm1106, %v1071, %v1073
        %v1115 = vsel %vm1106, %v1075, %v1077
        %v1116 = vsel %vm1106, %v1079, %v1081
        %v1117 = vsel %vm1106, %v1083, %v1085
        %v1118 = vsel %vm1106, %v1087, %v1089
        %v1119 = vsel %vm1106, %v1091, %v1093
        %v1120 = vsel %vm1106, %v1095, %v1097
        %v1121 = vsel %vm1106, %v1099, %v1101
        %v1122 = vsel %vm1106, %v1103, %v1105
        %1139 = vrot.lane.b32.xlu0 %v396, 90
        %v1140 = vpop.permute.xlu0 %1139
        %1141 = vrot.lane.b32.xlu0 %v412, 90
        %v1142 = vpop.permute.xlu0 %1141
        %1143 = vrot.lane.b32.xlu0 %v397, 90
        %v1144 = vpop.permute.xlu0 %1143
        %1145 = vrot.lane.b32.xlu0 %v413, 90
        %v1146 = vpop.permute.xlu0 %1145
        %1147 = vrot.lane.b32.xlu0 %v398, 90
        %v1148 = vpop.permute.xlu0 %1147
        %1149 = vrot.lane.b32.xlu0 %v414, 90
        %v1150 = vpop.permute.xlu0 %1149
        %1151 = vrot.lane.b32.xlu0 %v399, 90
        %v1152 = vpop.permute.xlu0 %1151
        %1153 = vrot.lane.b32.xlu0 %v415, 90
        %v1154 = vpop.permute.xlu0 %1153
        %1155 = vrot.lane.b32.xlu0 %v400, 90
        %v1156 = vpop.permute.xlu0 %1155
        %1157 = vrot.lane.b32.xlu0 %v416, 90
        %v1158 = vpop.permute.xlu0 %1157
        %1159 = vrot.lane.b32.xlu0 %v401, 90
        %v1160 = vpop.permute.xlu0 %1159
        %1161 = vrot.lane.b32.xlu0 %v417, 90
        %v1162 = vpop.permute.xlu0 %1161
        %1163 = vrot.lane.b32.xlu0 %v402, 90
        %v1164 = vpop.permute.xlu0 %1163
        %1165 = vrot.lane.b32.xlu0 %v418, 90
        %v1166 = vpop.permute.xlu0 %1165
        %1167 = vrot.lane.b32.xlu0 %v403, 90
        %v1168 = vpop.permute.xlu0 %1167
        %1169 = vrot.lane.b32.xlu0 %v419, 90
        %v1170 = vpop.permute.xlu0 %1169
        %1171 = vrot.lane.b32.xlu0 %v404, 90
        %v1172 = vpop.permute.xlu0 %1171
        %1173 = vrot.lane.b32.xlu0 %v420, 90
        %v1174 = vpop.permute.xlu0 %1173
        %1175 = vrot.lane.b32.xlu0 %v405, 90
        %v1176 = vpop.permute.xlu0 %1175
        %1177 = vrot.lane.b32.xlu0 %v421, 90
        %v1178 = vpop.permute.xlu0 %1177
        %1179 = vrot.lane.b32.xlu0 %v406, 90
        %v1180 = vpop.permute.xlu0 %1179
        %1181 = vrot.lane.b32.xlu0 %v422, 90
        %v1182 = vpop.permute.xlu0 %1181
        %1183 = vrot.lane.b32.xlu0 %v407, 90
        %v1184 = vpop.permute.xlu0 %1183
        %1185 = vrot.lane.b32.xlu0 %v423, 90
        %v1186 = vpop.permute.xlu0 %1185
        %1187 = vrot.lane.b32.xlu0 %v408, 90
        %v1188 = vpop.permute.xlu0 %1187
        %1189 = vrot.lane.b32.xlu0 %v424, 90
        %v1190 = vpop.permute.xlu0 %1189
        %1191 = vrot.lane.b32.xlu0 %v409, 90
        %v1192 = vpop.permute.xlu0 %1191
        %1193 = vrot.lane.b32.xlu0 %v425, 90
        %v1194 = vpop.permute.xlu0 %1193
        %1195 = vrot.lane.b32.xlu0 %v410, 90
        %v1196 = vpop.permute.xlu0 %1195
        %1197 = vrot.lane.b32.xlu0 %v426, 90
        %v1198 = vpop.permute.xlu0 %1197
        %1199 = vrot.lane.b32.xlu0 %v411, 90
        %v1200 = vpop.permute.xlu0 %1199
        %1201 = vrot.lane.b32.xlu0 %v427, 90
        %v1202 = vpop.permute.xlu0 %1201
        %vm1203 = vcmask 736256
        %v1204 = vsel %vm1203, %v1140, %v1142
        %v1205 = vsel %vm1203, %v1144, %v1146
        %v1206 = vsel %vm1203, %v1148, %v1150
        %v1207 = vsel %vm1203, %v1152, %v1154
        %v1208 = vsel %vm1203, %v1156, %v1158
        %v1209 = vsel %vm1203, %v1160, %v1162
        %v1210 = vsel %vm1203, %v1164, %v1166
        %v1211 = vsel %vm1203, %v1168, %v1170
        %v1212 = vsel %vm1203, %v1172, %v1174
        %v1213 = vsel %vm1203, %v1176, %v1178
        %v1214 = vsel %vm1203, %v1180, %v1182
        %v1215 = vsel %vm1203, %v1184, %v1186
        %v1216 = vsel %vm1203, %v1188, %v1190
        %v1217 = vsel %vm1203, %v1192, %v1194
        %v1218 = vsel %vm1203, %v1196, %v1198
        %v1219 = vsel %vm1203, %v1200, %v1202
        %v1236 = vld [vmem:[%s4] sm:$0xff]
        %v1237 = vld [vmem:[%s4 + $0x8] sm:$0xff]
        %v1238 = vld [vmem:[%s4 + $0x10] sm:$0xff]
        %v1239 = vld [vmem:[%s4 + $0x18] sm:$0xff]
        %v1240 = vld [vmem:[%s4 + $0x20] sm:$0xff]
        %v1241 = vld [vmem:[%s4 + $0x28] sm:$0xff]
        %v1242 = vld [vmem:[%s4 + $0x30] sm:$0xff]
        %v1243 = vld [vmem:[%s4 + $0x38] sm:$0xff]
        %v1244 = vld [vmem:[%s4 + $0x40] sm:$0xff]
        %v1245 = vld [vmem:[%s4 + $0x48] sm:$0xff]
        %v1246 = vld [vmem:[%s5] sm:$0xff]
        %1248 = vset.pattern.permute.xlu0 0
        %1249 = vperm.xlu0 %1248, %v1246
        %v1250 = vpop.permute.xlu0 %1249
        %vm1252 = vcmask 64512
        %v1254 = vsel %vm1252, %v1245, 0
        %1256 = vmatprep.subr.mxu0 0.0
        %1257 = vmatpush1.msra.mxu0 %v395
        %1258 = vmatprep.subr.mxu0 0.0
        %1259 = vmatpush1.msra.mxu0 %v396
        %1260 = vmatprep.subr.mxu0 0.0
        %1261 = vmatpush1.msra.mxu0 %v397
        %1262 = vmatprep.subr.mxu0 0.0
        %1263 = vmatpush1.msra.mxu0 %v398
        %1264 = vmatprep.subr.mxu0 0.0
        %1265 = vmatpush1.msra.mxu0 %v399
        %1266 = vmatprep.subr.mxu0 0.0
        %1267 = vmatpush1.msra.mxu0 %v400
        %1268 = vmatprep.subr.mxu0 0.0
        %1269 = vmatpush1.msra.mxu0 %v401
        %1270 = vmatprep.subr.mxu0 0.0
        %1271 = vmatpush1.msra.mxu0 %v402
        %1272 = vmatprep.subr.mxu0 0.0
        %1273 = vmatpush1.msra.mxu0 %v403
        %1274 = vmatprep.subr.mxu0 0.0
        %1275 = vmatpush1.msra.mxu0 %v404
        %1276 = vmatprep.subr.mxu0 0.0
        %1277 = vmatpush1.msra.mxu0 %v405
        %1278 = vmatprep.subr.mxu0 0.0
        %1279 = vmatpush1.msra.mxu0 %v406
        %1280 = vmatprep.subr.mxu0 0.0
        %1281 = vmatpush1.msra.mxu0 %v407
        %1282 = vmatprep.subr.mxu0 0.0
        %1283 = vmatpush1.msra.mxu0 %v408
        %1284 = vmatprep.subr.mxu0 0.0
        %1285 = vmatpush1.msra.mxu0 %v409
        %1286 = vmatprep.subr.mxu0 0.0
        %1287 = vmatpush1.msra.mxu0 %v410
        %1288 = vmatprep.subr.mxu0 0.0
        %1289 = vmatpush1.msra.mxu0 %v411
        %1290 = vmatprep.subr.mxu0 0.0
        %1291 = vmatpush1.msra.mxu0 %v525
        %1292 = vmatprep.subr.mxu0 0.0
        %1293 = vmatpush1.msra.mxu0 %v526
        %1294 = vmatprep.subr.mxu0 0.0
        %1295 = vmatpush1.msra.mxu0 %v527
        %1296 = vmatprep.subr.mxu0 0.0
        %1297 = vmatpush1.msra.mxu0 %v528
        %1298 = vmatprep.subr.mxu0 0.0
        %1299 = vmatpush1.msra.mxu0 %v529
        %1300 = vmatprep.subr.mxu0 0.0
        %1301 = vmatpush1.msra.mxu0 %v530
        %1302 = vmatprep.subr.mxu0 0.0
        %1303 = vmatpush1.msra.mxu0 %v531
        %1304 = vmatprep.subr.mxu0 0.0
        %1305 = vmatpush1.msra.mxu0 %v532
        %1306 = vmatprep.subr.mxu0 0.0
        %1307 = vmatpush1.msra.mxu0 %v533
        %1308 = vmatprep.subr.mxu0 0.0
        %1309 = vmatpush1.msra.mxu0 %v534
        %1310 = vmatprep.subr.mxu0 0.0
        %1311 = vmatpush1.msra.mxu0 %v535
        %1312 = vmatprep.subr.mxu0 0.0
        %1313 = vmatpush1.msra.mxu0 %v536
        %1314 = vmatprep.subr.mxu0 0.0
        %1315 = vmatpush1.msra.mxu0 %v537
        %1316 = vmatprep.subr.mxu0 0.0
        %1317 = vmatpush1.msra.mxu0 %v538
        %1318 = vmatprep.subr.mxu0 0.0
        %1319 = vmatpush1.msra.mxu0 %v539
        %1320 = vmatprep.mubr.f32.mxu0 %v1237
        %1321 = vmatmul.mubr.f32.gmra.mrb[0].mxu0 %v1236
        %v1322 = vpop.f32.mrb[0].mxu0
        %v1323 = vadd.f32 %v1250, %v1322
        %v1324 = vpop.f32.mrb[0].mxu0
        %1325 = vdwg.mxu0
        %1326 = vmatprep.subr.mxu0 0.0
        %1327 = vmatpush1.msra.mxu0 %v540
        %1328 = vmatprep.subr.mxu0 0.0
        %1329 = vmatpush1.msra.mxu0 %v622
        %1330 = vmatprep.subr.mxu0 0.0
        %1331 = vmatpush1.msra.mxu0 %v623
        %1332 = vmatprep.subr.mxu0 0.0
        %1333 = vmatpush1.msra.mxu0 %v624
        %1334 = vmatprep.subr.mxu0 0.0
        %1335 = vmatpush1.msra.mxu0 %v625
        %1336 = vmatprep.subr.mxu0 0.0
        %1337 = vmatpush1.msra.mxu0 %v626
        %1338 = vmatprep.subr.mxu0 0.0
        %1339 = vmatpush1.msra.mxu0 %v627
        %1340 = vmatprep.subr.mxu0 0.0
        %1341 = vmatpush1.msra.mxu0 %v628
        %1342 = vmatprep.subr.mxu0 0.0
        %1343 = vmatpush1.msra.mxu0 %v629
        %1344 = vmatprep.subr.mxu0 0.0
        %1345 = vmatpush1.msra.mxu0 %v630
        %1346 = vmatprep.subr.mxu0 0.0
        %1347 = vmatpush1.msra.mxu0 %v631
        %1348 = vmatprep.subr.mxu0 0.0
        %1349 = vmatpush1.msra.mxu0 %v632
        %1350 = vmatprep.subr.mxu0 0.0
        %1351 = vmatpush1.msra.mxu0 %v633
        %1352 = vmatprep.subr.mxu0 0.0
        %1353 = vmatpush1.msra.mxu0 %v634
        %1354 = vmatprep.subr.mxu0 0.0
        %1355 = vmatpush1.msra.mxu0 %v635
        %1356 = vmatprep.subr.mxu0 0.0
        %1357 = vmatpush1.msra.mxu0 %v636
        %1358 = vmatprep.subr.mxu0 0.0
        %1359 = vmatpush1.msra.mxu0 %v637
        %1360 = vmatprep.subr.mxu0 0.0
        %1361 = vmatpush1.msra.mxu0 %v719
        %1362 = vmatprep.subr.mxu0 0.0
        %1363 = vmatpush1.msra.mxu0 %v720
        %1364 = vmatprep.subr.mxu0 0.0
        %1365 = vmatpush1.msra.mxu0 %v721
        %1366 = vmatprep.subr.mxu0 0.0
        %1367 = vmatpush1.msra.mxu0 %v722
        %1368 = vmatprep.subr.mxu0 0.0
        %1369 = vmatpush1.msra.mxu0 %v723
        %1370 = vmatprep.subr.mxu0 0.0
        %1371 = vmatpush1.msra.mxu0 %v724
        %1372 = vmatprep.subr.mxu0 0.0
        %1373 = vmatpush1.msra.mxu0 %v725
        %1374 = vmatprep.subr.mxu0 0.0
        %1375 = vmatpush1.msra.mxu0 %v726
        %1376 = vmatprep.subr.mxu0 0.0
        %1377 = vmatpush1.msra.mxu0 %v727
        %1378 = vmatprep.subr.mxu0 0.0
        %1379 = vmatpush1.msra.mxu0 %v728
        %1380 = vmatprep.subr.mxu0 0.0
        %1381 = vmatpush1.msra.mxu0 %v729
        %1382 = vmatprep.subr.mxu0 0.0
        %1383 = vmatpush1.msra.mxu0 %v730
        %1384 = vmatprep.subr.mxu0 0.0
        %1385 = vmatpush1.msra.mxu0 %v731
        %1386 = vmatprep.subr.mxu0 0.0
        %1387 = vmatpush1.msra.mxu0 %v732
        %1388 = vmatprep.subr.mxu0 0.0
        %1389 = vmatpush1.msra.mxu0 %v733
        %1390 = vmatprep.mubr.f32.mxu0 %v1239
        %1391 = vmatmul.mubr.f32.gmra.mrb[0].mxu0 %v1238
        %v1392 = vpop.f32.mrb[0].mxu0
        %v1393 = vadd.f32 %v1323, %v1392
        %v1394 = vpop.f32.mrb[0].mxu0
        %1395 = vdwg.mxu0
        %1396 = vmatprep.subr.mxu0 0.0
        %1397 = vmatpush1.msra.mxu0 %v734
        %1398 = vmatprep.subr.mxu0 0.0
        %1399 = vmatpush1.msra.mxu0 %v816
        %1400 = vmatprep.subr.mxu0 0.0
        %1401 = vmatpush1.msra.mxu0 %v817
        %1402 = vmatprep.subr.mxu0 0.0
        %1403 = vmatpush1.msra.mxu0 %v818
        %1404 = vmatprep.subr.mxu0 0.0
        %1405 = vmatpush1.msra.mxu0 %v819
        %1406 = vmatprep.subr.mxu0 0.0
        %1407 = vmatpush1.msra.mxu0 %v820
        %1408 = vmatprep.subr.mxu0 0.0
        %1409 = vmatpush1.msra.mxu0 %v821
        %1410 = vmatprep.subr.mxu0 0.0
        %1411 = vmatpush1.msra.mxu0 %v822
        %1412 = vmatprep.subr.mxu0 0.0
        %1413 = vmatpush1.msra.mxu0 %v823
        %1414 = vmatprep.subr.mxu0 0.0
        %1415 = vmatpush1.msra.mxu0 %v824
        %1416 = vmatprep.subr.mxu0 0.0
        %1417 = vmatpush1.msra.mxu0 %v825
        %1418 = vmatprep.subr.mxu0 0.0
        %1419 = vmatpush1.msra.mxu0 %v826
        %1420 = vmatprep.subr.mxu0 0.0
        %1421 = vmatpush1.msra.mxu0 %v827
        %1422 = vmatprep.subr.mxu0 0.0
        %1423 = vmatpush1.msra.mxu0 %v828
        %1424 = vmatprep.subr.mxu0 0.0
        %1425 = vmatpush1.msra.mxu0 %v829
        %1426 = vmatprep.subr.mxu0 0.0
        %1427 = vmatpush1.msra.mxu0 %v830
        %1428 = vmatprep.subr.mxu0 0.0
        %1429 = vmatpush1.msra.mxu0 %v831
        %1430 = vmatprep.subr.mxu0 0.0
        %1431 = vmatpush1.msra.mxu0 %v913
        %1432 = vmatprep.subr.mxu0 0.0
        %1433 = vmatpush1.msra.mxu0 %v914
        %1434 = vmatprep.subr.mxu0 0.0
        %1435 = vmatpush1.msra.mxu0 %v915
        %1436 = vmatprep.subr.mxu0 0.0
        %1437 = vmatpush1.msra.mxu0 %v916
        %1438 = vmatprep.subr.mxu0 0.0
        %1439 = vmatpush1.msra.mxu0 %v917
        %1440 = vmatprep.subr.mxu0 0.0
        %1441 = vmatpush1.msra.mxu0 %v918
        %1442 = vmatprep.subr.mxu0 0.0
        %1443 = vmatpush1.msra.mxu0 %v919
        %1444 = vmatprep.subr.mxu0 0.0
        %1445 = vmatpush1.msra.mxu0 %v920
        %1446 = vmatprep.subr.mxu0 0.0
        %1447 = vmatpush1.msra.mxu0 %v921
        %1448 = vmatprep.subr.mxu0 0.0
        %1449 = vmatpush1.msra.mxu0 %v922
        %1450 = vmatprep.subr.mxu0 0.0
        %1451 = vmatpush1.msra.mxu0 %v923
        %1452 = vmatprep.subr.mxu0 0.0
        %1453 = vmatpush1.msra.mxu0 %v924
        %1454 = vmatprep.subr.mxu0 0.0
        %1455 = vmatpush1.msra.mxu0 %v925
        %1456 = vmatprep.subr.mxu0 0.0
        %1457 = vmatpush1.msra.mxu0 %v926
        %1458 = vmatprep.subr.mxu0 0.0
        %1459 = vmatpush1.msra.mxu0 %v927
        %1460 = vmatprep.mubr.f32.mxu0 %v1241
        %1461 = vmatmul.mubr.f32.gmra.mrb[0].mxu0 %v1240
        %v1462 = vpop.f32.mrb[0].mxu0
        %v1463 = vadd.f32 %v1393, %v1462
        %v1464 = vpop.f32.mrb[0].mxu0
        %1465 = vdwg.mxu0
        %1466 = vmatprep.subr.mxu0 0.0
        %1467 = vmatpush1.msra.mxu0 %v928
        %1468 = vmatprep.subr.mxu0 0.0
        %1469 = vmatpush1.msra.mxu0 %v1010
        %1470 = vmatprep.subr.mxu0 0.0
        %1471 = vmatpush1.msra.mxu0 %v1011
        %1472 = vmatprep.subr.mxu0 0.0
        %1473 = vmatpush1.msra.mxu0 %v1012
        %1474 = vmatprep.subr.mxu0 0.0
        %1475 = vmatpush1.msra.mxu0 %v1013
        %1476 = vmatprep.subr.mxu0 0.0
        %1477 = vmatpush1.msra.mxu0 %v1014
        %1478 = vmatprep.subr.mxu0 0.0
        %1479 = vmatpush1.msra.mxu0 %v1015
        %1480 = vmatprep.subr.mxu0 0.0
        %1481 = vmatpush1.msra.mxu0 %v1016
        %1482 = vmatprep.subr.mxu0 0.0
        %1483 = vmatpush1.msra.mxu0 %v1017
        %1484 = vmatprep.subr.mxu0 0.0
        %1485 = vmatpush1.msra.mxu0 %v1018
        %1486 = vmatprep.subr.mxu0 0.0
        %1487 = vmatpush1.msra.mxu0 %v1019
        %1488 = vmatprep.subr.mxu0 0.0
        %1489 = vmatpush1.msra.mxu0 %v1020
        %1490 = vmatprep.subr.mxu0 0.0
        %1491 = vmatpush1.msra.mxu0 %v1021
        %1492 = vmatprep.subr.mxu0 0.0
        %1493 = vmatpush1.msra.mxu0 %v1022
        %1494 = vmatprep.subr.mxu0 0.0
        %1495 = vmatpush1.msra.mxu0 %v1023
        %1496 = vmatprep.subr.mxu0 0.0
        %1497 = vmatpush1.msra.mxu0 %v1024
        %1498 = vmatprep.subr.mxu0 0.0
        %1499 = vmatpush1.msra.mxu0 %v1025
        %1500 = vmatprep.subr.mxu0 0.0
        %1501 = vmatpush1.msra.mxu0 %v1107
        %1502 = vmatprep.subr.mxu0 0.0
        %1503 = vmatpush1.msra.mxu0 %v1108
        %1504 = vmatprep.subr.mxu0 0.0
        %1505 = vmatpush1.msra.mxu0 %v1109
        %1506 = vmatprep.subr.mxu0 0.0
        %1507 = vmatpush1.msra.mxu0 %v1110
        %1508 = vmatprep.subr.mxu0 0.0
        %1509 = vmatpush1.msra.mxu0 %v1111
        %1510 = vmatprep.subr.mxu0 0.0
        %1511 = vmatpush1.msra.mxu0 %v1112
        %1512 = vmatprep.subr.mxu0 0.0
        %1513 = vmatpush1.msra.mxu0 %v1113
        %1514 = vmatprep.subr.mxu0 0.0
        %1515 = vmatpush1.msra.mxu0 %v1114
        %1516 = vmatprep.subr.mxu0 0.0
        %1517 = vmatpush1.msra.mxu0 %v1115
        %1518 = vmatprep.subr.mxu0 0.0
        %1519 = vmatpush1.msra.mxu0 %v1116
        %1520 = vmatprep.subr.mxu0 0.0
        %1521 = vmatpush1.msra.mxu0 %v1117
        %1522 = vmatprep.subr.mxu0 0.0
        %1523 = vmatpush1.msra.mxu0 %v1118
        %1524 = vmatprep.subr.mxu0 0.0
        %1525 = vmatpush1.msra.mxu0 %v1119
        %1526 = vmatprep.subr.mxu0 0.0
        %1527 = vmatpush1.msra.mxu0 %v1120
        %1528 = vmatprep.subr.mxu0 0.0
        %1529 = vmatpush1.msra.mxu0 %v1121
        %1530 = vmatprep.mubr.f32.mxu0 %v1243
        %1531 = vmatmul.mubr.f32.gmra.mrb[0].mxu0 %v1242
        %v1532 = vpop.f32.mrb[0].mxu0
        %v1533 = vadd.f32 %v1463, %v1532
        %v1534 = vpop.f32.mrb[0].mxu0
        %1535 = vdwg.mxu0
        %1536 = vmatprep.subr.mxu0 0.0
        %1537 = vmatpush1.msra.mxu0 %v1122
        %1538 = vmatprep.subr.mxu0 0.0
        %1539 = vmatpush1.msra.mxu0 %v1204
        %1540 = vmatprep.subr.mxu0 0.0
        %1541 = vmatpush1.msra.mxu0 %v1205
        %1542 = vmatprep.subr.mxu0 0.0
        %1543 = vmatpush1.msra.mxu0 %v1206
        %1544 = vmatprep.subr.mxu0 0.0
        %1545 = vmatpush1.msra.mxu0 %v1207
        %1546 = vmatprep.subr.mxu0 0.0
        %1547 = vmatpush1.msra.mxu0 %v1208
        %1548 = vmatprep.subr.mxu0 0.0
        %1549 = vmatpush1.msra.mxu0 %v1209
        %1550 = vmatprep.subr.mxu0 0.0
        %1551 = vmatpush1.msra.mxu0 %v1210
        %1552 = vmatprep.subr.mxu0 0.0
        %1553 = vmatpush1.msra.mxu0 %v1211
        %1554 = vmatprep.subr.mxu0 0.0
        %1555 = vmatpush1.msra.mxu0 %v1212
        %1556 = vmatprep.subr.mxu0 0.0
        %1557 = vmatpush1.msra.mxu0 %v1213
        %1558 = vmatprep.subr.mxu0 0.0
        %1559 = vmatpush1.msra.mxu0 %v1214
        %1560 = vmatprep.subr.mxu0 0.0
        %1561 = vmatpush1.msra.mxu0 %v1215
        %1562 = vmatprep.subr.mxu0 0.0
        %1563 = vmatpush1.msra.mxu0 %v1216
        %1564 = vmatprep.subr.mxu0 0.0
        %1565 = vmatpush1.msra.mxu0 %v1217
        %1566 = vmatprep.subr.mxu0 0.0
        %1567 = vmatpush1.msra.mxu0 %v1218
        %1568 = vmatprep.subr.mxu0 0.0
        %1569 = vmatpush1.msra.mxu0 %v1219
        %1570 = vmatprep.subr.mxu0 0.0
        %1571 = vmatpush1.msra.mxu0 0.0
        %1572 = vmatprep.subr.mxu0 0.0
        %1573 = vmatpush1.msra.mxu0 0.0
        %1574 = vmatprep.subr.mxu0 0.0
        %1575 = vmatpush1.msra.mxu0 0.0
        %1576 = vmatprep.subr.mxu0 0.0
        %1577 = vmatpush1.msra.mxu0 0.0
        %1578 = vmatprep.subr.mxu0 0.0
        %1579 = vmatpush1.msra.mxu0 0.0
        %1580 = vmatprep.subr.mxu0 0.0
        %1581 = vmatpush1.msra.mxu0 0.0
        %1582 = vmatprep.subr.mxu0 0.0
        %1583 = vmatpush1.msra.mxu0 0.0
        %1584 = vmatprep.subr.mxu0 0.0
        %1585 = vmatpush1.msra.mxu0 0.0
        %1586 = vmatprep.subr.mxu0 0.0
        %1587 = vmatpush1.msra.mxu0 0.0
        %1588 = vmatprep.subr.mxu0 0.0
        %1589 = vmatpush1.msra.mxu0 0.0
        %1590 = vmatprep.subr.mxu0 0.0
        %1591 = vmatpush1.msra.mxu0 0.0
        %1592 = vmatprep.subr.mxu0 0.0
        %1593 = vmatpush1.msra.mxu0 0.0
        %1594 = vmatprep.subr.mxu0 0.0
        %1595 = vmatpush1.msra.mxu0 0.0
        %1596 = vmatprep.subr.mxu0 0.0
        %1597 = vmatpush1.msra.mxu0 0.0
        %1598 = vmatprep.subr.mxu0 0.0
        %1599 = vmatpush1.msra.mxu0 0.0
        %1600 = vmatprep.mubr.f32.mxu0 %v1254
        %1601 = vmatmul.mubr.f32.gmra.mrb[0].mxu0 %v1244
        %v1602 = vpop.f32.mrb[0].mxu0
        %v1603 = vadd.f32 %v1533, %v1602
        %v1604 = vpop.f32.mrb[0].mxu0
        %1605 = vdwg.mxu0
        %v1606 = vmax.f32 %v1603, 0.0
        %v1607 = vld [vmem:[%s381] sm:$0x1]
        %v1609 = vlaneseq
        %v1610 = vshrl.u32 %v1609, 7
        %v1611 = vsub.s32 0, %v1610
        %v1612 = vrot.slane %v1607, %v1611
        %v1614 = vmul.f32 %v1606, %v1612
        %1615 = vst [vmem:[%s394] sm:$0xff] %v1614
        %p1616 = scmp.lt.s32.totalorder %s17, 5
        %s1617 = scalar_select %p1616, %s17, 5
        %s1618 = smul.addr %s1617, 8
        %s1619 = scalar_lea.vmem %s6, %s1618
        // Predicated region
        $region83: #{line_pool_forward.4} parent=77 // pred_check
          %p1620 = pneg %p181
        $region84: #{line_pool_forward.4} parent=77 // pred_check_branch
          %1622 = sbr.rel (%p1620) target = $region86
        $region85: #{line_pool_forward.4} parent=77 // pred_region
          _
        $region86: #{line_pool_forward.4} parent=77 // pred_fallthru
          _
      $region78: #{line_pool_forward.4} parent=5 // pred_fallthru
        _
      %p1623 = scmp.le.s32.totalorder 2, %s12
      // Predicated region
      $region87: #{line_pool_forward.4} parent=5 // pred_check
        %p1624 = pneg %p1623
      $region88: #{line_pool_forward.4} parent=5 // pred_check_branch
        %1626 = sbr.rel (%p1624) target = $region90
      $region89: #{line_pool_forward.4} parent=5 // pred_region
        %s1627 = ssub.s32 %s12, 2
        // Predicated region
        $region91: #{line_pool_forward.4} parent=89 // pred_check
          %p1628 = pneg %p187
        $region92: #{line_pool_forward.4} parent=89 // pred_check_branch
          %1630 = sbr.rel (%p1628) target = $region94
        $region93: #{line_pool_forward.4} parent=89 // pred_region
          %p1631 = scmp.lt.s32.totalorder %s18, 5
          %s1632 = scalar_select %p1631, %s18, 5
          %s1633 = smul.addr %s1632, 8
          %s1634 = scalar_lea.vmem %s6, %s1633
        $region94: #{line_pool_forward.4} parent=89 // pred_fallthru
          _
      $region90: #{line_pool_forward.4} parent=5 // pred_fallthru
        _
    $region6: #{line_pool_forward.4} parent=1 // loop_footer
      %s16 = sadd.s32 1, %s12
    $region7: #{line_pool_forward.4} parent=1 // loop_footer_branch
      %11 = sbr.rel target = $region3
    $region8: #{line_pool_forward.4} parent=1 // loop_exit
      _

// kernel: line_pool_forward.5
$region0: #{line_pool_forward.5}
  #allocation0 [shape = 'u32[]', space=smem, size = 0x4, offset = 0x4, fixed_abs, tag = 'smem constant byte address 0x4 - core index']
  #allocation1 [shape = 'u32[144,128]{1,0:T(1,128)}', space=vmem, size = 0x12000, scoped, tag = 'internal scratch']
  %s0 = inlined_call_operand.vmem [shape: f32[1,768], index: 0, kind: input, shape index: {}]
  %s1 = inlined_call_operand.vmem [shape: f32[8,768], index: 1, kind: input, shape index: {}]
  %s2 = inlined_call_operand.vmem [shape: f32[6,8,38], index: 2, kind: input, shape index: {}]
  %s3 = inlined_call_operand.vmem [shape: f32[8,72], index: 3, kind: input, shape index: {}]
  %s4 = inlined_call_operand.vmem [shape: f32[8,1], index: 4, kind: input, shape index: {}]
  %s5 = inlined_call_operand.vmem [shape: f32[8,768], index: 5, kind: output, shape index: {}]
  %s6 = sld [smem:[#allocation0]]
  $region53: #{line_pool_forward.5} parent=0
    _
  %s8 = ssub.s32 1, %s6
  %s9 = scalar_select 0, %s8, %s6
  loop: start=0, step=1, limit=8
  $region2: #{line_pool_forward.5} parent=0 // loop_pre_header
    _
  $region3: #{line_pool_forward.5} parent=0 // loop_header
    %s11 = sphi 0, %s15
    %p12 = scmp.ge.s32.totalorder %s11, 8
    %s21 = sphi 0, %s23
    %s24 = sphi 0, %s21
    %s25 = sphi 0, %s24
    %s41 = sphi 0, %s25
    %s47 = sphi 0, %s49
    %s50 = sphi 0, %s47
    %s51 = sphi 0, %s50
    %s67 = sphi 0, %s51
    %s73 = sphi 0, %s75
    %s76 = sphi 0, %s73
    %s77 = sphi 0, %s76
    %s93 = sphi 0, %s77
    %s97 = sphi 0, %s97
    %s99 = sphi 0, %s97
    %s100 = sphi 0, %s99
    %s114 = sphi 0, %s100
    %s118 = sphi 0, %s118
    %s120 = sphi 0, %s118
    %s121 = sphi 0, %s120
    %s135 = sphi 0, %s121
    %s141 = sphi 0, %s143
    %s144 = sphi 0, %s141
    %s145 = sphi 0, %s144
    %s161 = sphi 0, %s145
  $region4: #{line_pool_forward.5} parent=0 // loop_header_branch
    %14 = sbr.rel (%p12) target = $region8
  $region5: #{line_pool_forward.5} parent=0 // loop_body
    %s16 = ssub.s32 %s11, 1
    %s17 = ssub.s32 %s11, 2
    %s18 = sadd.s32 %s11, 1
    %s19 = ssub.s32 %s11, %s18
    %p20 = scmp.eq.s32.totalorder %s19, 0
    %s22 = sadd.s32 %s21, 1
    %s23 = scalar_select %p20, %s21, %s22
    %p26 = pneg %p20
    %p27 = scmp.eq.s32.totalorder %s11, 5
    %p28 = por %p26, %p27
    %p29 = scmp.ne.s32.totalorder %s21, %s24
    %p30 = scmp.eq.s32.totalorder %s11, 0
    %p31 = por %p29, %p30
    %p32 = scmp.ne.s32.totalorder %s21, %s24
    %p33 = scmp.eq.s32.totalorder %s16, 5
    %p34 = por %p32, %p33
    %p35 = scmp.ne.s32.totalorder %s24, %s25
    %p36 = scmp.eq.s32.totalorder %s16, 0
    %p37 = por %p35, %p36
    %p38 = scmp.ne.s32.totalorder %s24, %s25
    %p39 = scmp.eq.s32.totalorder %s17, 5
    %p40 = por %p38, %p39
    %p42 = scmp.ne.s32.totalorder %s25, %s41
    %p43 = scmp.eq.s32.totalorder %s17, 0
    %p44 = por %p42, %p43
    %s45 = ssub.s32 %s11, %s18
    %p46 = scmp.eq.s32.totalorder %s45, 0
    %s48 = sadd.s32 %s47, 1
    %s49 = scalar_select %p46, %s47, %s48
    %p52 = pneg %p46
    %p53 = scmp.eq.s32.totalorder %s11, 5
    %p54 = por %p52, %p53
    %p55 = scmp.ne.s32.totalorder %s47, %s50
    %p56 = scmp.eq.s32.totalorder %s11, 0
    %p57 = por %p55, %p56
    %p58 = scmp.ne.s32.totalorder %s47, %s50
    %p59 = scmp.eq.s32.totalorder %s16, 5
    %p60 = por %p58, %p59
    %p61 = scmp.ne.s32.totalorder %s50, %s51
    %p62 = scmp.eq.s32.totalorder %s16, 0
    %p63 = por %p61, %p62
    %p64 = scmp.ne.s32.totalorder %s50, %s51
    %p65 = scmp.eq.s32.totalorder %s17, 5
    %p66 = por %p64, %p65
    %p68 = scmp.ne.s32.totalorder %s51, %s67
    %p69 = scmp.eq.s32.totalorder %s17, 0
    %p70 = por %p68, %p69
    %s71 = ssub.s32 %s11, %s18
    %p72 = scmp.eq.s32.totalorder %s71, 0
    %s74 = sadd.s32 %s73, 1
    %s75 = scalar_select %p72, %s73, %s74
    %p78 = pneg %p72
    %p79 = scmp.eq.s32.totalorder %s11, 5
    %p80 = por %p78, %p79
    %p81 = scmp.ne.s32.totalorder %s73, %s76
    %p82 = scmp.eq.s32.totalorder %s11, 0
    %p83 = por %p81, %p82
    %p84 = scmp.ne.s32.totalorder %s73, %s76
    %p85 = scmp.eq.s32.totalorder %s16, 5
    %p86 = por %p84, %p85
    %p87 = scmp.ne.s32.totalorder %s76, %s77
    %p88 = scmp.eq.s32.totalorder %s16, 0
    %p89 = por %p87, %p88
    %p90 = scmp.ne.s32.totalorder %s76, %s77
    %p91 = scmp.eq.s32.totalorder %s17, 5
    %p92 = por %p90, %p91
    %p94 = scmp.ne.s32.totalorder %s77, %s93
    %p95 = scmp.eq.s32.totalorder %s17, 0
    %p96 = por %p94, %p95
    %s98 = sadd.s32 %s97, 1
    %p101 = scmp.eq.s32.totalorder %s11, 5
    %p102 = scmp.ne.s32.totalorder %s97, %s99
    %p103 = scmp.eq.s32.totalorder %s11, 0
    %p104 = por %p102, %p103
    %p105 = scmp.ne.s32.totalorder %s97, %s99
    %p106 = scmp.eq.s32.totalorder %s16, 5
    %p107 = por %p105, %p106
    %p108 = scmp.ne.s32.totalorder %s99, %s100
    %p109 = scmp.eq.s32.totalorder %s16, 0
    %p110 = por %p108, %p109
    %p111 = scmp.ne.s32.totalorder %s99, %s100
    %p112 = scmp.eq.s32.totalorder %s17, 5
    %p113 = por %p111, %p112
    %p115 = scmp.ne.s32.totalorder %s100, %s114
    %p116 = scmp.eq.s32.totalorder %s17, 0
    %p117 = por %p115, %p116
    %s119 = sadd.s32 %s118, 1
    %p122 = scmp.eq.s32.totalorder %s11, 5
    %p123 = scmp.ne.s32.totalorder %s118, %s120
    %p124 = scmp.eq.s32.totalorder %s11, 0
    %p125 = por %p123, %p124
    %p126 = scmp.ne.s32.totalorder %s118, %s120
    %p127 = scmp.eq.s32.totalorder %s16, 5
    %p128 = por %p126, %p127
    %p129 = scmp.ne.s32.totalorder %s120, %s121
    %p130 = scmp.eq.s32.totalorder %s16, 0
    %p131 = por %p129, %p130
    %p132 = scmp.ne.s32.totalorder %s120, %s121
    %p133 = scmp.eq.s32.totalorder %s17, 5
    %p134 = por %p132, %p133
    %p136 = scmp.ne.s32.totalorder %s121, %s135
    %p137 = scmp.eq.s32.totalorder %s17, 0
    %p138 = por %p136, %p137
    %s139 = ssub.s32 %s11, %s18
    %p140 = scmp.eq.s32.totalorder %s139, 0
    %s142 = sadd.s32 %s141, 1
    %s143 = scalar_select %p140, %s141, %s142
    %p146 = pneg %p140
    %p147 = scmp.eq.s32.totalorder %s11, 5
    %p148 = por %p146, %p147
    %p149 = scmp.ne.s32.totalorder %s141, %s144
    %p150 = scmp.eq.s32.totalorder %s11, 0
    %p151 = por %p149, %p150
    %p152 = scmp.ne.s32.totalorder %s141, %s144
    %p153 = scmp.eq.s32.totalorder %s16, 5
    %p154 = por %p152, %p153
    %p155 = scmp.ne.s32.totalorder %s144, %s145
    %p156 = scmp.eq.s32.totalorder %s16, 0
    %p157 = por %p155, %p156
    %p158 = scmp.ne.s32.totalorder %s144, %s145
    %p159 = scmp.eq.s32.totalorder %s17, 5
    %p160 = por %p158, %p159
    %p162 = scmp.ne.s32.totalorder %s145, %s161
    %p163 = scmp.eq.s32.totalorder %s17, 0
    %p164 = por %p162, %p163
    %p165 = scmp.le.s32.totalorder 1, %s11
    %p166 = scmp.lt.s32.totalorder %s11, 7
    %p167 = pnand %p165, %p166
    %p168 = pneg %p167
    // Predicated region
    $region9: #{line_pool_forward.5} parent=5 // pred_check
      _
    $region10: #{line_pool_forward.5} parent=5 // pred_check_branch
      %170 = sbr.rel (%p167) target = $region12
    $region11: #{line_pool_forward.5} parent=5 // pred_region
      %s171 = ssub.s32 %s11, 1
      // Predicated region
      $region13: #{line_pool_forward.5} parent=11 // pred_check
        %p172 = pneg %p110
      $region14: #{line_pool_forward.5} parent=11 // pred_check_branch
        %174 = sbr.rel (%p172) target = $region16
      $region15: #{line_pool_forward.5} parent=11 // pred_region
        _
      $region16: #{line_pool_forward.5} parent=11 // pred_fallthru
        _
      // Predicated region
      $region17: #{line_pool_forward.5} parent=11 // pred_check
        %p175 = pneg %p131
      $region18: #{line_pool_forward.5} parent=11 // pred_check_branch
        %177 = sbr.rel (%p175) target = $region20
      $region19: #{line_pool_forward.5} parent=11 // pred_region
        _
      $region20: #{line_pool_forward.5} parent=11 // pred_fallthru
        _
    $region12: #{line_pool_forward.5} parent=5 // pred_fallthru
      _
    %p178 = scmp.lt.s32.totalorder %s11, 6
    // Predicated region
    $region21: #{line_pool_forward.5} parent=5 // pred_check
      %p179 = pneg %p178
    $region22: #{line_pool_forward.5} parent=5 // pred_check_branch
      %181 = sbr.rel (%p179) target = $region24
    $region23: #{line_pool_forward.5} parent=5 // pred_region
      // Predicated region
      $region25: #{line_pool_forward.5} parent=23 // pred_check
        %p182 = pneg %p31
      $region26: #{line_pool_forward.5} parent=23 // pred_check_branch
        %184 = sbr.rel (%p182) target = $region28
      $region27: #{line_pool_forward.5} parent=23 // pred_region
        %p185 = scmp.lt.s32.totalorder %s11, 5
        %s186 = scalar_select %p185, %s11, 5
        %s187 = scalar_lea.vmem %s0, %s186
      $region28: #{line_pool_forward.5} parent=23 // pred_fallthru
        _
      // Predicated region
      $region29: #{line_pool_forward.5} parent=23 // pred_check
        %p188 = pneg %p57
      $region30: #{line_pool_forward.5} parent=23 // pred_check_branch
        %190 = sbr.rel (%p188) target = $region32
      $region31: #{line_pool_forward.5} parent=23 // pred_region
        %p191 = scmp.lt.s32.totalorder %s11, 5
        %s192 = scalar_select %p191, %s11, 5
        %s193 = smul.addr %s192, 8
        %s194 = scalar_lea.vmem %s1, %s193
      $region32: #{line_pool_forward.5} parent=23 // pred_fallthru
        _
      // Predicated region
      $region33: #{line_pool_forward.5} parent=23 // pred_check
        %p195 = pneg %p83
      $region34: #{line_pool_forward.5} parent=23 // pred_check_branch
        %197 = sbr.rel (%p195) target = $region36
      $region35: #{line_pool_forward.5} parent=23 // pred_region
        %p198 = scmp.lt.s32.totalorder %s11, 5
        %s199 = scalar_select %p198, %s11, 5
        %s200 = smul.addr %s199, 8
        %s201 = scalar_lea.vmem %s2, %s200
      $region36: #{line_pool_forward.5} parent=23 // pred_fallthru
        _
    $region24: #{line_pool_forward.5} parent=5 // pred_fallthru
      _
    %p202 = scmp.le.s32.totalorder 1, %s11
    %p203 = scmp.lt.s32.totalorder %s11, 7
    %p204 = pnand %p202, %p203
    %p205 = pneg %p204
    // Predicated region
    $region37: #{line_pool_forward.5} parent=5 // pred_check
      _
    $region38: #{line_pool_forward.5} parent=5 // pred_check_branch
      %207 = sbr.rel (%p204) target = $region40
    $region39: #{line_pool_forward.5} parent=5 // pred_region
      %s208 = ssub.s32 %s11, 1
      %p209 = scmp.lt.s32.totalorder %s16, 5
      %s210 = scalar_select %p209, %s16, 5
      %s211 = scalar_lea.vmem %s0, %s210
      %p212 = pneg %p37
      %p213 = pneg %p34
      %p214 = scmp.lt.s32.totalorder %s16, 5
      %s215 = scalar_select %p214, %s16, 5
      %s216 = smul.addr %s215, 8
      %s217 = scalar_lea.vmem %s1, %s216
      %p218 = pneg %p63
      %p219 = pneg %p60
      %p220 = scmp.lt.s32.totalorder %s16, 5
      %s221 = scalar_select %p220, %s16, 5
      %s222 = smul.addr %s221, 8
      %s223 = scalar_lea.vmem %s2, %s222
      %p224 = pneg %p89
      %p225 = pneg %p86
      %p226 = pneg %p110
      %p227 = pneg %p107
      %p228 = pneg %p131
      %p229 = pneg %p128
      %p230 = pneg %p157
      %p231 = pneg %p154
      %p232 = scmp.lt.s32.totalorder %s16, 5
      %s233 = scalar_select %p232, %s16, 5
      %s234 = smul.addr %s233, 8
      %s235 = scalar_lea.vmem %s5, %s234
      %p236 = scmp.lt.s32.totalorder %s16, 5
      %s237 = scalar_select %p236, %s16, 5
      %s238 = scalar_lea.vmem %s0, %s237
      %p239 = scmp.lt.s32.totalorder %s16, 5
      %s240 = scalar_select %p239, %s16, 5
      %s241 = smul.addr %s240, 8
      %s242 = scalar_lea.vmem %s1, %s241
      %p243 = scmp.lt.s32.totalorder %s16, 5
      %s244 = scalar_select %p243, %s16, 5
      %s245 = smul.addr %s244, 8
      %s246 = scalar_lea.vmem %s2, %s245
      %p247 = scmp.lt.s32.totalorder %s16, 5
      %s248 = scalar_select %p247, %s16, 5
      %s249 = smul.addr %s248, 8
      %s250 = scalar_lea.vmem %s5, %s249
      %v251 = vld [vmem:[%s242] sm:$0xff]
      %v252 = vld [vmem:[%s246] sm:$0xff]
      %255 = vrot.lane.b32.xlu0 %v251, 127
      %v256 = vpop.permute.xlu0 %255
      %257 = vrot.lane.b32.xlu0 %v252, 127
      %v258 = vpop.permute.xlu0 %257
      %vm259 = vcmask 1039360
      %v260 = vsel %vm259, %v256, %v258
      %262 = vrot.lane.b32.xlu0 %v251, 126
      %v263 = vpop.permute.xlu0 %262
      %264 = vrot.lane.b32.xlu0 %v252, 126
      %v265 = vpop.permute.xlu0 %264
      %vm266 = vcmask 1031168
      %v267 = vsel %vm266, %v263, %v265
      %269 = vrot.lane.b32.xlu0 %v251, 110
      %v270 = vpop.permute.xlu0 %269
      %271 = vrot.lane.b32.xlu0 %v252, 110
      %v272 = vpop.permute.xlu0 %271
      %vm273 = vcmask 900096
      %v274 = vsel %vm273, %v270, %v272
      %276 = vrot.lane.b32.xlu0 %v251, 109
      %v277 = vpop.permute.xlu0 %276
      %278 = vrot.lane.b32.xlu0 %v252, 109
      %v279 = vpop.permute.xlu0 %278
      %vm280 = vcmask 891904
      %v281 = vsel %vm280, %v277, %v279
      %283 = vrot.lane.b32.xlu0 %v251, 108
      %v284 = vpop.permute.xlu0 %283
      %285 = vrot.lane.b32.xlu0 %v252, 108
      %v286 = vpop.permute.xlu0 %285
      %vm287 = vcmask 883712
      %v288 = vsel %vm287, %v284, %v286
      %290 = vrot.lane.b32.xlu0 %v251, 92
      %v291 = vpop.permute.xlu0 %290
      %292 = vrot.lane.b32.xlu0 %v252, 92
      %v293 = vpop.permute.xlu0 %292
      %vm294 = vcmask 752640
      %v295 = vsel %vm294, %v291, %v293
      %297 = vrot.lane.b32.xlu0 %v251, 91
      %v298 = vpop.permute.xlu0 %297
      %299 = vrot.lane.b32.xlu0 %v252, 91
      %v300 = vpop.permute.xlu0 %299
      %vm301 = vcmask 744448
      %v302 = vsel %vm301, %v298, %v300
      %304 = vrot.lane.b32.xlu0 %v251, 90
      %v305 = vpop.permute.xlu0 %304
      %306 = vrot.lane.b32.xlu0 %v252, 90
      %v307 = vpop.permute.xlu0 %306
      %vm308 = vcmask 736256
      %v309 = vsel %vm308, %v305, %v307
      %v311 = vld [vmem:[%s3] sm:$0xff]
      %v312 = vld [vmem:[%s4] sm:$0xff]
      %314 = vset.pattern.permute.xlu0 0
      %315 = vperm.xlu0 %314, %v312
      %v316 = vpop.permute.xlu0 %315
      %vm318 = vcmask 588800
      %v320 = vsel %vm318, %v311, 0
      %322 = vmatprep.subr.mxu0 0.0
      %323 = vmatpush1.msra.mxu0 %v251
      %324 = vmatprep.subr.mxu0 0.0
      %325 = vmatpush1.msra.mxu0 %v260
      %326 = vmatprep.subr.mxu0 0.0
      %327 = vmatpush1.msra.mxu0 %v267
      %328 = vmatprep.subr.mxu0 0.0
      %329 = vmatpush1.msra.mxu0 %v274
      %330 = vmatprep.subr.mxu0 0.0
      %331 = vmatpush1.msra.mxu0 %v281
      %332 = vmatprep.subr.mxu0 0.0
      %333 = vmatpush1.msra.mxu0 %v288
      %334 = vmatprep.subr.mxu0 0.0
      %335 = vmatpush1.msra.mxu0 %v295
      %336 = vmatprep.subr.mxu0 0.0
      %337 = vmatpush1.msra.mxu0 %v302
      %338 = vmatprep.subr.mxu0 0.0
      %339 = vmatpush1.msra.mxu0 %v309
      %340 = vmatprep.subr.mxu0 0.0
      %341 = vmatpush1.msra.mxu0 0.0
      %342 = vmatprep.subr.mxu0 0.0
      %343 = vmatpush1.msra.mxu0 0.0
      %344 = vmatprep.subr.mxu0 0.0
      %345 = vmatpush1.msra.mxu0 0.0
      %346 = vmatprep.subr.mxu0 0.0
      %347 = vmatpush1.msra.mxu0 0.0
      %348 = vmatprep.subr.mxu0 0.0
      %349 = vmatpush1.msra.mxu0 0.0
      %350 = vmatprep.subr.mxu0 0.0
      %351 = vmatpush1.msra.mxu0 0.0
      %352 = vmatprep.subr.mxu0 0.0
      %353 = vmatpush1.msra.mxu0 0.0
      %354 = vmatprep.subr.mxu0 0.0
      %355 = vmatpush1.msra.mxu0 0.0
      %356 = vmatprep.subr.mxu0 0.0
      %357 = vmatpush1.msra.mxu0 0.0
      %358 = vmatprep.subr.mxu0 0.0
      %359 = vmatpush1.msra.mxu0 0.0
      %360 = vmatprep.subr.mxu0 0.0
      %361 = vmatpush1.msra.mxu0 0.0
      %362 = vmatprep.subr.mxu0 0.0
      %363 = vmatpush1.msra.mxu0 0.0
      %364 = vmatprep.subr.mxu0 0.0
      %365 = vmatpush1.msra.mxu0 0.0
      %366 = vmatprep.subr.mxu0 0.0
      %367 = vmatpush1.msra.mxu0 0.0
      %368 = vmatprep.subr.mxu0 0.0
      %369 = vmatpush1.msra.mxu0 0.0
      %370 = vmatprep.subr.mxu0 0.0
      %371 = vmatpush1.msra.mxu0 0.0
      %372 = vmatprep.subr.mxu0 0.0
      %373 = vmatpush1.msra.mxu0 0.0
      %374 = vmatprep.subr.mxu0 0.0
      %375 = vmatpush1.msra.mxu0 0.0
      %376 = vmatprep.subr.mxu0 0.0
      %377 = vmatpush1.msra.mxu0 0.0
      %378 = vmatprep.subr.mxu0 0.0
      %379 = vmatpush1.msra.mxu0 0.0
      %380 = vmatprep.subr.mxu0 0.0
      %381 = vmatpush1.msra.mxu0 0.0
      %382 = vmatprep.subr.mxu0 0.0
      %383 = vmatpush1.msra.mxu0 0.0
      %384 = vmatprep.subr.mxu0 0.0
      %385 = vmatpush1.msra.mxu0 0.0
      %386 = vmatprep.mubr.f32.mxu0 0.0
      %387 = vmatmul.mubr.f32.gmra.mrb[0].mxu0 %v320
      %v388 = vpop.f32.mrb[0].mxu0
      %v389 = vadd.f32 %v316, %v388
      %v390 = vpop.f32.mrb[0].mxu0
      %391 = vdwg.mxu0
      %v392 = vmax.f32 %v389, 0.0
      %v393 = vld [vmem:[%s238] sm:$0x1]
      %v395 = vlaneseq
      %v396 = vshrl.u32 %v395, 7
      %v397 = vsub.s32 0, %v396
      %v398 = vrot.slane %v393, %v397
      %v400 = vmul.f32 %v392, %v398
      %401 = vst [vmem:[%s250] sm:$0xff] %v400
      %p402 = scmp.lt.s32.totalorder %s16, 5
      %s403 = scalar_select %p402, %s16, 5
      %s404 = smul.addr %s403, 8
      %s405 = scalar_lea.vmem %s5, %s404
      // Predicated region
      $region41: #{line_pool_forward.5} parent=39 // pred_check
        %p406 = pneg %p154
      $region42: #{line_pool_forward.5} parent=39 // pred_check_branch
        %408 = sbr.rel (%p406) target = $region44
      $region43: #{line_pool_forward.5} parent=39 // pred_region
        _
      $region44: #{line_pool_forward.5} parent=39 // pred_fallthru
        _
    $region40: #{line_pool_forward.5} parent=5 // pred_fallthru
      _
    %p409 = scmp.le.s32.totalorder 2, %s11
    // Predicated region
    $region45: #{line_pool_forward.5} parent=5 // pred_check
      %p410 = pneg %p409
    $region46: #{line_pool_forward.5} parent=5 // pred_check_branch
      %412 = sbr.rel (%p410) target = $region48
    $region47: #{line_pool_forward.5} parent=5 // pred_region
      %s413 = ssub.s32 %s11, 2
      // Predicated region
      $region49: #{line_pool_forward.5} parent=47 // pred_check
        %p414 = pneg %p160
      $region50: #{line_pool_forward.5} parent=47 // pred_check_branch
        %416 = sbr.rel (%p414) target = $region52
      $region51: #{line_pool_forward.5} parent=47 // pred_region
        %p417 = scmp.lt.s32.totalorder %s17, 5
        %s418 = scalar_select %p417, %s17, 5
        %s419 = smul.addr %s418, 8
        %s420 = scalar_lea.vmem %s5, %s419
      $region52: #{line_pool_forward.5} parent=47 // pred_fallthru
        _
    $region48: #{line_pool_forward.5} parent=5 // pred_fallthru
      _
  $region6: #{line_pool_forward.5} parent=0 // loop_footer
    %s15 = sadd.s32 1, %s11
  $region7: #{line_pool_forward.5} parent=0 // loop_footer_branch
    %10 = sbr.rel target = $region3
  $region8: #{line_pool_forward.5} parent=0 // loop_exit
    _

</llo_original>
